<compile_context>
chip_gen: v6e
topology: v6e:2x2x1
jax: 0.10.0
libtpu: 0.0.40
codegen_flags: <defaults>
</compile_context>

<pallas_src>
import jax
import jax.numpy as jnp
from jax.experimental import pallas as pl
from jax.experimental.pallas import tpu as pltpu

MAX_TB = 128  # max node-tile (sublane) rows per grid step


def _round_up(x, m):
    return -(-x // m) * m


def _choose_tb(K):
    """Node tile size: as large as useful (cap MAX_TB), multiple of 8, and
    aiming for >= 2 tiles so the 'parallel' grid axis can use both TCs on v7x."""
    kp = _round_up(max(K, 1), 8)
    if kp <= 8:
        return 8
    return min(MAX_TB, _round_up(kp // 2 + (kp % 2), 8))


def _sigmoid(x):
    # sigmoid(x) == 0.5 * tanh(0.5 * x) + 0.5  -> single EUP push instead of exp+div.
    return 0.5 * jnp.tanh(0.5 * x) + 0.5


# ----------------------------------------------------------------------------
# Pallas kernel: compose TB binary-tree nodes (one grid step)
# ----------------------------------------------------------------------------
def compose_kernel(
    c_pair_ref, h_pair_ref,                # (2, TB, M): [left ; right] child tiles
    wx_ref, bx_ref,                        # (M, 5M) bf16 = [W_ih | Wh],  (1, 5M) f32
    whh_ref,                               # (M, 4M) bf16  LSTM hidden->gates
    us_w_ref, us_b_ref,                    # (M, M) bf16, (1, M) f32
    w_att_ref,                             # (1, M)  f32   attention vector
    ma_w_ref, ma_b_ref,                    # (M, M) bf16, (1, M) f32   map_alpha
    wg_ref, bg_ref,                        # (2M, 4M) bf16 = [[WL],[WR]], (1, 4M) f32
    c_out_ref, h_out_ref,                  # (TB, M) outputs
):
    f32 = jnp.float32
    bf16 = jnp.bfloat16
    tb, M = c_out_ref.shape

    cp = c_pair_ref[...]
    hp = h_pair_ref[...]
    lc, rc = cp[0], cp[1]
    lh, rh = hp[0], hp[1]

    # Fused x-side projection for both children: [lh; rh] @ [W_ih | Wh].
    # bf16 LHS x bf16 weights -> native MXU rate; accumulate in f32.
    xh = jnp.concatenate([lh, rh], axis=0).astype(bf16)                 # (2TB, M)
    proj = jnp.dot(xh, wx_ref[...], preferred_element_type=f32) + bx_ref[...]
    lproj = proj[:tb]                                                   # (TB, 5M)
    rproj = proj[tb:]

    # --- child_lstm over the 2-step sequence [lh, rh], zero initial state ----
    g1 = lproj[:, :4 * M]                    # step 1: h0 = c0 = 0
    i1 = _sigmoid(g1[:, :M])
    u1 = jnp.tanh(g1[:, 2 * M:3 * M])
    o1 = _sigmoid(g1[:, 3 * M:])
    c1 = i1 * u1
    h1 = o1 * jnp.tanh(c1)

    g2 = rproj[:, :4 * M] + jnp.dot(h1.astype(bf16), whh_ref[...],
                                    preferred_element_type=f32)          # step 2
    i2 = _sigmoid(g2[:, :M])
    f2 = _sigmoid(g2[:, M:2 * M])
    u2 = jnp.tanh(g2[:, 2 * M:3 * M])
    o2 = _sigmoid(g2[:, 3 * M:])
    c2 = f2 * c1 + i2 * u2
    s = o2 * jnp.tanh(c2)                                                # S (TB, M)

    # --- attention over the two children -------------------------------------
    us_s = jnp.dot(s.astype(bf16), us_w_ref[...],
                   preferred_element_type=f32) + us_b_ref[...]           # (TB, M)
    m_l = jnp.tanh(lproj[:, 4 * M:] + us_s)
    m_r = jnp.tanh(rproj[:, 4 * M:] + us_s)
    w_att = w_att_ref[...]
    e_l = jnp.sum(m_l * w_att, axis=-1, keepdims=True)                   # (TB, 1)
    e_r = jnp.sum(m_r * w_att, axis=-1, keepdims=True)
    inv = pl.reciprocal(e_l + e_r, approx=True)
    a_l = e_l * inv
    a_r = e_r * inv

    # map_alpha applied to both weighted children in one MXU push (stacked rows).
    ah = jnp.concatenate([a_l * lh, a_r * rh], axis=0).astype(bf16)      # (2TB, M)
    la_ra = jnp.tanh(jnp.dot(ah, ma_w_ref[...],
                             preferred_element_type=f32) + ma_b_ref[...])
    la = la_ra[:tb]
    ra = la_ra[tb:]

    # --- composer gates: all 8 linears fused into one (2M, 4M) matmul --------
    gates = jnp.dot(jnp.concatenate([la, ra], axis=-1).astype(bf16),
                    wg_ref[...], preferred_element_type=f32) + bg_ref[...]
    i_g = _sigmoid(gates[:, :M])
    lf = _sigmoid(gates[:, M:2 * M])
    rf = _sigmoid(gates[:, 2 * M:3 * M])
    upd = jnp.tanh(gates[:, 3 * M:])

    c = i_g * upd + lf * lc + rf * rc
    h = jnp.tanh(c)                          # gate_output=False path: no output gate
    c_out_ref[...] = c
    h_out_ref[...] = h


# ----------------------------------------------------------------------------
# Host wrappers
# ----------------------------------------------------------------------------
def binary_compose_pallas(params, c_pair, h_pair, tb):
    """Compose K independent child pairs; c_pair/h_pair are (2, Kp, M), Kp % tb == 0."""
    _, Kp, M = h_pair.shape
    nblk = Kp // tb
    p = params
    weights = (p["Wx"], p["bx"], p["Whh"], p["Us_w"], p["Us_b"], p["w"],
               p["ma_w"], p["ma_b"], p["Wg"], p["bg"])

    pair_spec = pl.BlockSpec((2, tb, M), lambda i: (0, i, 0))
    out_spec = pl.BlockSpec((tb, M), lambda i: (i, 0))
    # Constant index_map => weights DMA'd once, resident in VMEM across the grid.
    const_specs = [pl.BlockSpec(w.shape, lambda i: (0, 0)) for w in weights]

    c, h = pl.pallas_call(
        compose_kernel,
        out_shape=(jax.ShapeDtypeStruct((Kp, M), jnp.float32),
                   jax.ShapeDtypeStruct((Kp, M), jnp.float32)),
        grid=(nblk,),
        in_specs=[pair_spec, pair_spec] + const_specs,
        out_specs=(out_spec, out_spec),
        compiler_params=pltpu.CompilerParams(
            dimension_semantics=("parallel",)),   # shards node tiles across TCs on v7x
    )(c_pair, h_pair, *weights)
    return c, h


def _compose_level(params, child_c, child_h):
    """One tree level: children paired (2j, 2j+1) -> K = n/2 parents, one pallas_call."""
    n2, M = child_c.shape
    K = n2 // 2
    # Pack children as (2, K, M): index 0 = left children, index 1 = right children.
    c_pair = jnp.swapaxes(child_c.reshape(K, 2, M), 0, 1)
    h_pair = jnp.swapaxes(child_h.reshape(K, 2, M), 0, 1)
    tb = _choose_tb(K)
    Kp = _round_up(K, tb)
    pad = Kp - K
    if pad:
        c_pair = jnp.pad(c_pair, ((0, 0), (0, pad), (0, 0)))
        h_pair = jnp.pad(h_pair, ((0, 0), (0, pad), (0, 0)))
    c, h = binary_compose_pallas(params, c_pair, h_pair, tb)
    return c[:K], h[:K]


compose_level = jax.jit(_compose_level)


# ----------------------------------------------------------------------------
# Pure-JAX reference (same math, f32, exact sigmoid / division)
# ----------------------------------------------------------------------------
def binary_compose_ref(params, lc, lh, rc, rh):
    p = params
    f32 = jnp.float32
    M = lh.shape[-1]
    wx = p["Wx"].astype(f32)
    whh = p["Whh"].astype(f32)
    usw = p["Us_w"].astype(f32)
    maw = p["ma_w"].astype(f32)
    wg = p["Wg"].astype(f32)

    lproj = lh @ wx + p["bx"]
    rproj = rh @ wx + p["bx"]
    g1 = lproj[:, :4 * M]
    i1 = jax.nn.sigmoid(g1[:, :M])
    u1 = jnp.tanh(g1[:, 2 * M:3 * M])
    o1 = jax.nn.sigmoid(g1[:, 3 * M:])
    c1 = i1 * u1
    h1 = o1 * jnp.tanh(c1)
    g2 = rproj[:, :4 * M] + h1 @ whh
    i2 = jax.nn.sigmoid(g2[:, :M])
    f2 = jax.nn.sigmoid(g2[:, M:2 * M])
    u2 = jnp.tanh(g2[:, 2 * M:3 * M])
    o2 = jax.nn.sigmoid(g2[:, 3 * M:])
    c2 = f2 * c1 + i2 * u2
    s = o2 * jnp.tanh(c2)

    us_s = s @ usw + p["Us_b"]
    m_l = jnp.tanh(lproj[:, 4 * M:] + us_s)
    m_r = jnp.tanh(rproj[:, 4 * M:] + us_s)
    e_l = jnp.sum(m_l * p["w"], axis=-1, keepdims=True)
    e_r = jnp.sum(m_r * p["w"], axis=-1, keepdims=True)
    a_l = e_l / (e_l + e_r)
    a_r = e_r / (e_l + e_r)
    la = jnp.tanh((a_l * lh) @ maw + p["ma_b"])
    ra = jnp.tanh((a_r * rh) @ maw + p["ma_b"])

    gates = jnp.concatenate([la, ra], axis=-1) @ wg + p["bg"]
    i_g = jax.nn.sigmoid(gates[:, :M])
    lf = jax.nn.sigmoid(gates[:, M:2 * M])
    rf = jax.nn.sigmoid(gates[:, 2 * M:3 * M])
    upd = jnp.tanh(gates[:, 3 * M:])
    c = i_g * upd + lf * lc + rf * rc
    h = jnp.tanh(c)
    return c, h


def compose_level_ref(params, child_c, child_h):
    lc, rc = child_c[0::2], child_c[1::2]
    lh, rh = child_h[0::2], child_h[1::2]
    return binary_compose_ref(params, lc, lh, rc, rh)


# ----------------------------------------------------------------------------
# Parameter init: pre-fused / transposed layouts, weight matrices in bf16.
# nn.Linear weights (out, in) stored transposed as (in, out); LSTM gate order
# follows PyTorch (i, f, g, o); b_ih + b_hh folded into one bias.
# ----------------------------------------------------------------------------
def init_params(key, mem_dim):
    M = mem_dim
    ks = iter(jax.random.split(key, 32))
    s = 0.1

    def mat(shape):
        return (s * jax.random.normal(next(ks), shape)).astype(jnp.float32)

    # child_lstm
    w_ih = mat((M, 4 * M))
    w_hh = mat((M, 4 * M))
    b_ih = mat((1, 4 * M))
    b_hh = mat((1, 4 * M))
    # attention.  Positive biases / attention vector keep the module's
    # un-softmaxed alpha denominator well-conditioned for the numeric check.
    wh_w = mat((M, M))
    wh_b = mat((1, M)) + 1.0
    us_w = mat((M, M))
    us_b = mat((1, M)) + 1.0
    w_att = jnp.abs(mat((1, M))) + 0.05
    ma_w = mat((M, M))
    ma_b = mat((1, M))

    # composer gate linears (left & right for i, lf, rf, update)
    def gate():
        return mat((M, M)), mat((M, M)), mat((1, M)), mat((1, M))

    il, ir, bil, bir = gate()
    lfl, lfr, blfl, blfr = gate()
    rfl, rfr, brfl, brfr = gate()
    ul, ur, bul, bur = gate()

    WL = jnp.concatenate([il, lfl, rfl, ul], axis=1)       # (M, 4M)
    WR = jnp.concatenate([ir, lfr, rfr, ur], axis=1)       # (M, 4M)
    Wg = jnp.concatenate([WL, WR], axis=0)                 # (2M, 4M)
    bg = jnp.concatenate([bil + bir, blfl + blfr, brfl + brfr, bul + bur], axis=1)

    Wx = jnp.concatenate([w_ih, wh_w], axis=1)             # (M, 5M)
    bx = jnp.concatenate([b_ih + b_hh, wh_b], axis=1)      # (1, 5M)

    bf16 = jnp.bfloat16
    return {
        "Wx": Wx.astype(bf16), "bx": bx,
        "Whh": w_hh.astype(bf16),
        "Us_w": us_w.astype(bf16), "Us_b": us_b,
        "w": w_att,
        "ma_w": ma_w.astype(bf16), "ma_b": ma_b,
        "Wg": Wg.astype(bf16), "bg": bg,
    }


if __name__ == "__main__":
    MEM_DIM = 128
    RTOL = ATOL = 3e-2   # bf16 x bf16 MXU + approx reciprocal + tanh-form sigmoid

    key = jax.random.PRNGKey(0)
    pkey, ckey, hkey, c2key, h2key = jax.random.split(key, 5)
    params = init_params(pkey, MEM_DIM)

    # 1) Large single level: 512 children -> 256 parents.  Exercises the big tile
    #    (TB=128) and a 2-tile "parallel" grid (both TensorCores busy on v7x).
    big_c = 0.5 * jax.random.normal(c2key, (512, MEM_DIM), jnp.float32)
    big_h = jnp.tanh(jax.random.normal(h2key, (512, MEM_DIM), jnp.float32))
    c_big, h_big = compose_level(params, big_c, big_h)
    c_big = jax.block_until_ready(c_big)
    h_big = jax.block_until_ready(h_big)
    c_ref, h_ref = compose_level_ref(params, big_c, big_h)
    assert c_big.shape == (256, MEM_DIM)
    assert jnp.allclose(c_big, c_ref, rtol=RTOL, atol=ATOL), "big-level c mismatch"
    assert jnp.allclose(h_big, h_ref, rtol=RTOL, atol=ATOL), "big-level h mismatch"

    # 2) Complete binary-tree reduction, one pallas_call per level.
    N_LEAVES = 16
    leaf_c = 0.5 * jax.random.normal(ckey, (N_LEAVES, MEM_DIM), jnp.float32)
    leaf_h = jnp.tanh(jax.random.normal(hkey, (N_LEAVES, MEM_DIM), jnp.float32))
    c_cur, h_cur = leaf_c, leaf_h
    while c_cur.shape[0] > 1:
        c_next, h_next = compose_level(params, c_cur, h_cur)         # Pallas
        c_ref, h_ref = compose_level_ref(params, c_cur, h_cur)       # reference
        c_next = jax.block_until_ready(c_next)
        h_next = jax.block_until_ready(h_next)
        assert jnp.allclose(c_next, c_ref, rtol=RTOL, atol=ATOL), "c mismatch"
        assert jnp.allclose(h_next, h_ref, rtol=RTOL, atol=ATOL), "h mismatch"
        c_cur, h_cur = c_next, h_next

    assert c_cur.shape == (1, MEM_DIM) and h_cur.shape == (1, MEM_DIM)
    assert bool(jnp.all(jnp.isfinite(c_cur))) and bool(jnp.all(jnp.isfinite(h_cur)))
    print("KERNEL_OK")
</pallas_src>

<mosaic_0001>
module attributes {stable_mosaic.version = 11 : i64} {
  func.func @compose_kernel(%arg0: i32, %arg1: memref<2x128x128xf32, #tpu.memory_space<vmem>>, %arg2: memref<2x128x128xf32, #tpu.memory_space<vmem>>, %arg3: memref<128x640xbf16, #tpu.memory_space<vmem>>, %arg4: memref<1x640xf32, #tpu.memory_space<vmem>>, %arg5: memref<128x512xbf16, #tpu.memory_space<vmem>>, %arg6: memref<128x128xbf16, #tpu.memory_space<vmem>>, %arg7: memref<1x128xf32, #tpu.memory_space<vmem>>, %arg8: memref<1x128xf32, #tpu.memory_space<vmem>>, %arg9: memref<128x128xbf16, #tpu.memory_space<vmem>>, %arg10: memref<1x128xf32, #tpu.memory_space<vmem>>, %arg11: memref<256x512xbf16, #tpu.memory_space<vmem>>, %arg12: memref<1x512xf32, #tpu.memory_space<vmem>>, %arg13: memref<128x128xf32, #tpu.memory_space<vmem>>, %arg14: memref<128x128xf32, #tpu.memory_space<vmem>>) attributes {dimension_semantics = [#tpu.dimension_semantics<parallel>], iteration_bounds = array<i64: 2>, scalar_prefetch = 0 : i64, scratch_operands = 0 : i64, tpu.core_type = #tpu.core_type<tc>, window_params = [{transform_indices = @transform_0, window_bounds = array<i64: 2, 128, 128>}, {transform_indices = @transform_1, window_bounds = array<i64: 2, 128, 128>}, {pipeline_mode = #tpu.pipeline_mode<synchronous>, transform_indices = @transform_2, window_bounds = array<i64: 128, 640>}, {pipeline_mode = #tpu.pipeline_mode<synchronous>, transform_indices = @transform_3, window_bounds = array<i64: 1, 640>}, {pipeline_mode = #tpu.pipeline_mode<synchronous>, transform_indices = @transform_4, window_bounds = array<i64: 128, 512>}, {pipeline_mode = #tpu.pipeline_mode<synchronous>, transform_indices = @transform_5, window_bounds = array<i64: 128, 128>}, {pipeline_mode = #tpu.pipeline_mode<synchronous>, transform_indices = @transform_6, window_bounds = array<i64: 1, 128>}, {pipeline_mode = #tpu.pipeline_mode<synchronous>, transform_indices = @transform_7, window_bounds = array<i64: 1, 128>}, {pipeline_mode = #tpu.pipeline_mode<synchronous>, transform_indices = @transform_8, window_bounds = array<i64: 128, 128>}, {pipeline_mode = #tpu.pipeline_mode<synchronous>, transform_indices = @transform_9, window_bounds = array<i64: 1, 128>}, {pipeline_mode = #tpu.pipeline_mode<synchronous>, transform_indices = @transform_10, window_bounds = array<i64: 256, 512>}, {pipeline_mode = #tpu.pipeline_mode<synchronous>, transform_indices = @transform_11, window_bounds = array<i64: 1, 512>}, {transform_indices = @transform_12, window_bounds = array<i64: 128, 128>}, {transform_indices = @transform_13, window_bounds = array<i64: 128, 128>}]} {
    %c0 = arith.constant 0 : index
    %c0_0 = arith.constant 0 : index
    %c0_1 = arith.constant 0 : index
    %0 = vector.load %arg1[%c0, %c0_0, %c0_1] : memref<2x128x128xf32, #tpu.memory_space<vmem>>, vector<2x128x128xf32>
    %c0_2 = arith.constant 0 : index
    %c0_3 = arith.constant 0 : index
    %c0_4 = arith.constant 0 : index
    %1 = vector.load %arg2[%c0_2, %c0_3, %c0_4] : memref<2x128x128xf32, #tpu.memory_space<vmem>>, vector<2x128x128xf32>
    %2 = vector.extract_strided_slice %0 {offsets = [0, 0, 0], sizes = [1, 128, 128], strides = [1, 1, 1]} : vector<2x128x128xf32> to vector<1x128x128xf32>
    %3 = vector.shape_cast %2 : vector<1x128x128xf32> to vector<128x128xf32>
    %4 = vector.extract_strided_slice %0 {offsets = [1, 0, 0], sizes = [1, 128, 128], strides = [1, 1, 1]} : vector<2x128x128xf32> to vector<1x128x128xf32>
    %5 = vector.shape_cast %4 : vector<1x128x128xf32> to vector<128x128xf32>
    %6 = vector.extract_strided_slice %1 {offsets = [0, 0, 0], sizes = [1, 128, 128], strides = [1, 1, 1]} : vector<2x128x128xf32> to vector<1x128x128xf32>
    %7 = vector.shape_cast %6 : vector<1x128x128xf32> to vector<128x128xf32>
    %8 = vector.extract_strided_slice %1 {offsets = [1, 0, 0], sizes = [1, 128, 128], strides = [1, 1, 1]} : vector<2x128x128xf32> to vector<1x128x128xf32>
    %9 = vector.shape_cast %8 : vector<1x128x128xf32> to vector<128x128xf32>
    %10 = tpu.concatenate %7, %9 in 0 : vector<128x128xf32>, vector<128x128xf32> -> vector<256x128xf32>
    %11 = arith.truncf %10 : vector<256x128xf32> to vector<256x128xbf16>
    %c0_5 = arith.constant 0 : index
    %c0_6 = arith.constant 0 : index
    %12 = vector.load %arg3[%c0_5, %c0_6] : memref<128x640xbf16, #tpu.memory_space<vmem>>, vector<128x640xbf16>
    %cst = arith.constant dense<0.000000e+00> : vector<256x640xf32>
    %13 = tpu.matmul %11, %12, %cst {dimension_numbers = #tpu.dot_dimension_numbers<[1], [0], [0], [1], [0, 0, 1, 1], [], []>} : vector<256x128xbf16>, vector<128x640xbf16>, vector<256x640xf32> -> vector<256x640xf32>
    %c0_7 = arith.constant 0 : index
    %c0_8 = arith.constant 0 : index
    %14 = vector.load %arg4[%c0_7, %c0_8] : memref<1x640xf32, #tpu.memory_space<vmem>>, vector<1x640xf32>
    %15 = vector.broadcast %14 : vector<1x640xf32> to vector<256x640xf32>
    %16 = arith.addf %13, %15 : vector<256x640xf32>
    %17 = vector.extract_strided_slice %16 {offsets = [0, 0], sizes = [128, 640], strides = [1, 1]} : vector<256x640xf32> to vector<128x640xf32>
    %18 = vector.extract_strided_slice %16 {offsets = [128, 0], sizes = [128, 640], strides = [1, 1]} : vector<256x640xf32> to vector<128x640xf32>
    %19 = vector.extract_strided_slice %17 {offsets = [0, 0], sizes = [128, 512], strides = [1, 1]} : vector<128x640xf32> to vector<128x512xf32>
    %20 = vector.extract_strided_slice %19 {offsets = [0, 0], sizes = [128, 128], strides = [1, 1]} : vector<128x512xf32> to vector<128x128xf32>
    %cst_9 = arith.constant 5.000000e-01 : f32
    %21 = vector.broadcast %cst_9 : f32 to vector<128x128xf32>
    %22 = arith.mulf %21, %20 : vector<128x128xf32>
    %23 = math.tanh %22 : vector<128x128xf32>
    %cst_10 = arith.constant 5.000000e-01 : f32
    %24 = vector.broadcast %cst_10 : f32 to vector<128x128xf32>
    %25 = arith.mulf %24, %23 : vector<128x128xf32>
    %cst_11 = arith.constant 5.000000e-01 : f32
    %26 = vector.broadcast %cst_11 : f32 to vector<128x128xf32>
    %27 = arith.addf %25, %26 : vector<128x128xf32>
    %28 = vector.extract_strided_slice %19 {offsets = [0, 256], sizes = [128, 128], strides = [1, 1]} : vector<128x512xf32> to vector<128x128xf32>
    %29 = math.tanh %28 : vector<128x128xf32>
    %30 = vector.extract_strided_slice %19 {offsets = [0, 384], sizes = [128, 128], strides = [1, 1]} : vector<128x512xf32> to vector<128x128xf32>
    %cst_12 = arith.constant 5.000000e-01 : f32
    %31 = vector.broadcast %cst_12 : f32 to vector<128x128xf32>
    %32 = arith.mulf %31, %30 : vector<128x128xf32>
    %33 = math.tanh %32 : vector<128x128xf32>
    %cst_13 = arith.constant 5.000000e-01 : f32
    %34 = vector.broadcast %cst_13 : f32 to vector<128x128xf32>
    %35 = arith.mulf %34, %33 : vector<128x128xf32>
    %cst_14 = arith.constant 5.000000e-01 : f32
    %36 = vector.broadcast %cst_14 : f32 to vector<128x128xf32>
    %37 = arith.addf %35, %36 : vector<128x128xf32>
    %38 = arith.mulf %27, %29 : vector<128x128xf32>
    %39 = math.tanh %38 : vector<128x128xf32>
    %40 = arith.mulf %37, %39 : vector<128x128xf32>
    %41 = vector.extract_strided_slice %18 {offsets = [0, 0], sizes = [128, 512], strides = [1, 1]} : vector<128x640xf32> to vector<128x512xf32>
    %42 = arith.truncf %40 : vector<128x128xf32> to vector<128x128xbf16>
    %c0_15 = arith.constant 0 : index
    %c0_16 = arith.constant 0 : index
    %43 = vector.load %arg5[%c0_15, %c0_16] : memref<128x512xbf16, #tpu.memory_space<vmem>>, vector<128x512xbf16>
    %cst_17 = arith.constant dense<0.000000e+00> : vector<128x512xf32>
    %44 = tpu.matmul %42, %43, %cst_17 {dimension_numbers = #tpu.dot_dimension_numbers<[1], [0], [0], [1], [0, 0, 1, 1], [], []>} : vector<128x128xbf16>, vector<128x512xbf16>, vector<128x512xf32> -> vector<128x512xf32>
    %45 = arith.addf %41, %44 : vector<128x512xf32>
    %46 = vector.extract_strided_slice %45 {offsets = [0, 0], sizes = [128, 128], strides = [1, 1]} : vector<128x512xf32> to vector<128x128xf32>
    %cst_18 = arith.constant 5.000000e-01 : f32
    %47 = vector.broadcast %cst_18 : f32 to vector<128x128xf32>
    %48 = arith.mulf %47, %46 : vector<128x128xf32>
    %49 = math.tanh %48 : vector<128x128xf32>
    %cst_19 = arith.constant 5.000000e-01 : f32
    %50 = vector.broadcast %cst_19 : f32 to vector<128x128xf32>
    %51 = arith.mulf %50, %49 : vector<128x128xf32>
    %cst_20 = arith.constant 5.000000e-01 : f32
    %52 = vector.broadcast %cst_20 : f32 to vector<128x128xf32>
    %53 = arith.addf %51, %52 : vector<128x128xf32>
    %54 = vector.extract_strided_slice %45 {offsets = [0, 128], sizes = [128, 128], strides = [1, 1]} : vector<128x512xf32> to vector<128x128xf32>
    %cst_21 = arith.constant 5.000000e-01 : f32
    %55 = vector.broadcast %cst_21 : f32 to vector<128x128xf32>
    %56 = arith.mulf %55, %54 : vector<128x128xf32>
    %57 = math.tanh %56 : vector<128x128xf32>
    %cst_22 = arith.constant 5.000000e-01 : f32
    %58 = vector.broadcast %cst_22 : f32 to vector<128x128xf32>
    %59 = arith.mulf %58, %57 : vector<128x128xf32>
    %cst_23 = arith.constant 5.000000e-01 : f32
    %60 = vector.broadcast %cst_23 : f32 to vector<128x128xf32>
    %61 = arith.addf %59, %60 : vector<128x128xf32>
    %62 = vector.extract_strided_slice %45 {offsets = [0, 256], sizes = [128, 128], strides = [1, 1]} : vector<128x512xf32> to vector<128x128xf32>
    %63 = math.tanh %62 : vector<128x128xf32>
    %64 = vector.extract_strided_slice %45 {offsets = [0, 384], sizes = [128, 128], strides = [1, 1]} : vector<128x512xf32> to vector<128x128xf32>
    %cst_24 = arith.constant 5.000000e-01 : f32
    %65 = vector.broadcast %cst_24 : f32 to vector<128x128xf32>
    %66 = arith.mulf %65, %64 : vector<128x128xf32>
    %67 = math.tanh %66 : vector<128x128xf32>
    %cst_25 = arith.constant 5.000000e-01 : f32
    %68 = vector.broadcast %cst_25 : f32 to vector<128x128xf32>
    %69 = arith.mulf %68, %67 : vector<128x128xf32>
    %cst_26 = arith.constant 5.000000e-01 : f32
    %70 = vector.broadcast %cst_26 : f32 to vector<128x128xf32>
    %71 = arith.addf %69, %70 : vector<128x128xf32>
    %72 = arith.mulf %61, %38 : vector<128x128xf32>
    %73 = arith.mulf %53, %63 : vector<128x128xf32>
    %74 = arith.addf %72, %73 : vector<128x128xf32>
    %75 = math.tanh %74 : vector<128x128xf32>
    %76 = arith.mulf %71, %75 : vector<128x128xf32>
    %77 = arith.truncf %76 : vector<128x128xf32> to vector<128x128xbf16>
    %c0_27 = arith.constant 0 : index
    %c0_28 = arith.constant 0 : index
    %78 = vector.load %arg6[%c0_27, %c0_28] : memref<128x128xbf16, #tpu.memory_space<vmem>>, vector<128x128xbf16>
    %cst_29 = arith.constant dense<0.000000e+00> : vector<128x128xf32>
    %79 = tpu.matmul %77, %78, %cst_29 {dimension_numbers = #tpu.dot_dimension_numbers<[1], [0], [0], [1], [0, 0, 1, 1], [], []>} : vector<128x128xbf16>, vector<128x128xbf16>, vector<128x128xf32> -> vector<128x128xf32>
    %c0_30 = arith.constant 0 : index
    %c0_31 = arith.constant 0 : index
    %80 = vector.load %arg7[%c0_30, %c0_31] : memref<1x128xf32, #tpu.memory_space<vmem>>, vector<1x128xf32>
    %81 = vector.broadcast %80 : vector<1x128xf32> to vector<128x128xf32>
    %82 = arith.addf %79, %81 : vector<128x128xf32>
    %83 = vector.extract_strided_slice %17 {offsets = [0, 512], sizes = [128, 128], strides = [1, 1]} : vector<128x640xf32> to vector<128x128xf32>
    %84 = arith.addf %83, %82 : vector<128x128xf32>
    %85 = math.tanh %84 : vector<128x128xf32>
    %86 = vector.extract_strided_slice %18 {offsets = [0, 512], sizes = [128, 128], strides = [1, 1]} : vector<128x640xf32> to vector<128x128xf32>
    %87 = arith.addf %86, %82 : vector<128x128xf32>
    %88 = math.tanh %87 : vector<128x128xf32>
    %c0_32 = arith.constant 0 : index
    %c0_33 = arith.constant 0 : index
    %89 = vector.load %arg8[%c0_32, %c0_33] : memref<1x128xf32, #tpu.memory_space<vmem>>, vector<1x128xf32>
    %90 = vector.broadcast %89 : vector<1x128xf32> to vector<128x128xf32>
    %91 = arith.mulf %85, %90 : vector<128x128xf32>
    %cst_34 = arith.constant dense<0.000000e+00> : vector<128xf32>
    %92 = vector.multi_reduction <add>, %91, %cst_34 [1] : vector<128x128xf32> to vector<128xf32>
    %93 = vector.shape_cast %92 : vector<128xf32> to vector<128x1xf32>
    %94 = vector.broadcast %89 : vector<1x128xf32> to vector<128x128xf32>
    %95 = arith.mulf %88, %94 : vector<128x128xf32>
    %cst_35 = arith.constant dense<0.000000e+00> : vector<128xf32>
    %96 = vector.multi_reduction <add>, %95, %cst_35 [1] : vector<128x128xf32> to vector<128xf32>
    %97 = vector.shape_cast %96 : vector<128xf32> to vector<128x1xf32>
    %98 = arith.addf %93, %97 : vector<128x1xf32>
    %99 = tpu.reciprocal %98 {approx = true} : vector<128x1xf32> -> vector<128x1xf32>
    %100 = arith.mulf %93, %99 : vector<128x1xf32>
    %101 = arith.mulf %97, %99 : vector<128x1xf32>
    %102 = vector.broadcast %100 : vector<128x1xf32> to vector<128x128xf32>
    %103 = arith.mulf %102, %7 : vector<128x128xf32>
    %104 = vector.broadcast %101 : vector<128x1xf32> to vector<128x128xf32>
    %105 = arith.mulf %104, %9 : vector<128x128xf32>
    %106 = tpu.concatenate %103, %105 in 0 : vector<128x128xf32>, vector<128x128xf32> -> vector<256x128xf32>
    %107 = arith.truncf %106 : vector<256x128xf32> to vector<256x128xbf16>
    %c0_36 = arith.constant 0 : index
    %c0_37 = arith.constant 0 : index
    %108 = vector.load %arg9[%c0_36, %c0_37] : memref<128x128xbf16, #tpu.memory_space<vmem>>, vector<128x128xbf16>
    %cst_38 = arith.constant dense<0.000000e+00> : vector<256x128xf32>
    %109 = tpu.matmul %107, %108, %cst_38 {dimension_numbers = #tpu.dot_dimension_numbers<[1], [0], [0], [1], [0, 0, 1, 1], [], []>} : vector<256x128xbf16>, vector<128x128xbf16>, vector<256x128xf32> -> vector<256x128xf32>
    %c0_39 = arith.constant 0 : index
    %c0_40 = arith.constant 0 : index
    %110 = vector.load %arg10[%c0_39, %c0_40] : memref<1x128xf32, #tpu.memory_space<vmem>>, vector<1x128xf32>
    %111 = vector.broadcast %110 : vector<1x128xf32> to vector<256x128xf32>
    %112 = arith.addf %109, %111 : vector<256x128xf32>
    %113 = math.tanh %112 : vector<256x128xf32>
    %114 = vector.extract_strided_slice %113 {offsets = [0, 0], sizes = [128, 128], strides = [1, 1]} : vector<256x128xf32> to vector<128x128xf32>
    %115 = vector.extract_strided_slice %113 {offsets = [128, 0], sizes = [128, 128], strides = [1, 1]} : vector<256x128xf32> to vector<128x128xf32>
    %116 = tpu.concatenate %114, %115 in 1 : vector<128x128xf32>, vector<128x128xf32> -> vector<128x256xf32>
    %117 = arith.truncf %116 : vector<128x256xf32> to vector<128x256xbf16>
    %c0_41 = arith.constant 0 : index
    %c0_42 = arith.constant 0 : index
    %118 = vector.load %arg11[%c0_41, %c0_42] : memref<256x512xbf16, #tpu.memory_space<vmem>>, vector<256x512xbf16>
    %cst_43 = arith.constant dense<0.000000e+00> : vector<128x512xf32>
    %119 = tpu.matmul %117, %118, %cst_43 {dimension_numbers = #tpu.dot_dimension_numbers<[1], [0], [0], [1], [0, 0, 1, 1], [], []>} : vector<128x256xbf16>, vector<256x512xbf16>, vector<128x512xf32> -> vector<128x512xf32>
    %c0_44 = arith.constant 0 : index
    %c0_45 = arith.constant 0 : index
    %120 = vector.load %arg12[%c0_44, %c0_45] : memref<1x512xf32, #tpu.memory_space<vmem>>, vector<1x512xf32>
    %121 = vector.broadcast %120 : vector<1x512xf32> to vector<128x512xf32>
    %122 = arith.addf %119, %121 : vector<128x512xf32>
    %123 = vector.extract_strided_slice %122 {offsets = [0, 0], sizes = [128, 128], strides = [1, 1]} : vector<128x512xf32> to vector<128x128xf32>
    %cst_46 = arith.constant 5.000000e-01 : f32
    %124 = vector.broadcast %cst_46 : f32 to vector<128x128xf32>
    %125 = arith.mulf %124, %123 : vector<128x128xf32>
    %126 = math.tanh %125 : vector<128x128xf32>
    %cst_47 = arith.constant 5.000000e-01 : f32
    %127 = vector.broadcast %cst_47 : f32 to vector<128x128xf32>
    %128 = arith.mulf %127, %126 : vector<128x128xf32>
    %cst_48 = arith.constant 5.000000e-01 : f32
    %129 = vector.broadcast %cst_48 : f32 to vector<128x128xf32>
    %130 = arith.addf %128, %129 : vector<128x128xf32>
    %131 = vector.extract_strided_slice %122 {offsets = [0, 128], sizes = [128, 128], strides = [1, 1]} : vector<128x512xf32> to vector<128x128xf32>
    %cst_49 = arith.constant 5.000000e-01 : f32
    %132 = vector.broadcast %cst_49 : f32 to vector<128x128xf32>
    %133 = arith.mulf %132, %131 : vector<128x128xf32>
    %134 = math.tanh %133 : vector<128x128xf32>
    %cst_50 = arith.constant 5.000000e-01 : f32
    %135 = vector.broadcast %cst_50 : f32 to vector<128x128xf32>
    %136 = arith.mulf %135, %134 : vector<128x128xf32>
    %cst_51 = arith.constant 5.000000e-01 : f32
    %137 = vector.broadcast %cst_51 : f32 to vector<128x128xf32>
    %138 = arith.addf %136, %137 : vector<128x128xf32>
    %139 = vector.extract_strided_slice %122 {offsets = [0, 256], sizes = [128, 128], strides = [1, 1]} : vector<128x512xf32> to vector<128x128xf32>
    %cst_52 = arith.constant 5.000000e-01 : f32
    %140 = vector.broadcast %cst_52 : f32 to vector<128x128xf32>
    %141 = arith.mulf %140, %139 : vector<128x128xf32>
    %142 = math.tanh %141 : vector<128x128xf32>
    %cst_53 = arith.constant 5.000000e-01 : f32
    %143 = vector.broadcast %cst_53 : f32 to vector<128x128xf32>
    %144 = arith.mulf %143, %142 : vector<128x128xf32>
    %cst_54 = arith.constant 5.000000e-01 : f32
    %145 = vector.broadcast %cst_54 : f32 to vector<128x128xf32>
    %146 = arith.addf %144, %145 : vector<128x128xf32>
    %147 = vector.extract_strided_slice %122 {offsets = [0, 384], sizes = [128, 128], strides = [1, 1]} : vector<128x512xf32> to vector<128x128xf32>
    %148 = math.tanh %147 : vector<128x128xf32>
    %149 = arith.mulf %130, %148 : vector<128x128xf32>
    %150 = arith.mulf %138, %3 : vector<128x128xf32>
    %151 = arith.addf %149, %150 : vector<128x128xf32>
    %152 = arith.mulf %146, %5 : vector<128x128xf32>
    %153 = arith.addf %151, %152 : vector<128x128xf32>
    %154 = math.tanh %153 : vector<128x128xf32>
    %c0_55 = arith.constant 0 : index
    %c0_56 = arith.constant 0 : index
    %155 = vector.load %arg13[%c0_55, %c0_56] : memref<128x128xf32, #tpu.memory_space<vmem>>, vector<128x128xf32>
    tpu.vector_store %arg13[%c0_55, %c0_56], %153 {strides = array<i32>} : memref<128x128xf32, #tpu.memory_space<vmem>>, vector<128x128xf32>,
    %c0_57 = arith.constant 0 : index
    %c0_58 = arith.constant 0 : index
    %156 = vector.load %arg14[%c0_57, %c0_58] : memref<128x128xf32, #tpu.memory_space<vmem>>, vector<128x128xf32>
    tpu.vector_store %arg14[%c0_57, %c0_58], %154 {strides = array<i32>} : memref<128x128xf32, #tpu.memory_space<vmem>>, vector<128x128xf32>,
    return
  }
  func.func @transform_0(%arg0: i32) -> (i32, i32, i32) {
    %c0_i32 = arith.constant 0 : i32
    %c0_i32_0 = arith.constant 0 : i32
    %c0_i32_1 = arith.constant 0 : i32
    return %c0_i32, %arg0, %c0_i32_0 : i32, i32, i32
  }
  func.func @transform_1(%arg0: i32) -> (i32, i32, i32) {
    %c0_i32 = arith.constant 0 : i32
    %c0_i32_0 = arith.constant 0 : i32
    %c0_i32_1 = arith.constant 0 : i32
    return %c0_i32, %arg0, %c0_i32_0 : i32, i32, i32
  }
  func.func @transform_2(%arg0: i32) -> (i32, i32) {
    %c0_i32 = arith.constant 0 : i32
    %c0_i32_0 = arith.constant 0 : i32
    %c0_i32_1 = arith.constant 0 : i32
    return %c0_i32, %c0_i32_0 : i32, i32
  }
  func.func @transform_3(%arg0: i32) -> (i32, i32) {
    %c0_i32 = arith.constant 0 : i32
    %c0_i32_0 = arith.constant 0 : i32
    %c0_i32_1 = arith.constant 0 : i32
    return %c0_i32, %c0_i32_0 : i32, i32
  }
  func.func @transform_4(%arg0: i32) -> (i32, i32) {
    %c0_i32 = arith.constant 0 : i32
    %c0_i32_0 = arith.constant 0 : i32
    %c0_i32_1 = arith.constant 0 : i32
    return %c0_i32, %c0_i32_0 : i32, i32
  }
  func.func @transform_5(%arg0: i32) -> (i32, i32) {
    %c0_i32 = arith.constant 0 : i32
    %c0_i32_0 = arith.constant 0 : i32
    %c0_i32_1 = arith.constant 0 : i32
    return %c0_i32, %c0_i32_0 : i32, i32
  }
  func.func @transform_6(%arg0: i32) -> (i32, i32) {
    %c0_i32 = arith.constant 0 : i32
    %c0_i32_0 = arith.constant 0 : i32
    %c0_i32_1 = arith.constant 0 : i32
    return %c0_i32, %c0_i32_0 : i32, i32
  }
  func.func @transform_7(%arg0: i32) -> (i32, i32) {
    %c0_i32 = arith.constant 0 : i32
    %c0_i32_0 = arith.constant 0 : i32
    %c0_i32_1 = arith.constant 0 : i32
    return %c0_i32, %c0_i32_0 : i32, i32
  }
  func.func @transform_8(%arg0: i32) -> (i32, i32) {
    %c0_i32 = arith.constant 0 : i32
    %c0_i32_0 = arith.constant 0 : i32
    %c0_i32_1 = arith.constant 0 : i32
    return %c0_i32, %c0_i32_0 : i32, i32
  }
  func.func @transform_9(%arg0: i32) -> (i32, i32) {
    %c0_i32 = arith.constant 0 : i32
    %c0_i32_0 = arith.constant 0 : i32
    %c0_i32_1 = arith.constant 0 : i32
    return %c0_i32, %c0_i32_0 : i32, i32
  }
  func.func @transform_10(%arg0: i32) -> (i32, i32) {
    %c0_i32 = arith.constant 0 : i32
    %c0_i32_0 = arith.constant 0 : i32
    %c0_i32_1 = arith.constant 0 : i32
    return %c0_i32, %c0_i32_0 : i32, i32
  }
  func.func @transform_11(%arg0: i32) -> (i32, i32) {
    %c0_i32 = arith.constant 0 : i32
    %c0_i32_0 = arith.constant 0 : i32
    %c0_i32_1 = arith.constant 0 : i32
    return %c0_i32, %c0_i32_0 : i32, i32
  }
  func.func @transform_12(%arg0: i32) -> (i32, i32) {
    %c0_i32 = arith.constant 0 : i32
    %c0_i32_0 = arith.constant 0 : i32
    return %arg0, %c0_i32 : i32, i32
  }
  func.func @transform_13(%arg0: i32) -> (i32, i32) {
    %c0_i32 = arith.constant 0 : i32
    %c0_i32_0 = arith.constant 0 : i32
    return %arg0, %c0_i32 : i32, i32
  }
}

</mosaic_0001>

<llo_original>
// kernel: _compose_level.1
$region0: #{_compose_level.1}
  #allocation0 [shape = 'u32[]', space=smem, size = 0x4, offset = 0x4, fixed_abs, tag = 'smem constant byte address 0x4 - core index']
  #allocation1 [shape = 'u32[144,128]{1,0:T(1,128)}', space=vmem, size = 0x12000, scoped, tag = 'internal scratch']
  %s0 = inlined_call_operand.vmem [shape: f32[2,256,128], index: 0, kind: input, shape index: {}]
  %s1 = inlined_call_operand.vmem [shape: f32[2,256,128], index: 1, kind: input, shape index: {}]
  %s2 = inlined_call_operand.vmem [shape: bf16[128,640], index: 2, kind: input, shape index: {}]
  %s3 = inlined_call_operand.vmem [shape: f32[1,640], index: 3, kind: input, shape index: {}]
  %s4 = inlined_call_operand.vmem [shape: bf16[128,512], index: 4, kind: input, shape index: {}]
  %s5 = inlined_call_operand.vmem [shape: bf16[128,128], index: 5, kind: input, shape index: {}]
  %s6 = inlined_call_operand.vmem [shape: f32[1,128], index: 6, kind: input, shape index: {}]
  %s7 = inlined_call_operand.vmem [shape: f32[1,128], index: 7, kind: input, shape index: {}]
  %s8 = inlined_call_operand.vmem [shape: bf16[128,128], index: 8, kind: input, shape index: {}]
  %s9 = inlined_call_operand.vmem [shape: f32[1,128], index: 9, kind: input, shape index: {}]
  %s10 = inlined_call_operand.vmem [shape: bf16[256,512], index: 10, kind: input, shape index: {}]
  %s11 = inlined_call_operand.vmem [shape: f32[1,512], index: 11, kind: input, shape index: {}]
  %s12 = inlined_call_operand.hbm [shape: f32[256,128], index: 12, kind: output, shape index: {0}]
  %s13 = inlined_call_operand.hbm [shape: f32[256,128], index: 13, kind: output, shape index: {1}]
  %14 = xla_tuple %s12, %s13
  %s15 = sld [smem:[#allocation0]]
  $region165: #{_compose_level.1} parent=0
    _
  %s17 = ssub.s32 1, %s15
  %s18 = scalar_select 0, %s17, %s15
  $region1: #{_compose_level.1} parent=0
    #allocation2 [shape = 'u8[262144]{0}', space=vmem, size = 0x40000, scoped, tag = 'input window, operand 0']
    #allocation3 [shape = 'u8[262144]{0}', space=vmem, size = 0x40000, scoped, tag = 'input window, operand 1']
    #allocation4 [shape = 'u8[131072]{0}', space=vmem, size = 0x20000, scoped, tag = 'output window, operand 0']
    #allocation5 [shape = 's32[2]{0}', space=sflag, size = 0x8, scoped, tag = 'scoped memory for _compose_level.1']
    #allocation6 [shape = 'u8[131072]{0}', space=vmem, size = 0x20000, scoped, tag = 'output window, operand 1']
    #allocation7 [shape = 's32[2]{0}', space=sflag, size = 0x8, scoped, tag = 'scoped memory for _compose_level.1']
    %19 = vsyncpa [#allocation5], 0
    %s20 = scalar_lea.sflag [#allocation5], 1
    %21 = vsyncpa %s20, 0
    %22 = vsyncpa [#allocation7], 0
    %s23 = scalar_lea.sflag [#allocation7], 1
    %24 = vsyncpa %s23, 0
    loop: start=0, step=1, limit=4
    $region2: #{_compose_level.1} parent=1 // loop_pre_header
      _
    $region3: #{_compose_level.1} parent=1 // loop_header
      %s26 = sphi 0, %s30
      %p27 = scmp.ge.s32.totalorder %s26, 4
      %s36 = sphi 0, %s38
      %s39 = sphi 0, %s36
      %s40 = sphi 0, %s39
      %s56 = sphi 0, %s40
      %s62 = sphi 0, %s64
      %s65 = sphi 0, %s62
      %s66 = sphi 0, %s65
      %s82 = sphi 0, %s66
      %s86 = sphi 0, %s86
      %s88 = sphi 0, %s86
      %s89 = sphi 0, %s88
      %s103 = sphi 0, %s89
      %s107 = sphi 0, %s107
      %s109 = sphi 0, %s107
      %s110 = sphi 0, %s109
      %s124 = sphi 0, %s110
      %s128 = sphi 0, %s128
      %s130 = sphi 0, %s128
      %s131 = sphi 0, %s130
      %s145 = sphi 0, %s131
      %s149 = sphi 0, %s149
      %s151 = sphi 0, %s149
      %s152 = sphi 0, %s151
      %s166 = sphi 0, %s152
      %s170 = sphi 0, %s170
      %s172 = sphi 0, %s170
      %s173 = sphi 0, %s172
      %s187 = sphi 0, %s173
      %s191 = sphi 0, %s191
      %s193 = sphi 0, %s191
      %s194 = sphi 0, %s193
      %s208 = sphi 0, %s194
      %s212 = sphi 0, %s212
      %s214 = sphi 0, %s212
      %s215 = sphi 0, %s214
      %s229 = sphi 0, %s215
      %s233 = sphi 0, %s233
      %s235 = sphi 0, %s233
      %s236 = sphi 0, %s235
      %s250 = sphi 0, %s236
      %s254 = sphi 0, %s254
      %s256 = sphi 0, %s254
      %s257 = sphi 0, %s256
      %s271 = sphi 0, %s257
      %s275 = sphi 0, %s275
      %s277 = sphi 0, %s275
      %s278 = sphi 0, %s277
      %s292 = sphi 0, %s278
      %s298 = sphi 0, %s300
      %s301 = sphi 0, %s298
      %s302 = sphi 0, %s301
      %s318 = sphi 0, %s302
      %s324 = sphi 0, %s326
      %s327 = sphi 0, %s324
      %s328 = sphi 0, %s327
      %s344 = sphi 0, %s328
    $region4: #{_compose_level.1} parent=1 // loop_header_branch
      %29 = sbr.rel (%p27) target = $region8
    $region5: #{_compose_level.1} parent=1 // loop_body
      %s31 = ssub.s32 %s26, 1
      %s32 = ssub.s32 %s26, 2
      %s33 = sadd.s32 %s26, 1
      %s34 = ssub.s32 %s26, %s33
      %p35 = scmp.eq.s32.totalorder %s34, 0
      %s37 = sadd.s32 %s36, 1
      %s38 = scalar_select %p35, %s36, %s37
      %p41 = pneg %p35
      %p42 = scmp.eq.s32.totalorder %s26, 1
      %p43 = por %p41, %p42
      %p44 = scmp.ne.s32.totalorder %s36, %s39
      %p45 = scmp.eq.s32.totalorder %s26, 0
      %p46 = por %p44, %p45
      %p47 = scmp.ne.s32.totalorder %s36, %s39
      %p48 = scmp.eq.s32.totalorder %s31, 1
      %p49 = por %p47, %p48
      %p50 = scmp.ne.s32.totalorder %s39, %s40
      %p51 = scmp.eq.s32.totalorder %s31, 0
      %p52 = por %p50, %p51
      %p53 = scmp.ne.s32.totalorder %s39, %s40
      %p54 = scmp.eq.s32.totalorder %s32, 1
      %p55 = por %p53, %p54
      %p57 = scmp.ne.s32.totalorder %s40, %s56
      %p58 = scmp.eq.s32.totalorder %s32, 0
      %p59 = por %p57, %p58
      %s60 = ssub.s32 %s26, %s33
      %p61 = scmp.eq.s32.totalorder %s60, 0
      %s63 = sadd.s32 %s62, 1
      %s64 = scalar_select %p61, %s62, %s63
      %p67 = pneg %p61
      %p68 = scmp.eq.s32.totalorder %s26, 1
      %p69 = por %p67, %p68
      %p70 = scmp.ne.s32.totalorder %s62, %s65
      %p71 = scmp.eq.s32.totalorder %s26, 0
      %p72 = por %p70, %p71
      %p73 = scmp.ne.s32.totalorder %s62, %s65
      %p74 = scmp.eq.s32.totalorder %s31, 1
      %p75 = por %p73, %p74
      %p76 = scmp.ne.s32.totalorder %s65, %s66
      %p77 = scmp.eq.s32.totalorder %s31, 0
      %p78 = por %p76, %p77
      %p79 = scmp.ne.s32.totalorder %s65, %s66
      %p80 = scmp.eq.s32.totalorder %s32, 1
      %p81 = por %p79, %p80
      %p83 = scmp.ne.s32.totalorder %s66, %s82
      %p84 = scmp.eq.s32.totalorder %s32, 0
      %p85 = por %p83, %p84
      %s87 = sadd.s32 %s86, 1
      %p90 = scmp.eq.s32.totalorder %s26, 1
      %p91 = scmp.ne.s32.totalorder %s86, %s88
      %p92 = scmp.eq.s32.totalorder %s26, 0
      %p93 = por %p91, %p92
      %p94 = scmp.ne.s32.totalorder %s86, %s88
      %p95 = scmp.eq.s32.totalorder %s31, 1
      %p96 = por %p94, %p95
      %p97 = scmp.ne.s32.totalorder %s88, %s89
      %p98 = scmp.eq.s32.totalorder %s31, 0
      %p99 = por %p97, %p98
      %p100 = scmp.ne.s32.totalorder %s88, %s89
      %p101 = scmp.eq.s32.totalorder %s32, 1
      %p102 = por %p100, %p101
      %p104 = scmp.ne.s32.totalorder %s89, %s103
      %p105 = scmp.eq.s32.totalorder %s32, 0
      %p106 = por %p104, %p105
      %s108 = sadd.s32 %s107, 1
      %p111 = scmp.eq.s32.totalorder %s26, 1
      %p112 = scmp.ne.s32.totalorder %s107, %s109
      %p113 = scmp.eq.s32.totalorder %s26, 0
      %p114 = por %p112, %p113
      %p115 = scmp.ne.s32.totalorder %s107, %s109
      %p116 = scmp.eq.s32.totalorder %s31, 1
      %p117 = por %p115, %p116
      %p118 = scmp.ne.s32.totalorder %s109, %s110
      %p119 = scmp.eq.s32.totalorder %s31, 0
      %p120 = por %p118, %p119
      %p121 = scmp.ne.s32.totalorder %s109, %s110
      %p122 = scmp.eq.s32.totalorder %s32, 1
      %p123 = por %p121, %p122
      %p125 = scmp.ne.s32.totalorder %s110, %s124
      %p126 = scmp.eq.s32.totalorder %s32, 0
      %p127 = por %p125, %p126
      %s129 = sadd.s32 %s128, 1
      %p132 = scmp.eq.s32.totalorder %s26, 1
      %p133 = scmp.ne.s32.totalorder %s128, %s130
      %p134 = scmp.eq.s32.totalorder %s26, 0
      %p135 = por %p133, %p134
      %p136 = scmp.ne.s32.totalorder %s128, %s130
      %p137 = scmp.eq.s32.totalorder %s31, 1
      %p138 = por %p136, %p137
      %p139 = scmp.ne.s32.totalorder %s130, %s131
      %p140 = scmp.eq.s32.totalorder %s31, 0
      %p141 = por %p139, %p140
      %p142 = scmp.ne.s32.totalorder %s130, %s131
      %p143 = scmp.eq.s32.totalorder %s32, 1
      %p144 = por %p142, %p143
      %p146 = scmp.ne.s32.totalorder %s131, %s145
      %p147 = scmp.eq.s32.totalorder %s32, 0
      %p148 = por %p146, %p147
      %s150 = sadd.s32 %s149, 1
      %p153 = scmp.eq.s32.totalorder %s26, 1
      %p154 = scmp.ne.s32.totalorder %s149, %s151
      %p155 = scmp.eq.s32.totalorder %s26, 0
      %p156 = por %p154, %p155
      %p157 = scmp.ne.s32.totalorder %s149, %s151
      %p158 = scmp.eq.s32.totalorder %s31, 1
      %p159 = por %p157, %p158
      %p160 = scmp.ne.s32.totalorder %s151, %s152
      %p161 = scmp.eq.s32.totalorder %s31, 0
      %p162 = por %p160, %p161
      %p163 = scmp.ne.s32.totalorder %s151, %s152
      %p164 = scmp.eq.s32.totalorder %s32, 1
      %p165 = por %p163, %p164
      %p167 = scmp.ne.s32.totalorder %s152, %s166
      %p168 = scmp.eq.s32.totalorder %s32, 0
      %p169 = por %p167, %p168
      %s171 = sadd.s32 %s170, 1
      %p174 = scmp.eq.s32.totalorder %s26, 1
      %p175 = scmp.ne.s32.totalorder %s170, %s172
      %p176 = scmp.eq.s32.totalorder %s26, 0
      %p177 = por %p175, %p176
      %p178 = scmp.ne.s32.totalorder %s170, %s172
      %p179 = scmp.eq.s32.totalorder %s31, 1
      %p180 = por %p178, %p179
      %p181 = scmp.ne.s32.totalorder %s172, %s173
      %p182 = scmp.eq.s32.totalorder %s31, 0
      %p183 = por %p181, %p182
      %p184 = scmp.ne.s32.totalorder %s172, %s173
      %p185 = scmp.eq.s32.totalorder %s32, 1
      %p186 = por %p184, %p185
      %p188 = scmp.ne.s32.totalorder %s173, %s187
      %p189 = scmp.eq.s32.totalorder %s32, 0
      %p190 = por %p188, %p189
      %s192 = sadd.s32 %s191, 1
      %p195 = scmp.eq.s32.totalorder %s26, 1
      %p196 = scmp.ne.s32.totalorder %s191, %s193
      %p197 = scmp.eq.s32.totalorder %s26, 0
      %p198 = por %p196, %p197
      %p199 = scmp.ne.s32.totalorder %s191, %s193
      %p200 = scmp.eq.s32.totalorder %s31, 1
      %p201 = por %p199, %p200
      %p202 = scmp.ne.s32.totalorder %s193, %s194
      %p203 = scmp.eq.s32.totalorder %s31, 0
      %p204 = por %p202, %p203
      %p205 = scmp.ne.s32.totalorder %s193, %s194
      %p206 = scmp.eq.s32.totalorder %s32, 1
      %p207 = por %p205, %p206
      %p209 = scmp.ne.s32.totalorder %s194, %s208
      %p210 = scmp.eq.s32.totalorder %s32, 0
      %p211 = por %p209, %p210
      %s213 = sadd.s32 %s212, 1
      %p216 = scmp.eq.s32.totalorder %s26, 1
      %p217 = scmp.ne.s32.totalorder %s212, %s214
      %p218 = scmp.eq.s32.totalorder %s26, 0
      %p219 = por %p217, %p218
      %p220 = scmp.ne.s32.totalorder %s212, %s214
      %p221 = scmp.eq.s32.totalorder %s31, 1
      %p222 = por %p220, %p221
      %p223 = scmp.ne.s32.totalorder %s214, %s215
      %p224 = scmp.eq.s32.totalorder %s31, 0
      %p225 = por %p223, %p224
      %p226 = scmp.ne.s32.totalorder %s214, %s215
      %p227 = scmp.eq.s32.totalorder %s32, 1
      %p228 = por %p226, %p227
      %p230 = scmp.ne.s32.totalorder %s215, %s229
      %p231 = scmp.eq.s32.totalorder %s32, 0
      %p232 = por %p230, %p231
      %s234 = sadd.s32 %s233, 1
      %p237 = scmp.eq.s32.totalorder %s26, 1
      %p238 = scmp.ne.s32.totalorder %s233, %s235
      %p239 = scmp.eq.s32.totalorder %s26, 0
      %p240 = por %p238, %p239
      %p241 = scmp.ne.s32.totalorder %s233, %s235
      %p242 = scmp.eq.s32.totalorder %s31, 1
      %p243 = por %p241, %p242
      %p244 = scmp.ne.s32.totalorder %s235, %s236
      %p245 = scmp.eq.s32.totalorder %s31, 0
      %p246 = por %p244, %p245
      %p247 = scmp.ne.s32.totalorder %s235, %s236
      %p248 = scmp.eq.s32.totalorder %s32, 1
      %p249 = por %p247, %p248
      %p251 = scmp.ne.s32.totalorder %s236, %s250
      %p252 = scmp.eq.s32.totalorder %s32, 0
      %p253 = por %p251, %p252
      %s255 = sadd.s32 %s254, 1
      %p258 = scmp.eq.s32.totalorder %s26, 1
      %p259 = scmp.ne.s32.totalorder %s254, %s256
      %p260 = scmp.eq.s32.totalorder %s26, 0
      %p261 = por %p259, %p260
      %p262 = scmp.ne.s32.totalorder %s254, %s256
      %p263 = scmp.eq.s32.totalorder %s31, 1
      %p264 = por %p262, %p263
      %p265 = scmp.ne.s32.totalorder %s256, %s257
      %p266 = scmp.eq.s32.totalorder %s31, 0
      %p267 = por %p265, %p266
      %p268 = scmp.ne.s32.totalorder %s256, %s257
      %p269 = scmp.eq.s32.totalorder %s32, 1
      %p270 = por %p268, %p269
      %p272 = scmp.ne.s32.totalorder %s257, %s271
      %p273 = scmp.eq.s32.totalorder %s32, 0
      %p274 = por %p272, %p273
      %s276 = sadd.s32 %s275, 1
      %p279 = scmp.eq.s32.totalorder %s26, 1
      %p280 = scmp.ne.s32.totalorder %s275, %s277
      %p281 = scmp.eq.s32.totalorder %s26, 0
      %p282 = por %p280, %p281
      %p283 = scmp.ne.s32.totalorder %s275, %s277
      %p284 = scmp.eq.s32.totalorder %s31, 1
      %p285 = por %p283, %p284
      %p286 = scmp.ne.s32.totalorder %s277, %s278
      %p287 = scmp.eq.s32.totalorder %s31, 0
      %p288 = por %p286, %p287
      %p289 = scmp.ne.s32.totalorder %s277, %s278
      %p290 = scmp.eq.s32.totalorder %s32, 1
      %p291 = por %p289, %p290
      %p293 = scmp.ne.s32.totalorder %s278, %s292
      %p294 = scmp.eq.s32.totalorder %s32, 0
      %p295 = por %p293, %p294
      %s296 = ssub.s32 %s26, %s33
      %p297 = scmp.eq.s32.totalorder %s296, 0
      %s299 = sadd.s32 %s298, 1
      %s300 = scalar_select %p297, %s298, %s299
      %p303 = pneg %p297
      %p304 = scmp.eq.s32.totalorder %s26, 1
      %p305 = por %p303, %p304
      %p306 = scmp.ne.s32.totalorder %s298, %s301
      %p307 = scmp.eq.s32.totalorder %s26, 0
      %p308 = por %p306, %p307
      %p309 = scmp.ne.s32.totalorder %s298, %s301
      %p310 = scmp.eq.s32.totalorder %s31, 1
      %p311 = por %p309, %p310
      %p312 = scmp.ne.s32.totalorder %s301, %s302
      %p313 = scmp.eq.s32.totalorder %s31, 0
      %p314 = por %p312, %p313
      %p315 = scmp.ne.s32.totalorder %s301, %s302
      %p316 = scmp.eq.s32.totalorder %s32, 1
      %p317 = por %p315, %p316
      %p319 = scmp.ne.s32.totalorder %s302, %s318
      %p320 = scmp.eq.s32.totalorder %s32, 0
      %p321 = por %p319, %p320
      %s322 = ssub.s32 %s26, %s33
      %p323 = scmp.eq.s32.totalorder %s322, 0
      %s325 = sadd.s32 %s324, 1
      %s326 = scalar_select %p323, %s324, %s325
      %p329 = pneg %p323
      %p330 = scmp.eq.s32.totalorder %s26, 1
      %p331 = por %p329, %p330
      %p332 = scmp.ne.s32.totalorder %s324, %s327
      %p333 = scmp.eq.s32.totalorder %s26, 0
      %p334 = por %p332, %p333
      %p335 = scmp.ne.s32.totalorder %s324, %s327
      %p336 = scmp.eq.s32.totalorder %s31, 1
      %p337 = por %p335, %p336
      %p338 = scmp.ne.s32.totalorder %s327, %s328
      %p339 = scmp.eq.s32.totalorder %s31, 0
      %p340 = por %p338, %p339
      %p341 = scmp.ne.s32.totalorder %s327, %s328
      %p342 = scmp.eq.s32.totalorder %s32, 1
      %p343 = por %p341, %p342
      %p345 = scmp.ne.s32.totalorder %s328, %s344
      %p346 = scmp.eq.s32.totalorder %s32, 0
      %p347 = por %p345, %p346
      %p348 = scmp.le.s32.totalorder 1, %s26
      %p349 = scmp.lt.s32.totalorder %s26, 3
      %p350 = pnand %p348, %p349
      %p351 = pneg %p350
      // Predicated region
      $region9: #{_compose_level.1} parent=5 // pred_check
        _
      $region10: #{_compose_level.1} parent=5 // pred_check_branch
        %353 = sbr.rel (%p350) target = $region12
      $region11: #{_compose_level.1} parent=5 // pred_region
        %s354 = ssub.s32 %s26, 1
        // Predicated region
        $region13: #{_compose_level.1} parent=11 // pred_check
          %p355 = pneg %p99
        $region14: #{_compose_level.1} parent=11 // pred_check_branch
          %357 = sbr.rel (%p355) target = $region16
        $region15: #{_compose_level.1} parent=11 // pred_region
          _
        $region16: #{_compose_level.1} parent=11 // pred_fallthru
          _
        // Predicated region
        $region17: #{_compose_level.1} parent=11 // pred_check
          %p358 = pneg %p120
        $region18: #{_compose_level.1} parent=11 // pred_check_branch
          %360 = sbr.rel (%p358) target = $region20
        $region19: #{_compose_level.1} parent=11 // pred_region
          _
        $region20: #{_compose_level.1} parent=11 // pred_fallthru
          _
        // Predicated region
        $region21: #{_compose_level.1} parent=11 // pred_check
          %p361 = pneg %p141
        $region22: #{_compose_level.1} parent=11 // pred_check_branch
          %363 = sbr.rel (%p361) target = $region24
        $region23: #{_compose_level.1} parent=11 // pred_region
          _
        $region24: #{_compose_level.1} parent=11 // pred_fallthru
          _
        // Predicated region
        $region25: #{_compose_level.1} parent=11 // pred_check
          %p364 = pneg %p162
        $region26: #{_compose_level.1} parent=11 // pred_check_branch
          %366 = sbr.rel (%p364) target = $region28
        $region27: #{_compose_level.1} parent=11 // pred_region
          _
        $region28: #{_compose_level.1} parent=11 // pred_fallthru
          _
        // Predicated region
        $region29: #{_compose_level.1} parent=11 // pred_check
          %p367 = pneg %p183
        $region30: #{_compose_level.1} parent=11 // pred_check_branch
          %369 = sbr.rel (%p367) target = $region32
        $region31: #{_compose_level.1} parent=11 // pred_region
          _
        $region32: #{_compose_level.1} parent=11 // pred_fallthru
          _
        // Predicated region
        $region33: #{_compose_level.1} parent=11 // pred_check
          %p370 = pneg %p204
        $region34: #{_compose_level.1} parent=11 // pred_check_branch
          %372 = sbr.rel (%p370) target = $region36
        $region35: #{_compose_level.1} parent=11 // pred_region
          _
        $region36: #{_compose_level.1} parent=11 // pred_fallthru
          _
        // Predicated region
        $region37: #{_compose_level.1} parent=11 // pred_check
          %p373 = pneg %p225
        $region38: #{_compose_level.1} parent=11 // pred_check_branch
          %375 = sbr.rel (%p373) target = $region40
        $region39: #{_compose_level.1} parent=11 // pred_region
          _
        $region40: #{_compose_level.1} parent=11 // pred_fallthru
          _
        // Predicated region
        $region41: #{_compose_level.1} parent=11 // pred_check
          %p376 = pneg %p246
        $region42: #{_compose_level.1} parent=11 // pred_check_branch
          %378 = sbr.rel (%p376) target = $region44
        $region43: #{_compose_level.1} parent=11 // pred_region
          _
        $region44: #{_compose_level.1} parent=11 // pred_fallthru
          _
        // Predicated region
        $region45: #{_compose_level.1} parent=11 // pred_check
          %p379 = pneg %p267
        $region46: #{_compose_level.1} parent=11 // pred_check_branch
          %381 = sbr.rel (%p379) target = $region48
        $region47: #{_compose_level.1} parent=11 // pred_region
          _
        $region48: #{_compose_level.1} parent=11 // pred_fallthru
          _
        // Predicated region
        $region49: #{_compose_level.1} parent=11 // pred_check
          %p382 = pneg %p288
        $region50: #{_compose_level.1} parent=11 // pred_check_branch
          %384 = sbr.rel (%p382) target = $region52
        $region51: #{_compose_level.1} parent=11 // pred_region
          _
        $region52: #{_compose_level.1} parent=11 // pred_fallthru
          _
      $region12: #{_compose_level.1} parent=5 // pred_fallthru
        _
      %p385 = scmp.lt.s32.totalorder %s26, 2
      // Predicated region
      $region53: #{_compose_level.1} parent=5 // pred_check
        %p386 = pneg %p385
      $region54: #{_compose_level.1} parent=5 // pred_check_branch
        %388 = sbr.rel (%p386) target = $region56
      $region55: #{_compose_level.1} parent=5 // pred_region
        // Predicated region
        $region57: #{_compose_level.1} parent=55 // pred_check
          %p389 = pneg %p46
        $region58: #{_compose_level.1} parent=55 // pred_check_branch
          %391 = sbr.rel (%p389) target = $region60
        $region59: #{_compose_level.1} parent=55 // pred_region
          %s392 = sand.u32 %s36, 1
          %s393 = sand.u32 %s36, 1
          %s394 = smul.addr %s393, 256
          %s395 = scalar_lea.vmem [#allocation2], %s394
          %s396 = smul.u32 16, %s26
          %s397 = smul.addr %s396, 8
          %s398 = scalar_lea.vmem %s0, %s397
          // Predicated region
          $region61: #{_compose_level.1} parent=59 // pred_check
            _
          $region62: #{_compose_level.1} parent=59 // pred_check_branch
            %400 = sbr.rel (0) target = $region64
          $region63: #{_compose_level.1} parent=59 // pred_region
            // Predicated region
            $region65: #{_compose_level.1} parent=63 // pred_check
              _
            $region66: #{_compose_level.1} parent=63 // pred_check_branch
              %402 = sbr.rel (0) target = $region68
            $region67: #{_compose_level.1} parent=63 // pred_region
              // Predicated region
              $region80: #{_compose_level.1} parent=67 // pred_check
                _
              $region81: #{_compose_level.1} parent=67 // pred_check_branch
                %480 = sbr.rel (0) target = $region83
              $region82: #{_compose_level.1} parent=67 // pred_region
                loop: start=0, step=1, limit=1
                $region84: #{_compose_level.1} parent=82 // loop_pre_header
                  _
                $region85: #{_compose_level.1} parent=82 // loop_header
                  %s482 = sphi 0, %s486
                  %p483 = scmp.ge.s32.totalorder %s482, 1
                  %s487 = sphi %s398, %s398
                  %s488 = sphi %s395, %s395
                $region86: #{_compose_level.1} parent=82 // loop_header_branch
                  %485 = sbr.rel (%p483) target = $region90
                $region87: #{_compose_level.1} parent=82 // loop_body
                  %v489 = vld [vmem:[%s487] sm:$0xff]
                  %490 = vst [vmem:[%s488] sm:$0xff] %v489
                  %v491 = vld [vmem:[%s487 + $0x8] sm:$0xff]
                  %492 = vst [vmem:[%s488 + $0x8] sm:$0xff] %v491
                  %v493 = vld [vmem:[%s487 + $0x10] sm:$0xff]
                  %494 = vst [vmem:[%s488 + $0x10] sm:$0xff] %v493
                  %v495 = vld [vmem:[%s487 + $0x18] sm:$0xff]
                  %496 = vst [vmem:[%s488 + $0x18] sm:$0xff] %v495
                  %v497 = vld [vmem:[%s487 + $0x20] sm:$0xff]
                  %498 = vst [vmem:[%s488 + $0x20] sm:$0xff] %v497
                  %v499 = vld [vmem:[%s487 + $0x28] sm:$0xff]
                  %500 = vst [vmem:[%s488 + $0x28] sm:$0xff] %v499
                  %v501 = vld [vmem:[%s487 + $0x30] sm:$0xff]
                  %502 = vst [vmem:[%s488 + $0x30] sm:$0xff] %v501
                  %v503 = vld [vmem:[%s487 + $0x38] sm:$0xff]
                  %504 = vst [vmem:[%s488 + $0x38] sm:$0xff] %v503
                  %v505 = vld [vmem:[%s487 + $0x40] sm:$0xff]
                  %506 = vst [vmem:[%s488 + $0x40] sm:$0xff] %v505
                  %v507 = vld [vmem:[%s487 + $0x48] sm:$0xff]
                  %508 = vst [vmem:[%s488 + $0x48] sm:$0xff] %v507
                  %v509 = vld [vmem:[%s487 + $0x50] sm:$0xff]
                  %510 = vst [vmem:[%s488 + $0x50] sm:$0xff] %v509
                  %v511 = vld [vmem:[%s487 + $0x58] sm:$0xff]
                  %512 = vst [vmem:[%s488 + $0x58] sm:$0xff] %v511
                  %v513 = vld [vmem:[%s487 + $0x60] sm:$0xff]
                  %514 = vst [vmem:[%s488 + $0x60] sm:$0xff] %v513
                  %v515 = vld [vmem:[%s487 + $0x68] sm:$0xff]
                  %516 = vst [vmem:[%s488 + $0x68] sm:$0xff] %v515
                  %v517 = vld [vmem:[%s487 + $0x70] sm:$0xff]
                  %518 = vst [vmem:[%s488 + $0x70] sm:$0xff] %v517
                  %v519 = vld [vmem:[%s487 + $0x78] sm:$0xff]
                  %520 = vst [vmem:[%s488 + $0x78] sm:$0xff] %v519
                  %v521 = vld [vmem:[%s487 + $0x100] sm:$0xff]
                  %522 = vst [vmem:[%s488 + $0x80] sm:$0xff] %v521
                  %v523 = vld [vmem:[%s487 + $0x108] sm:$0xff]
                  %524 = vst [vmem:[%s488 + $0x88] sm:$0xff] %v523
                  %v525 = vld [vmem:[%s487 + $0x110] sm:$0xff]
                  %526 = vst [vmem:[%s488 + $0x90] sm:$0xff] %v525
                  %v527 = vld [vmem:[%s487 + $0x118] sm:$0xff]
                  %528 = vst [vmem:[%s488 + $0x98] sm:$0xff] %v527
                  %v529 = vld [vmem:[%s487 + $0x120] sm:$0xff]
                  %530 = vst [vmem:[%s488 + $0xa0] sm:$0xff] %v529
                  %v531 = vld [vmem:[%s487 + $0x128] sm:$0xff]
                  %532 = vst [vmem:[%s488 + $0xa8] sm:$0xff] %v531
                  %v533 = vld [vmem:[%s487 + $0x130] sm:$0xff]
                  %534 = vst [vmem:[%s488 + $0xb0] sm:$0xff] %v533
                  %v535 = vld [vmem:[%s487 + $0x138] sm:$0xff]
                  %536 = vst [vmem:[%s488 + $0xb8] sm:$0xff] %v535
                  %v537 = vld [vmem:[%s487 + $0x140] sm:$0xff]
                  %538 = vst [vmem:[%s488 + $0xc0] sm:$0xff] %v537
                  %v539 = vld [vmem:[%s487 + $0x148] sm:$0xff]
                  %540 = vst [vmem:[%s488 + $0xc8] sm:$0xff] %v539
                  %v541 = vld [vmem:[%s487 + $0x150] sm:$0xff]
                  %542 = vst [vmem:[%s488 + $0xd0] sm:$0xff] %v541
                  %v543 = vld [vmem:[%s487 + $0x158] sm:$0xff]
                  %544 = vst [vmem:[%s488 + $0xd8] sm:$0xff] %v543
                  %v545 = vld [vmem:[%s487 + $0x160] sm:$0xff]
                  %546 = vst [vmem:[%s488 + $0xe0] sm:$0xff] %v545
                  %v547 = vld [vmem:[%s487 + $0x168] sm:$0xff]
                  %548 = vst [vmem:[%s488 + $0xe8] sm:$0xff] %v547
                  %v549 = vld [vmem:[%s487 + $0x170] sm:$0xff]
                  %550 = vst [vmem:[%s488 + $0xf0] sm:$0xff] %v549
                  %v551 = vld [vmem:[%s487 + $0x178] sm:$0xff]
                  %552 = vst [vmem:[%s488 + $0xf8] sm:$0xff] %v551
                $region88: #{_compose_level.1} parent=82 // loop_footer
                  %s486 = sadd.s32 1, %s482
                $region89: #{_compose_level.1} parent=82 // loop_footer_branch
                  %481 = sbr.rel target = $region85
                $region90: #{_compose_level.1} parent=82 // loop_exit
                  _
              $region83: #{_compose_level.1} parent=67 // pred_fallthru
                _
              // Predicated region
              $region91: #{_compose_level.1} parent=67 // pred_check
                _
              $region92: #{_compose_level.1} parent=67 // pred_check_branch
                %554 = sbr.rel target = $region94
              $region93: #{_compose_level.1} parent=67 // pred_region
                _
              $region94: #{_compose_level.1} parent=67 // pred_fallthru
                _
            $region68: #{_compose_level.1} parent=63 // pred_fallthru
              _
            // Predicated region
            $region69: #{_compose_level.1} parent=63 // pred_check
              _
            $region70: #{_compose_level.1} parent=63 // pred_check_branch
              %404 = sbr.rel target = $region72
            $region71: #{_compose_level.1} parent=63 // pred_region
              %s406 = ssub.s32 256, 1
              loop: start=0, step=1, limit=1
              $region73: #{_compose_level.1} parent=71 // loop_pre_header
                _
              $region74: #{_compose_level.1} parent=71 // loop_header
                %s408 = sphi 0, %s412
                %p409 = scmp.ge.s32.totalorder %s408, 1
                %s413 = sphi %s398, %s398
                %s414 = sphi %s395, %s395
              $region75: #{_compose_level.1} parent=71 // loop_header_branch
                %411 = sbr.rel (%p409) target = $region79
              $region76: #{_compose_level.1} parent=71 // loop_body
                %v415 = vld [vmem:[%s413] sm:%s406]
                %416 = vst [vmem:[%s414] sm:%s406] %v415
                %v417 = vld [vmem:[%s413 + $0x8] sm:%s406]
                %418 = vst [vmem:[%s414 + $0x8] sm:%s406] %v417
                %v419 = vld [vmem:[%s413 + $0x10] sm:%s406]
                %420 = vst [vmem:[%s414 + $0x10] sm:%s406] %v419
                %v421 = vld [vmem:[%s413 + $0x18] sm:%s406]
                %422 = vst [vmem:[%s414 + $0x18] sm:%s406] %v421
                %v423 = vld [vmem:[%s413 + $0x20] sm:%s406]
                %424 = vst [vmem:[%s414 + $0x20] sm:%s406] %v423
                %v425 = vld [vmem:[%s413 + $0x28] sm:%s406]
                %426 = vst [vmem:[%s414 + $0x28] sm:%s406] %v425
                %v427 = vld [vmem:[%s413 + $0x30] sm:%s406]
                %428 = vst [vmem:[%s414 + $0x30] sm:%s406] %v427
                %v429 = vld [vmem:[%s413 + $0x38] sm:%s406]
                %430 = vst [vmem:[%s414 + $0x38] sm:%s406] %v429
                %v431 = vld [vmem:[%s413 + $0x40] sm:%s406]
                %432 = vst [vmem:[%s414 + $0x40] sm:%s406] %v431
                %v433 = vld [vmem:[%s413 + $0x48] sm:%s406]
                %434 = vst [vmem:[%s414 + $0x48] sm:%s406] %v433
                %v435 = vld [vmem:[%s413 + $0x50] sm:%s406]
                %436 = vst [vmem:[%s414 + $0x50] sm:%s406] %v435
                %v437 = vld [vmem:[%s413 + $0x58] sm:%s406]
                %438 = vst [vmem:[%s414 + $0x58] sm:%s406] %v437
                %v439 = vld [vmem:[%s413 + $0x60] sm:%s406]
                %440 = vst [vmem:[%s414 + $0x60] sm:%s406] %v439
                %v441 = vld [vmem:[%s413 + $0x68] sm:%s406]
                %442 = vst [vmem:[%s414 + $0x68] sm:%s406] %v441
                %v443 = vld [vmem:[%s413 + $0x70] sm:%s406]
                %444 = vst [vmem:[%s414 + $0x70] sm:%s406] %v443
                %v445 = vld [vmem:[%s413 + $0x78] sm:%s406]
                %446 = vst [vmem:[%s414 + $0x78] sm:%s406] %v445
                %v447 = vld [vmem:[%s413 + $0x100] sm:%s406]
                %448 = vst [vmem:[%s414 + $0x80] sm:%s406] %v447
                %v449 = vld [vmem:[%s413 + $0x108] sm:%s406]
                %450 = vst [vmem:[%s414 + $0x88] sm:%s406] %v449
                %v451 = vld [vmem:[%s413 + $0x110] sm:%s406]
                %452 = vst [vmem:[%s414 + $0x90] sm:%s406] %v451
                %v453 = vld [vmem:[%s413 + $0x118] sm:%s406]
                %454 = vst [vmem:[%s414 + $0x98] sm:%s406] %v453
                %v455 = vld [vmem:[%s413 + $0x120] sm:%s406]
                %456 = vst [vmem:[%s414 + $0xa0] sm:%s406] %v455
                %v457 = vld [vmem:[%s413 + $0x128] sm:%s406]
                %458 = vst [vmem:[%s414 + $0xa8] sm:%s406] %v457
                %v459 = vld [vmem:[%s413 + $0x130] sm:%s406]
                %460 = vst [vmem:[%s414 + $0xb0] sm:%s406] %v459
                %v461 = vld [vmem:[%s413 + $0x138] sm:%s406]
                %462 = vst [vmem:[%s414 + $0xb8] sm:%s406] %v461
                %v463 = vld [vmem:[%s413 + $0x140] sm:%s406]
                %464 = vst [vmem:[%s414 + $0xc0] sm:%s406] %v463
                %v465 = vld [vmem:[%s413 + $0x148] sm:%s406]
                %466 = vst [vmem:[%s414 + $0xc8] sm:%s406] %v465
                %v467 = vld [vmem:[%s413 + $0x150] sm:%s406]
                %468 = vst [vmem:[%s414 + $0xd0] sm:%s406] %v467
                %v469 = vld [vmem:[%s413 + $0x158] sm:%s406]
                %470 = vst [vmem:[%s414 + $0xd8] sm:%s406] %v469
                %v471 = vld [vmem:[%s413 + $0x160] sm:%s406]
                %472 = vst [vmem:[%s414 + $0xe0] sm:%s406] %v471
                %v473 = vld [vmem:[%s413 + $0x168] sm:%s406]
                %474 = vst [vmem:[%s414 + $0xe8] sm:%s406] %v473
                %v475 = vld [vmem:[%s413 + $0x170] sm:%s406]
                %476 = vst [vmem:[%s414 + $0xf0] sm:%s406] %v475
                %v477 = vld [vmem:[%s413 + $0x178] sm:%s406]
                %478 = vst [vmem:[%s414 + $0xf8] sm:%s406] %v477
              $region77: #{_compose_level.1} parent=71 // loop_footer
                %s412 = sadd.s32 1, %s408
              $region78: #{_compose_level.1} parent=71 // loop_footer_branch
                %407 = sbr.rel target = $region74
              $region79: #{_compose_level.1} parent=71 // loop_exit
                _
            $region72: #{_compose_level.1} parent=63 // pred_fallthru
              _
          $region64: #{_compose_level.1} parent=59 // pred_fallthru
            _
          %555 = vnop
        $region60: #{_compose_level.1} parent=55 // pred_fallthru
          _
        // Predicated region
        $region95: #{_compose_level.1} parent=55 // pred_check
          %p556 = pneg %p72
        $region96: #{_compose_level.1} parent=55 // pred_check_branch
          %558 = sbr.rel (%p556) target = $region98
        $region97: #{_compose_level.1} parent=55 // pred_region
          %s559 = sand.u32 %s62, 1
          %s560 = sand.u32 %s62, 1
          %s561 = smul.addr %s560, 256
          %s562 = scalar_lea.vmem [#allocation3], %s561
          %s563 = smul.u32 16, %s26
          %s564 = smul.addr %s563, 8
          %s565 = scalar_lea.vmem %s1, %s564
          // Predicated region
          $region99: #{_compose_level.1} parent=97 // pred_check
            _
          $region100: #{_compose_level.1} parent=97 // pred_check_branch
            %567 = sbr.rel (0) target = $region102
          $region101: #{_compose_level.1} parent=97 // pred_region
            // Predicated region
            $region103: #{_compose_level.1} parent=101 // pred_check
              _
            $region104: #{_compose_level.1} parent=101 // pred_check_branch
              %569 = sbr.rel (0) target = $region106
            $region105: #{_compose_level.1} parent=101 // pred_region
              // Predicated region
              $region118: #{_compose_level.1} parent=105 // pred_check
                _
              $region119: #{_compose_level.1} parent=105 // pred_check_branch
                %647 = sbr.rel (0) target = $region121
              $region120: #{_compose_level.1} parent=105 // pred_region
                loop: start=0, step=1, limit=1
                $region122: #{_compose_level.1} parent=120 // loop_pre_header
                  _
                $region123: #{_compose_level.1} parent=120 // loop_header
                  %s649 = sphi 0, %s653
                  %p650 = scmp.ge.s32.totalorder %s649, 1
                  %s654 = sphi %s565, %s565
                  %s655 = sphi %s562, %s562
                $region124: #{_compose_level.1} parent=120 // loop_header_branch
                  %652 = sbr.rel (%p650) target = $region128
                $region125: #{_compose_level.1} parent=120 // loop_body
                  %v656 = vld [vmem:[%s654] sm:$0xff]
                  %657 = vst [vmem:[%s655] sm:$0xff] %v656
                  %v658 = vld [vmem:[%s654 + $0x8] sm:$0xff]
                  %659 = vst [vmem:[%s655 + $0x8] sm:$0xff] %v658
                  %v660 = vld [vmem:[%s654 + $0x10] sm:$0xff]
                  %661 = vst [vmem:[%s655 + $0x10] sm:$0xff] %v660
                  %v662 = vld [vmem:[%s654 + $0x18] sm:$0xff]
                  %663 = vst [vmem:[%s655 + $0x18] sm:$0xff] %v662
                  %v664 = vld [vmem:[%s654 + $0x20] sm:$0xff]
                  %665 = vst [vmem:[%s655 + $0x20] sm:$0xff] %v664
                  %v666 = vld [vmem:[%s654 + $0x28] sm:$0xff]
                  %667 = vst [vmem:[%s655 + $0x28] sm:$0xff] %v666
                  %v668 = vld [vmem:[%s654 + $0x30] sm:$0xff]
                  %669 = vst [vmem:[%s655 + $0x30] sm:$0xff] %v668
                  %v670 = vld [vmem:[%s654 + $0x38] sm:$0xff]
                  %671 = vst [vmem:[%s655 + $0x38] sm:$0xff] %v670
                  %v672 = vld [vmem:[%s654 + $0x40] sm:$0xff]
                  %673 = vst [vmem:[%s655 + $0x40] sm:$0xff] %v672
                  %v674 = vld [vmem:[%s654 + $0x48] sm:$0xff]
                  %675 = vst [vmem:[%s655 + $0x48] sm:$0xff] %v674
                  %v676 = vld [vmem:[%s654 + $0x50] sm:$0xff]
                  %677 = vst [vmem:[%s655 + $0x50] sm:$0xff] %v676
                  %v678 = vld [vmem:[%s654 + $0x58] sm:$0xff]
                  %679 = vst [vmem:[%s655 + $0x58] sm:$0xff] %v678
                  %v680 = vld [vmem:[%s654 + $0x60] sm:$0xff]
                  %681 = vst [vmem:[%s655 + $0x60] sm:$0xff] %v680
                  %v682 = vld [vmem:[%s654 + $0x68] sm:$0xff]
                  %683 = vst [vmem:[%s655 + $0x68] sm:$0xff] %v682
                  %v684 = vld [vmem:[%s654 + $0x70] sm:$0xff]
                  %685 = vst [vmem:[%s655 + $0x70] sm:$0xff] %v684
                  %v686 = vld [vmem:[%s654 + $0x78] sm:$0xff]
                  %687 = vst [vmem:[%s655 + $0x78] sm:$0xff] %v686
                  %v688 = vld [vmem:[%s654 + $0x100] sm:$0xff]
                  %689 = vst [vmem:[%s655 + $0x80] sm:$0xff] %v688
                  %v690 = vld [vmem:[%s654 + $0x108] sm:$0xff]
                  %691 = vst [vmem:[%s655 + $0x88] sm:$0xff] %v690
                  %v692 = vld [vmem:[%s654 + $0x110] sm:$0xff]
                  %693 = vst [vmem:[%s655 + $0x90] sm:$0xff] %v692
                  %v694 = vld [vmem:[%s654 + $0x118] sm:$0xff]
                  %695 = vst [vmem:[%s655 + $0x98] sm:$0xff] %v694
                  %v696 = vld [vmem:[%s654 + $0x120] sm:$0xff]
                  %697 = vst [vmem:[%s655 + $0xa0] sm:$0xff] %v696
                  %v698 = vld [vmem:[%s654 + $0x128] sm:$0xff]
                  %699 = vst [vmem:[%s655 + $0xa8] sm:$0xff] %v698
                  %v700 = vld [vmem:[%s654 + $0x130] sm:$0xff]
                  %701 = vst [vmem:[%s655 + $0xb0] sm:$0xff] %v700
                  %v702 = vld [vmem:[%s654 + $0x138] sm:$0xff]
                  %703 = vst [vmem:[%s655 + $0xb8] sm:$0xff] %v702
                  %v704 = vld [vmem:[%s654 + $0x140] sm:$0xff]
                  %705 = vst [vmem:[%s655 + $0xc0] sm:$0xff] %v704
                  %v706 = vld [vmem:[%s654 + $0x148] sm:$0xff]
                  %707 = vst [vmem:[%s655 + $0xc8] sm:$0xff] %v706
                  %v708 = vld [vmem:[%s654 + $0x150] sm:$0xff]
                  %709 = vst [vmem:[%s655 + $0xd0] sm:$0xff] %v708
                  %v710 = vld [vmem:[%s654 + $0x158] sm:$0xff]
                  %711 = vst [vmem:[%s655 + $0xd8] sm:$0xff] %v710
                  %v712 = vld [vmem:[%s654 + $0x160] sm:$0xff]
                  %713 = vst [vmem:[%s655 + $0xe0] sm:$0xff] %v712
                  %v714 = vld [vmem:[%s654 + $0x168] sm:$0xff]
                  %715 = vst [vmem:[%s655 + $0xe8] sm:$0xff] %v714
                  %v716 = vld [vmem:[%s654 + $0x170] sm:$0xff]
                  %717 = vst [vmem:[%s655 + $0xf0] sm:$0xff] %v716
                  %v718 = vld [vmem:[%s654 + $0x178] sm:$0xff]
                  %719 = vst [vmem:[%s655 + $0xf8] sm:$0xff] %v718
                $region126: #{_compose_level.1} parent=120 // loop_footer
                  %s653 = sadd.s32 1, %s649
                $region127: #{_compose_level.1} parent=120 // loop_footer_branch
                  %648 = sbr.rel target = $region123
                $region128: #{_compose_level.1} parent=120 // loop_exit
                  _
              $region121: #{_compose_level.1} parent=105 // pred_fallthru
                _
              // Predicated region
              $region129: #{_compose_level.1} parent=105 // pred_check
                _
              $region130: #{_compose_level.1} parent=105 // pred_check_branch
                %721 = sbr.rel target = $region132
              $region131: #{_compose_level.1} parent=105 // pred_region
                _
              $region132: #{_compose_level.1} parent=105 // pred_fallthru
                _
            $region106: #{_compose_level.1} parent=101 // pred_fallthru
              _
            // Predicated region
            $region107: #{_compose_level.1} parent=101 // pred_check
              _
            $region108: #{_compose_level.1} parent=101 // pred_check_branch
              %571 = sbr.rel target = $region110
            $region109: #{_compose_level.1} parent=101 // pred_region
              %s573 = ssub.s32 256, 1
              loop: start=0, step=1, limit=1
              $region111: #{_compose_level.1} parent=109 // loop_pre_header
                _
              $region112: #{_compose_level.1} parent=109 // loop_header
                %s575 = sphi 0, %s579
                %p576 = scmp.ge.s32.totalorder %s575, 1
                %s580 = sphi %s565, %s565
                %s581 = sphi %s562, %s562
              $region113: #{_compose_level.1} parent=109 // loop_header_branch
                %578 = sbr.rel (%p576) target = $region117
              $region114: #{_compose_level.1} parent=109 // loop_body
                %v582 = vld [vmem:[%s580] sm:%s573]
                %583 = vst [vmem:[%s581] sm:%s573] %v582
                %v584 = vld [vmem:[%s580 + $0x8] sm:%s573]
                %585 = vst [vmem:[%s581 + $0x8] sm:%s573] %v584
                %v586 = vld [vmem:[%s580 + $0x10] sm:%s573]
                %587 = vst [vmem:[%s581 + $0x10] sm:%s573] %v586
                %v588 = vld [vmem:[%s580 + $0x18] sm:%s573]
                %589 = vst [vmem:[%s581 + $0x18] sm:%s573] %v588
                %v590 = vld [vmem:[%s580 + $0x20] sm:%s573]
                %591 = vst [vmem:[%s581 + $0x20] sm:%s573] %v590
                %v592 = vld [vmem:[%s580 + $0x28] sm:%s573]
                %593 = vst [vmem:[%s581 + $0x28] sm:%s573] %v592
                %v594 = vld [vmem:[%s580 + $0x30] sm:%s573]
                %595 = vst [vmem:[%s581 + $0x30] sm:%s573] %v594
                %v596 = vld [vmem:[%s580 + $0x38] sm:%s573]
                %597 = vst [vmem:[%s581 + $0x38] sm:%s573] %v596
                %v598 = vld [vmem:[%s580 + $0x40] sm:%s573]
                %599 = vst [vmem:[%s581 + $0x40] sm:%s573] %v598
                %v600 = vld [vmem:[%s580 + $0x48] sm:%s573]
                %601 = vst [vmem:[%s581 + $0x48] sm:%s573] %v600
                %v602 = vld [vmem:[%s580 + $0x50] sm:%s573]
                %603 = vst [vmem:[%s581 + $0x50] sm:%s573] %v602
                %v604 = vld [vmem:[%s580 + $0x58] sm:%s573]
                %605 = vst [vmem:[%s581 + $0x58] sm:%s573] %v604
                %v606 = vld [vmem:[%s580 + $0x60] sm:%s573]
                %607 = vst [vmem:[%s581 + $0x60] sm:%s573] %v606
                %v608 = vld [vmem:[%s580 + $0x68] sm:%s573]
                %609 = vst [vmem:[%s581 + $0x68] sm:%s573] %v608
                %v610 = vld [vmem:[%s580 + $0x70] sm:%s573]
                %611 = vst [vmem:[%s581 + $0x70] sm:%s573] %v610
                %v612 = vld [vmem:[%s580 + $0x78] sm:%s573]
                %613 = vst [vmem:[%s581 + $0x78] sm:%s573] %v612
                %v614 = vld [vmem:[%s580 + $0x100] sm:%s573]
                %615 = vst [vmem:[%s581 + $0x80] sm:%s573] %v614
                %v616 = vld [vmem:[%s580 + $0x108] sm:%s573]
                %617 = vst [vmem:[%s581 + $0x88] sm:%s573] %v616
                %v618 = vld [vmem:[%s580 + $0x110] sm:%s573]
                %619 = vst [vmem:[%s581 + $0x90] sm:%s573] %v618
                %v620 = vld [vmem:[%s580 + $0x118] sm:%s573]
                %621 = vst [vmem:[%s581 + $0x98] sm:%s573] %v620
                %v622 = vld [vmem:[%s580 + $0x120] sm:%s573]
                %623 = vst [vmem:[%s581 + $0xa0] sm:%s573] %v622
                %v624 = vld [vmem:[%s580 + $0x128] sm:%s573]
                %625 = vst [vmem:[%s581 + $0xa8] sm:%s573] %v624
                %v626 = vld [vmem:[%s580 + $0x130] sm:%s573]
                %627 = vst [vmem:[%s581 + $0xb0] sm:%s573] %v626
                %v628 = vld [vmem:[%s580 + $0x138] sm:%s573]
                %629 = vst [vmem:[%s581 + $0xb8] sm:%s573] %v628
                %v630 = vld [vmem:[%s580 + $0x140] sm:%s573]
                %631 = vst [vmem:[%s581 + $0xc0] sm:%s573] %v630
                %v632 = vld [vmem:[%s580 + $0x148] sm:%s573]
                %633 = vst [vmem:[%s581 + $0xc8] sm:%s573] %v632
                %v634 = vld [vmem:[%s580 + $0x150] sm:%s573]
                %635 = vst [vmem:[%s581 + $0xd0] sm:%s573] %v634
                %v636 = vld [vmem:[%s580 + $0x158] sm:%s573]
                %637 = vst [vmem:[%s581 + $0xd8] sm:%s573] %v636
                %v638 = vld [vmem:[%s580 + $0x160] sm:%s573]
                %639 = vst [vmem:[%s581 + $0xe0] sm:%s573] %v638
                %v640 = vld [vmem:[%s580 + $0x168] sm:%s573]
                %641 = vst [vmem:[%s581 + $0xe8] sm:%s573] %v640
                %v642 = vld [vmem:[%s580 + $0x170] sm:%s573]
                %643 = vst [vmem:[%s581 + $0xf0] sm:%s573] %v642
                %v644 = vld [vmem:[%s580 + $0x178] sm:%s573]
                %645 = vst [vmem:[%s581 + $0xf8] sm:%s573] %v644
              $region115: #{_compose_level.1} parent=109 // loop_footer
                %s579 = sadd.s32 1, %s575
              $region116: #{_compose_level.1} parent=109 // loop_footer_branch
                %574 = sbr.rel target = $region112
              $region117: #{_compose_level.1} parent=109 // loop_exit
                _
            $region110: #{_compose_level.1} parent=101 // pred_fallthru
              _
          $region102: #{_compose_level.1} parent=97 // pred_fallthru
            _
          %722 = vnop
        $region98: #{_compose_level.1} parent=55 // pred_fallthru
          _
      $region56: #{_compose_level.1} parent=5 // pred_fallthru
        _
      %p723 = scmp.le.s32.totalorder 1, %s26
      %p724 = scmp.lt.s32.totalorder %s26, 3
      %p725 = pnand %p723, %p724
      %p726 = pneg %p725
      // Predicated region
      $region133: #{_compose_level.1} parent=5 // pred_check
        _
      $region134: #{_compose_level.1} parent=5 // pred_check_branch
        %728 = sbr.rel (%p725) target = $region136
      $region135: #{_compose_level.1} parent=5 // pred_region
        %s729 = ssub.s32 %s26, 1
        %s730 = sand.u32 %s39, 1
        %s731 = sand.u32 %s39, 1
        %s732 = smul.addr %s731, 256
        %s733 = scalar_lea.vmem [#allocation2], %s732
        // Predicated region
        $region137: #{_compose_level.1} parent=135 // pred_check
          %p734 = pneg %p52
        $region138: #{_compose_level.1} parent=135 // pred_check_branch
          %736 = sbr.rel (%p734) target = $region140
        $region139: #{_compose_level.1} parent=135 // pred_region
          _
        $region140: #{_compose_level.1} parent=135 // pred_fallthru
          _
        %s737 = sand.u32 %s65, 1
        %s738 = sand.u32 %s65, 1
        %s739 = smul.addr %s738, 256
        %s740 = scalar_lea.vmem [#allocation3], %s739
        // Predicated region
        $region141: #{_compose_level.1} parent=135 // pred_check
          %p741 = pneg %p78
        $region142: #{_compose_level.1} parent=135 // pred_check_branch
          %743 = sbr.rel (%p741) target = $region144
        $region143: #{_compose_level.1} parent=135 // pred_region
          _
        $region144: #{_compose_level.1} parent=135 // pred_fallthru
          _
        %s744 = sand.u32 %s39, 1
        %s745 = sand.u32 %s39, 1
        %s746 = smul.addr %s745, 256
        %s747 = scalar_lea.vmem [#allocation2], %s746
        %p748 = pneg %p52
        %p749 = pneg %p49
        %s750 = sand.u32 %s65, 1
        %s751 = sand.u32 %s65, 1
        %s752 = smul.addr %s751, 256
        %s753 = scalar_lea.vmem [#allocation3], %s752
        %p754 = pneg %p78
        %p755 = pneg %p75
        %p756 = pneg %p99
        %p757 = pneg %p96
        %p758 = pneg %p120
        %p759 = pneg %p117
        %p760 = pneg %p141
        %p761 = pneg %p138
        %p762 = pneg %p162
        %p763 = pneg %p159
        %p764 = pneg %p183
        %p765 = pneg %p180
        %p766 = pneg %p204
        %p767 = pneg %p201
        %p768 = pneg %p225
        %p769 = pneg %p222
        %p770 = pneg %p246
        %p771 = pneg %p243
        %p772 = pneg %p267
        %p773 = pneg %p264
        %p774 = pneg %p288
        %p775 = pneg %p285
        %p776 = pneg %p314
        %p777 = pneg %p311
        %s778 = sand.u32 %s301, 1
        %s779 = scalar_lea.sflag [#allocation5], %s778
        %s780 = sand.u32 %s301, 1
        %s781 = smul.addr %s780, 128
        %s782 = scalar_lea.vmem [#allocation4], %s781
        %p783 = pneg %p340
        %p784 = pneg %p337
        %s785 = sand.u32 %s327, 1
        %s786 = scalar_lea.sflag [#allocation7], %s785
        %s787 = sand.u32 %s327, 1
        %s788 = smul.addr %s787, 128
        %s789 = scalar_lea.vmem [#allocation6], %s788
        %s790 = smul.u32 16, %s31
        %s791 = smul.u32 16, %s31
        %s792 = smul.u32 16, %s31
        %s793 = smul.u32 16, %s31
        %v795 = vld [vmem:[%s733] sm:$0xff]
        %v796 = vld [vmem:[%s733 + $0x8] sm:$0xff]
        %v797 = vld [vmem:[%s733 + $0x10] sm:$0xff]
        %v798 = vld [vmem:[%s733 + $0x18] sm:$0xff]
        %v799 = vld [vmem:[%s733 + $0x20] sm:$0xff]
        %v800 = vld [vmem:[%s733 + $0x28] sm:$0xff]
        %v801 = vld [vmem:[%s733 + $0x30] sm:$0xff]
        %v802 = vld [vmem:[%s733 + $0x38] sm:$0xff]
        %v803 = vld [vmem:[%s733 + $0x40] sm:$0xff]
        %v804 = vld [vmem:[%s733 + $0x48] sm:$0xff]
        %v805 = vld [vmem:[%s733 + $0x50] sm:$0xff]
        %v806 = vld [vmem:[%s733 + $0x58] sm:$0xff]
        %v807 = vld [vmem:[%s733 + $0x60] sm:$0xff]
        %v808 = vld [vmem:[%s733 + $0x68] sm:$0xff]
        %v809 = vld [vmem:[%s733 + $0x70] sm:$0xff]
        %v810 = vld [vmem:[%s733 + $0x78] sm:$0xff]
        %v811 = vld [vmem:[%s733 + $0x80] sm:$0xff]
        %v812 = vld [vmem:[%s733 + $0x88] sm:$0xff]
        %v813 = vld [vmem:[%s733 + $0x90] sm:$0xff]
        %v814 = vld [vmem:[%s733 + $0x98] sm:$0xff]
        %v815 = vld [vmem:[%s733 + $0xa0] sm:$0xff]
        %v816 = vld [vmem:[%s733 + $0xa8] sm:$0xff]
        %v817 = vld [vmem:[%s733 + $0xb0] sm:$0xff]
        %v818 = vld [vmem:[%s733 + $0xb8] sm:$0xff]
        %v819 = vld [vmem:[%s733 + $0xc0] sm:$0xff]
        %v820 = vld [vmem:[%s733 + $0xc8] sm:$0xff]
        %v821 = vld [vmem:[%s733 + $0xd0] sm:$0xff]
        %v822 = vld [vmem:[%s733 + $0xd8] sm:$0xff]
        %v823 = vld [vmem:[%s733 + $0xe0] sm:$0xff]
        %v824 = vld [vmem:[%s733 + $0xe8] sm:$0xff]
        %v825 = vld [vmem:[%s733 + $0xf0] sm:$0xff]
        %v826 = vld [vmem:[%s733 + $0xf8] sm:$0xff]
        %v827 = vld [vmem:[%s740] sm:$0xff]
        %v828 = vld [vmem:[%s740 + $0x8] sm:$0xff]
        %v829 = vld [vmem:[%s740 + $0x10] sm:$0xff]
        %v830 = vld [vmem:[%s740 + $0x18] sm:$0xff]
        %v831 = vld [vmem:[%s740 + $0x20] sm:$0xff]
        %v832 = vld [vmem:[%s740 + $0x28] sm:$0xff]
        %v833 = vld [vmem:[%s740 + $0x30] sm:$0xff]
        %v834 = vld [vmem:[%s740 + $0x38] sm:$0xff]
        %v835 = vld [vmem:[%s740 + $0x40] sm:$0xff]
        %v836 = vld [vmem:[%s740 + $0x48] sm:$0xff]
        %v837 = vld [vmem:[%s740 + $0x50] sm:$0xff]
        %v838 = vld [vmem:[%s740 + $0x58] sm:$0xff]
        %v839 = vld [vmem:[%s740 + $0x60] sm:$0xff]
        %v840 = vld [vmem:[%s740 + $0x68] sm:$0xff]
        %v841 = vld [vmem:[%s740 + $0x70] sm:$0xff]
        %v842 = vld [vmem:[%s740 + $0x78] sm:$0xff]
        %v843 = vld [vmem:[%s740 + $0x80] sm:$0xff]
        %v844 = vld [vmem:[%s740 + $0x88] sm:$0xff]
        %v845 = vld [vmem:[%s740 + $0x90] sm:$0xff]
        %v846 = vld [vmem:[%s740 + $0x98] sm:$0xff]
        %v847 = vld [vmem:[%s740 + $0xa0] sm:$0xff]
        %v848 = vld [vmem:[%s740 + $0xa8] sm:$0xff]
        %v849 = vld [vmem:[%s740 + $0xb0] sm:$0xff]
        %v850 = vld [vmem:[%s740 + $0xb8] sm:$0xff]
        %v851 = vld [vmem:[%s740 + $0xc0] sm:$0xff]
        %v852 = vld [vmem:[%s740 + $0xc8] sm:$0xff]
        %v853 = vld [vmem:[%s740 + $0xd0] sm:$0xff]
        %v854 = vld [vmem:[%s740 + $0xd8] sm:$0xff]
        %v855 = vld [vmem:[%s740 + $0xe0] sm:$0xff]
        %v856 = vld [vmem:[%s740 + $0xe8] sm:$0xff]
        %v857 = vld [vmem:[%s740 + $0xf0] sm:$0xff]
        %v858 = vld [vmem:[%s740 + $0xf8] sm:$0xff]
        %v859 = vpack.c.bf16 %v828, %v827
        %v860 = vpack.c.bf16 %v830, %v829
        %v861 = vpack.c.bf16 %v832, %v831
        %v862 = vpack.c.bf16 %v834, %v833
        %v863 = vpack.c.bf16 %v836, %v835
        %v864 = vpack.c.bf16 %v838, %v837
        %v865 = vpack.c.bf16 %v840, %v839
        %v866 = vpack.c.bf16 %v842, %v841
        %v867 = vpack.c.bf16 %v844, %v843
        %v868 = vpack.c.bf16 %v846, %v845
        %v869 = vpack.c.bf16 %v848, %v847
        %v870 = vpack.c.bf16 %v850, %v849
        %v871 = vpack.c.bf16 %v852, %v851
        %v872 = vpack.c.bf16 %v854, %v853
        %v873 = vpack.c.bf16 %v856, %v855
        %v874 = vpack.c.bf16 %v858, %v857
        %v875 = vld [vmem:[%s2] sm:$0xff]
        %v876 = vld [vmem:[%s2 + $0x8] sm:$0xff]
        %v877 = vld [vmem:[%s2 + $0x10] sm:$0xf]
        %v878 = vld [vmem:[%s2 + $0x14] sm:$0xff]
        %v879 = vld [vmem:[%s2 + $0x1c] sm:$0xff]
        %v880 = vld [vmem:[%s2 + $0x24] sm:$0xf]
        %v881 = vld [vmem:[%s2 + $0x28] sm:$0xff]
        %v882 = vld [vmem:[%s2 + $0x30] sm:$0xff]
        %v883 = vld [vmem:[%s2 + $0x38] sm:$0xf]
        %v884 = vld [vmem:[%s2 + $0x3c] sm:$0xff]
        %v885 = vld [vmem:[%s2 + $0x44] sm:$0xff]
        %v886 = vld [vmem:[%s2 + $0x4c] sm:$0xf]
        %v887 = vld [vmem:[%s2 + $0x50] sm:$0xff]
        %v888 = vld [vmem:[%s2 + $0x58] sm:$0xff]
        %v889 = vld [vmem:[%s2 + $0x60] sm:$0xf]
        %v890 = vld [vmem:[%s2 + $0x64] sm:$0xff]
        %v891 = vld [vmem:[%s2 + $0x6c] sm:$0xff]
        %v892 = vld [vmem:[%s2 + $0x74] sm:$0xf]
        %v893 = vld [vmem:[%s2 + $0x78] sm:$0xff]
        %v894 = vld [vmem:[%s2 + $0x80] sm:$0xff]
        %v895 = vld [vmem:[%s2 + $0x88] sm:$0xf]
        %v896 = vld [vmem:[%s2 + $0x8c] sm:$0xff]
        %v897 = vld [vmem:[%s2 + $0x94] sm:$0xff]
        %v898 = vld [vmem:[%s2 + $0x9c] sm:$0xf]
        %v899 = vld [vmem:[%s2 + $0xa0] sm:$0xff]
        %v900 = vld [vmem:[%s2 + $0xa8] sm:$0xff]
        %v901 = vld [vmem:[%s2 + $0xb0] sm:$0xf]
        %v902 = vld [vmem:[%s2 + $0xb4] sm:$0xff]
        %v903 = vld [vmem:[%s2 + $0xbc] sm:$0xff]
        %v904 = vld [vmem:[%s2 + $0xc4] sm:$0xf]
        %v905 = vld [vmem:[%s2 + $0xc8] sm:$0xff]
        %v906 = vld [vmem:[%s2 + $0xd0] sm:$0xff]
        %v907 = vld [vmem:[%s2 + $0xd8] sm:$0xf]
        %v908 = vld [vmem:[%s2 + $0xdc] sm:$0xff]
        %v909 = vld [vmem:[%s2 + $0xe4] sm:$0xff]
        %v910 = vld [vmem:[%s2 + $0xec] sm:$0xf]
        %v911 = vld [vmem:[%s2 + $0xf0] sm:$0xff]
        %v912 = vld [vmem:[%s2 + $0xf8] sm:$0xff]
        %v913 = vld [vmem:[%s2 + $0x100] sm:$0xf]
        %v914 = vld [vmem:[%s2 + $0x104] sm:$0xff]
        %v915 = vld [vmem:[%s2 + $0x10c] sm:$0xff]
        %v916 = vld [vmem:[%s2 + $0x114] sm:$0xf]
        %v917 = vld [vmem:[%s2 + $0x118] sm:$0xff]
        %v918 = vld [vmem:[%s2 + $0x120] sm:$0xff]
        %v919 = vld [vmem:[%s2 + $0x128] sm:$0xf]
        %v920 = vld [vmem:[%s2 + $0x12c] sm:$0xff]
        %v921 = vld [vmem:[%s2 + $0x134] sm:$0xff]
        %v922 = vld [vmem:[%s2 + $0x13c] sm:$0xf]
        %v923 = vld [vmem:[%s3] sm:$0x1f]
        %v925 = vlaneseq
        %v926 = vshrl.u32 %v925, 7
        %v927 = vsub.s32 0, %v926
        %v928 = vrot.slane %v923, %v927
        %v929 = vlaneseq
        %v930 = vshrl.u32 %v929, 7
        %v931 = vsub.s32 1, %v930
        %v932 = vrot.slane %v923, %v931
        %v933 = vlaneseq
        %v934 = vshrl.u32 %v933, 7
        %v935 = vsub.s32 2, %v934
        %v936 = vrot.slane %v923, %v935
        %v937 = vlaneseq
        %v938 = vshrl.u32 %v937, 7
        %v939 = vsub.s32 3, %v938
        %v940 = vrot.slane %v923, %v939
        %v941 = vlaneseq
        %v942 = vshrl.u32 %v941, 7
        %v943 = vsub.s32 4, %v942
        %v944 = vrot.slane %v923, %v943
        %v998 = vunpack.c.l.b16 %v875
        %v999 = vunpack.c.h.b16 %v875
        %v1000 = vunpack.c.l.b16 %v876
        %v1001 = vunpack.c.h.b16 %v876
        %v1002 = vunpack.c.l.b16 %v877
        %v1003 = vunpack.c.l.b16 %v878
        %v1004 = vunpack.c.h.b16 %v878
        %v1005 = vunpack.c.l.b16 %v879
        %v1006 = vunpack.c.h.b16 %v879
        %v1007 = vunpack.c.l.b16 %v880
        %v1008 = vunpack.c.l.b16 %v881
        %v1009 = vunpack.c.h.b16 %v881
        %v1010 = vunpack.c.l.b16 %v882
        %v1011 = vunpack.c.h.b16 %v882
        %v1012 = vunpack.c.l.b16 %v883
        %v1013 = vunpack.c.l.b16 %v884
        %v1014 = vunpack.c.h.b16 %v884
        %v1015 = vunpack.c.l.b16 %v885
        %v1016 = vunpack.c.h.b16 %v885
        %v1017 = vunpack.c.l.b16 %v886
        %v1018 = vunpack.c.l.b16 %v887
        %v1019 = vunpack.c.h.b16 %v887
        %v1020 = vunpack.c.l.b16 %v888
        %v1021 = vunpack.c.h.b16 %v888
        %v1022 = vunpack.c.l.b16 %v889
        %v1023 = vunpack.c.l.b16 %v890
        %v1024 = vunpack.c.h.b16 %v890
        %v1025 = vunpack.c.l.b16 %v891
        %v1026 = vunpack.c.h.b16 %v891
        %v1027 = vunpack.c.l.b16 %v892
        %v1028 = vunpack.c.l.b16 %v893
        %v1029 = vunpack.c.h.b16 %v893
        %v1030 = vunpack.c.l.b16 %v894
        %v1031 = vunpack.c.h.b16 %v894
        %v1032 = vunpack.c.l.b16 %v895
        %v1033 = vunpack.c.l.b16 %v896
        %v1034 = vunpack.c.h.b16 %v896
        %v1035 = vunpack.c.l.b16 %v897
        %v1036 = vunpack.c.h.b16 %v897
        %v1037 = vunpack.c.l.b16 %v898
        %v1038 = vunpack.c.l.b16 %v899
        %v1039 = vunpack.c.h.b16 %v899
        %v1040 = vunpack.c.l.b16 %v900
        %v1041 = vunpack.c.h.b16 %v900
        %v1042 = vunpack.c.l.b16 %v901
        %v1043 = vunpack.c.l.b16 %v902
        %v1044 = vunpack.c.h.b16 %v902
        %v1045 = vunpack.c.l.b16 %v903
        %v1046 = vunpack.c.h.b16 %v903
        %v1047 = vunpack.c.l.b16 %v904
        %v1048 = vunpack.c.l.b16 %v905
        %v1049 = vunpack.c.h.b16 %v905
        %v1050 = vunpack.c.l.b16 %v906
        %v1051 = vunpack.c.h.b16 %v906
        %v1052 = vunpack.c.l.b16 %v907
        %v1053 = vunpack.c.l.b16 %v908
        %v1054 = vunpack.c.h.b16 %v908
        %v1055 = vunpack.c.l.b16 %v909
        %v1056 = vunpack.c.h.b16 %v909
        %v1057 = vunpack.c.l.b16 %v910
        %v1058 = vunpack.c.l.b16 %v911
        %v1059 = vunpack.c.h.b16 %v911
        %v1060 = vunpack.c.l.b16 %v912
        %v1061 = vunpack.c.h.b16 %v912
        %v1062 = vunpack.c.l.b16 %v913
        %v1063 = vunpack.c.l.b16 %v914
        %v1064 = vunpack.c.h.b16 %v914
        %v1065 = vunpack.c.l.b16 %v915
        %v1066 = vunpack.c.h.b16 %v915
        %v1067 = vunpack.c.l.b16 %v916
        %v1068 = vunpack.c.l.b16 %v917
        %v1069 = vunpack.c.h.b16 %v917
        %v1070 = vunpack.c.l.b16 %v918
        %v1071 = vunpack.c.h.b16 %v918
        %v1072 = vunpack.c.l.b16 %v919
        %v1073 = vunpack.c.l.b16 %v920
        %v1074 = vunpack.c.h.b16 %v920
        %v1075 = vunpack.c.l.b16 %v921
        %v1076 = vunpack.c.h.b16 %v921
        %v1077 = vunpack.c.l.b16 %v922
        %v1078 = vpack.c.b16 %v1003, %v998
        %v1079 = vpack.c.b16 %v1004, %v999
        %v1080 = vpack.c.b16 %v1005, %v1000
        %v1081 = vpack.c.b16 %v1006, %v1001
        %v1082 = vpack.c.b16 %v1007, %v1002
        %v1083 = vpack.c.b16 %v1013, %v1008
        %v1084 = vpack.c.b16 %v1014, %v1009
        %v1085 = vpack.c.b16 %v1015, %v1010
        %v1086 = vpack.c.b16 %v1016, %v1011
        %v1087 = vpack.c.b16 %v1017, %v1012
        %v1088 = vpack.c.b16 %v1023, %v1018
        %v1089 = vpack.c.b16 %v1024, %v1019
        %v1090 = vpack.c.b16 %v1025, %v1020
        %v1091 = vpack.c.b16 %v1026, %v1021
        %v1092 = vpack.c.b16 %v1027, %v1022
        %v1093 = vpack.c.b16 %v1033, %v1028
        %v1094 = vpack.c.b16 %v1034, %v1029
        %v1095 = vpack.c.b16 %v1035, %v1030
        %v1096 = vpack.c.b16 %v1036, %v1031
        %v1097 = vpack.c.b16 %v1037, %v1032
        %v1098 = vpack.c.b16 %v1043, %v1038
        %v1099 = vpack.c.b16 %v1044, %v1039
        %v1100 = vpack.c.b16 %v1045, %v1040
        %v1101 = vpack.c.b16 %v1046, %v1041
        %v1102 = vpack.c.b16 %v1047, %v1042
        %v1103 = vpack.c.b16 %v1053, %v1048
        %v1104 = vpack.c.b16 %v1054, %v1049
        %v1105 = vpack.c.b16 %v1055, %v1050
        %v1106 = vpack.c.b16 %v1056, %v1051
        %v1107 = vpack.c.b16 %v1057, %v1052
        %v1108 = vpack.c.b16 %v1063, %v1058
        %v1109 = vpack.c.b16 %v1064, %v1059
        %v1110 = vpack.c.b16 %v1065, %v1060
        %v1111 = vpack.c.b16 %v1066, %v1061
        %v1112 = vpack.c.b16 %v1067, %v1062
        %v1113 = vpack.c.b16 %v1073, %v1068
        %v1114 = vpack.c.b16 %v1074, %v1069
        %v1115 = vpack.c.b16 %v1075, %v1070
        %v1116 = vpack.c.b16 %v1076, %v1071
        %v1117 = vpack.c.b16 %v1077, %v1072
        %1158 = vmatprep.subr.bf16.mxu0 %v1114
        %1159 = vmatpush1.bf16.msra.mxu0 %v1113
        %1160 = vmatprep.subr.bf16.mxu0 %v1109
        %1161 = vmatpush1.bf16.msra.mxu0 %v1108
        %1162 = vmatprep.subr.bf16.mxu0 %v1104
        %1163 = vmatpush1.bf16.msra.mxu0 %v1103
        %1164 = vmatprep.subr.bf16.mxu0 %v1099
        %1165 = vmatpush1.bf16.msra.mxu0 %v1098
        %1166 = vmatprep.subr.bf16.mxu0 %v1094
        %1167 = vmatpush1.bf16.msra.mxu0 %v1093
        %1168 = vmatprep.subr.bf16.mxu0 %v1089
        %1169 = vmatpush1.bf16.msra.mxu0 %v1088
        %1170 = vmatprep.subr.bf16.mxu0 %v1084
        %1171 = vmatpush1.bf16.msra.mxu0 %v1083
        %1172 = vmatprep.subr.bf16.mxu0 %v1079
        %1173 = vmatpush1.bf16.msra.mxu0 %v1078
        %1174 = vmatprep.subr.bf16.mxu0 0
        %1175 = vmatpush2.bf16.msra.mxu0 0
        %1176 = vmatprep.subr.bf16.mxu0 0
        %1177 = vmatpush2.bf16.msra.mxu0 0
        %1178 = vmatprep.subr.bf16.mxu0 0
        %1179 = vmatpush2.bf16.msra.mxu0 0
        %1180 = vmatprep.subr.bf16.mxu0 0
        %1181 = vmatpush2.bf16.msra.mxu0 0
        %1182 = vmatprep.subr.bf16.mxu0 0
        %1183 = vmatpush2.bf16.msra.mxu0 0
        %1184 = vmatprep.subr.bf16.mxu0 0
        %1185 = vmatpush2.bf16.msra.mxu0 0
        %1186 = vmatprep.subr.bf16.mxu0 0
        %1187 = vmatpush2.bf16.msra.mxu0 0
        %1188 = vmatprep.subr.bf16.mxu0 0
        %1189 = vmatpush2.bf16.msra.mxu0 0
        %1190 = vmatprep.mubr.bf16.mxu0 0
        %1191 = vmatmul.mubr.bf16.gmra.mxu0 %v859
        %v1192 = vpop.f32.mrf.mxu0
        %v1193 = vadd.f32 %v928, %v1192
        %v1194 = vpop.f32.mrf.mxu0
        %v1195 = vpop.f32.mrf.mxu0
        %v1196 = vadd.f32 %v928, %v1195
        %v1197 = vpop.f32.mrf.mxu0
        %1198 = vmatprep.mubr.bf16.mxu0 0
        %1199 = vmatmul.mubr.bf16.gmra.mxu0 %v860
        %v1200 = vpop.f32.mrf.mxu0
        %v1201 = vadd.f32 %v928, %v1200
        %v1202 = vpop.f32.mrf.mxu0
        %v1203 = vpop.f32.mrf.mxu0
        %v1204 = vadd.f32 %v928, %v1203
        %v1205 = vpop.f32.mrf.mxu0
        %1206 = vmatprep.mubr.bf16.mxu0 0
        %1207 = vmatmul.mubr.bf16.gmra.mxu0 %v861
        %v1208 = vpop.f32.mrf.mxu0
        %v1209 = vadd.f32 %v928, %v1208
        %v1210 = vpop.f32.mrf.mxu0
        %v1211 = vpop.f32.mrf.mxu0
        %v1212 = vadd.f32 %v928, %v1211
        %v1213 = vpop.f32.mrf.mxu0
        %1214 = vmatprep.mubr.bf16.mxu0 0
        %1215 = vmatmul.mubr.bf16.gmra.mxu0 %v862
        %v1216 = vpop.f32.mrf.mxu0
        %v1217 = vadd.f32 %v928, %v1216
        %v1218 = vpop.f32.mrf.mxu0
        %v1219 = vpop.f32.mrf.mxu0
        %v1220 = vadd.f32 %v928, %v1219
        %v1221 = vpop.f32.mrf.mxu0
        %1222 = vmatprep.mubr.bf16.mxu0 0
        %1223 = vmatmul.mubr.bf16.gmra.mxu0 %v863
        %v1224 = vpop.f32.mrf.mxu0
        %v1225 = vadd.f32 %v928, %v1224
        %v1226 = vpop.f32.mrf.mxu0
        %v1227 = vpop.f32.mrf.mxu0
        %v1228 = vadd.f32 %v928, %v1227
        %v1229 = vpop.f32.mrf.mxu0
        %1230 = vmatprep.mubr.bf16.mxu0 0
        %1231 = vmatmul.mubr.bf16.gmra.mxu0 %v864
        %v1232 = vpop.f32.mrf.mxu0
        %v1233 = vadd.f32 %v928, %v1232
        %v1234 = vpop.f32.mrf.mxu0
        %v1235 = vpop.f32.mrf.mxu0
        %v1236 = vadd.f32 %v928, %v1235
        %v1237 = vpop.f32.mrf.mxu0
        %1238 = vmatprep.mubr.bf16.mxu0 0
        %1239 = vmatmul.mubr.bf16.gmra.mxu0 %v865
        %v1240 = vpop.f32.mrf.mxu0
        %v1241 = vadd.f32 %v928, %v1240
        %v1242 = vpop.f32.mrf.mxu0
        %v1243 = vpop.f32.mrf.mxu0
        %v1244 = vadd.f32 %v928, %v1243
        %v1245 = vpop.f32.mrf.mxu0
        %1246 = vmatprep.mubr.bf16.mxu0 0
        %1247 = vmatmul.mubr.bf16.gmra.mxu0 %v866
        %v1248 = vpop.f32.mrf.mxu0
        %v1249 = vadd.f32 %v928, %v1248
        %v1250 = vpop.f32.mrf.mxu0
        %v1251 = vpop.f32.mrf.mxu0
        %v1252 = vadd.f32 %v928, %v1251
        %v1253 = vpop.f32.mrf.mxu0
        %1254 = vmatprep.mubr.bf16.mxu0 0
        %1255 = vmatmul.mubr.bf16.gmra.mxu0 %v867
        %v1256 = vpop.f32.mrf.mxu0
        %v1257 = vadd.f32 %v928, %v1256
        %v1258 = vpop.f32.mrf.mxu0
        %v1259 = vadd.f32 %v932, %v1258
        %v1260 = vpop.f32.mrf.mxu0
        %v1261 = vadd.f32 %v928, %v1260
        %v1262 = vpop.f32.mrf.mxu0
        %v1263 = vadd.f32 %v932, %v1262
        %1264 = vmatprep.mubr.bf16.mxu0 0
        %1265 = vmatmul.mubr.bf16.gmra.mxu0 %v868
        %v1266 = vpop.f32.mrf.mxu0
        %v1267 = vadd.f32 %v928, %v1266
        %v1268 = vpop.f32.mrf.mxu0
        %v1269 = vadd.f32 %v932, %v1268
        %v1270 = vpop.f32.mrf.mxu0
        %v1271 = vadd.f32 %v928, %v1270
        %v1272 = vpop.f32.mrf.mxu0
        %v1273 = vadd.f32 %v932, %v1272
        %1274 = vmatprep.mubr.bf16.mxu0 0
        %1275 = vmatmul.mubr.bf16.gmra.mxu0 %v869
        %v1276 = vpop.f32.mrf.mxu0
        %v1277 = vadd.f32 %v928, %v1276
        %v1278 = vpop.f32.mrf.mxu0
        %v1279 = vadd.f32 %v932, %v1278
        %v1280 = vpop.f32.mrf.mxu0
        %v1281 = vadd.f32 %v928, %v1280
        %v1282 = vpop.f32.mrf.mxu0
        %v1283 = vadd.f32 %v932, %v1282
        %1284 = vmatprep.mubr.bf16.mxu0 0
        %1285 = vmatmul.mubr.bf16.gmra.mxu0 %v870
        %v1286 = vpop.f32.mrf.mxu0
        %v1287 = vadd.f32 %v928, %v1286
        %v1288 = vpop.f32.mrf.mxu0
        %v1289 = vadd.f32 %v932, %v1288
        %v1290 = vpop.f32.mrf.mxu0
        %v1291 = vadd.f32 %v928, %v1290
        %v1292 = vpop.f32.mrf.mxu0
        %v1293 = vadd.f32 %v932, %v1292
        %1294 = vmatprep.mubr.bf16.mxu0 0
        %1295 = vmatmul.mubr.bf16.gmra.mxu0 %v871
        %v1296 = vpop.f32.mrf.mxu0
        %v1297 = vadd.f32 %v928, %v1296
        %v1298 = vpop.f32.mrf.mxu0
        %v1299 = vadd.f32 %v932, %v1298
        %v1300 = vpop.f32.mrf.mxu0
        %v1301 = vadd.f32 %v928, %v1300
        %v1302 = vpop.f32.mrf.mxu0
        %v1303 = vadd.f32 %v932, %v1302
        %1304 = vmatprep.mubr.bf16.mxu0 0
        %1305 = vmatmul.mubr.bf16.gmra.mxu0 %v872
        %v1306 = vpop.f32.mrf.mxu0
        %v1307 = vadd.f32 %v928, %v1306
        %v1308 = vpop.f32.mrf.mxu0
        %v1309 = vadd.f32 %v932, %v1308
        %v1310 = vpop.f32.mrf.mxu0
        %v1311 = vadd.f32 %v928, %v1310
        %v1312 = vpop.f32.mrf.mxu0
        %v1313 = vadd.f32 %v932, %v1312
        %1314 = vmatprep.mubr.bf16.mxu0 0
        %1315 = vmatmul.mubr.bf16.gmra.mxu0 %v873
        %v1316 = vpop.f32.mrf.mxu0
        %v1317 = vadd.f32 %v928, %v1316
        %v1318 = vpop.f32.mrf.mxu0
        %v1319 = vadd.f32 %v932, %v1318
        %v1320 = vpop.f32.mrf.mxu0
        %v1321 = vadd.f32 %v928, %v1320
        %v1322 = vpop.f32.mrf.mxu0
        %v1323 = vadd.f32 %v932, %v1322
        %1324 = vmatprep.mubr.bf16.mxu0 0
        %1325 = vmatmul.mubr.bf16.gmra.mxu0 %v874
        %v1326 = vpop.f32.mrf.mxu0
        %v1327 = vadd.f32 %v928, %v1326
        %v1328 = vpop.f32.mrf.mxu0
        %v1329 = vadd.f32 %v932, %v1328
        %v1330 = vpop.f32.mrf.mxu0
        %v1331 = vadd.f32 %v928, %v1330
        %v1332 = vpop.f32.mrf.mxu0
        %v1333 = vadd.f32 %v932, %v1332
        %1334 = vdwg.mxu0
        %1335 = vmatprep.subr.bf16.mxu0 %v1116
        %1336 = vmatpush1.bf16.msra.mxu0 %v1115
        %1337 = vmatprep.subr.bf16.mxu0 %v1111
        %1338 = vmatpush1.bf16.msra.mxu0 %v1110
        %1339 = vmatprep.subr.bf16.mxu0 %v1106
        %1340 = vmatpush1.bf16.msra.mxu0 %v1105
        %1341 = vmatprep.subr.bf16.mxu0 %v1101
        %1342 = vmatpush1.bf16.msra.mxu0 %v1100
        %1343 = vmatprep.subr.bf16.mxu0 %v1096
        %1344 = vmatpush1.bf16.msra.mxu0 %v1095
        %1345 = vmatprep.subr.bf16.mxu0 %v1091
        %1346 = vmatpush1.bf16.msra.mxu0 %v1090
        %1347 = vmatprep.subr.bf16.mxu0 %v1086
        %1348 = vmatpush1.bf16.msra.mxu0 %v1085
        %1349 = vmatprep.subr.bf16.mxu0 %v1081
        %1350 = vmatpush1.bf16.msra.mxu0 %v1080
        %1351 = vmatprep.subr.bf16.mxu0 0
        %1352 = vmatpush2.bf16.msra.mxu0 0
        %1353 = vmatprep.subr.bf16.mxu0 0
        %1354 = vmatpush2.bf16.msra.mxu0 0
        %1355 = vmatprep.subr.bf16.mxu0 0
        %1356 = vmatpush2.bf16.msra.mxu0 0
        %1357 = vmatprep.subr.bf16.mxu0 0
        %1358 = vmatpush2.bf16.msra.mxu0 0
        %1359 = vmatprep.subr.bf16.mxu0 0
        %1360 = vmatpush2.bf16.msra.mxu0 0
        %1361 = vmatprep.subr.bf16.mxu0 0
        %1362 = vmatpush2.bf16.msra.mxu0 0
        %1363 = vmatprep.subr.bf16.mxu0 0
        %1364 = vmatpush2.bf16.msra.mxu0 0
        %1365 = vmatprep.subr.bf16.mxu0 0
        %1366 = vmatpush2.bf16.msra.mxu0 0
        %1367 = vmatprep.mubr.bf16.mxu0 0
        %1368 = vmatmul.mubr.bf16.gmra.mxu0 %v859
        %v1369 = vpop.f32.mrf.mxu0
        %v1370 = vadd.f32 %v936, %v1369
        %v1371 = vpop.f32.mrf.mxu0
        %v1372 = vadd.f32 %v940, %v1371
        %v1373 = vpop.f32.mrf.mxu0
        %v1374 = vadd.f32 %v936, %v1373
        %v1375 = vpop.f32.mrf.mxu0
        %v1376 = vadd.f32 %v940, %v1375
        %1377 = vmatprep.mubr.bf16.mxu0 0
        %1378 = vmatmul.mubr.bf16.gmra.mxu0 %v860
        %v1379 = vpop.f32.mrf.mxu0
        %v1380 = vadd.f32 %v936, %v1379
        %v1381 = vpop.f32.mrf.mxu0
        %v1382 = vadd.f32 %v940, %v1381
        %v1383 = vpop.f32.mrf.mxu0
        %v1384 = vadd.f32 %v936, %v1383
        %v1385 = vpop.f32.mrf.mxu0
        %v1386 = vadd.f32 %v940, %v1385
        %1387 = vmatprep.mubr.bf16.mxu0 0
        %1388 = vmatmul.mubr.bf16.gmra.mxu0 %v861
        %v1389 = vpop.f32.mrf.mxu0
        %v1390 = vadd.f32 %v936, %v1389
        %v1391 = vpop.f32.mrf.mxu0
        %v1392 = vadd.f32 %v940, %v1391
        %v1393 = vpop.f32.mrf.mxu0
        %v1394 = vadd.f32 %v936, %v1393
        %v1395 = vpop.f32.mrf.mxu0
        %v1396 = vadd.f32 %v940, %v1395
        %1397 = vmatprep.mubr.bf16.mxu0 0
        %1398 = vmatmul.mubr.bf16.gmra.mxu0 %v862
        %v1399 = vpop.f32.mrf.mxu0
        %v1400 = vadd.f32 %v936, %v1399
        %v1401 = vpop.f32.mrf.mxu0
        %v1402 = vadd.f32 %v940, %v1401
        %v1403 = vpop.f32.mrf.mxu0
        %v1404 = vadd.f32 %v936, %v1403
        %v1405 = vpop.f32.mrf.mxu0
        %v1406 = vadd.f32 %v940, %v1405
        %1407 = vmatprep.mubr.bf16.mxu0 0
        %1408 = vmatmul.mubr.bf16.gmra.mxu0 %v863
        %v1409 = vpop.f32.mrf.mxu0
        %v1410 = vadd.f32 %v936, %v1409
        %v1411 = vpop.f32.mrf.mxu0
        %v1412 = vadd.f32 %v940, %v1411
        %v1413 = vpop.f32.mrf.mxu0
        %v1414 = vadd.f32 %v936, %v1413
        %v1415 = vpop.f32.mrf.mxu0
        %v1416 = vadd.f32 %v940, %v1415
        %1417 = vmatprep.mubr.bf16.mxu0 0
        %1418 = vmatmul.mubr.bf16.gmra.mxu0 %v864
        %v1419 = vpop.f32.mrf.mxu0
        %v1420 = vadd.f32 %v936, %v1419
        %v1421 = vpop.f32.mrf.mxu0
        %v1422 = vadd.f32 %v940, %v1421
        %v1423 = vpop.f32.mrf.mxu0
        %v1424 = vadd.f32 %v936, %v1423
        %v1425 = vpop.f32.mrf.mxu0
        %v1426 = vadd.f32 %v940, %v1425
        %1427 = vmatprep.mubr.bf16.mxu0 0
        %1428 = vmatmul.mubr.bf16.gmra.mxu0 %v865
        %v1429 = vpop.f32.mrf.mxu0
        %v1430 = vadd.f32 %v936, %v1429
        %v1431 = vpop.f32.mrf.mxu0
        %v1432 = vadd.f32 %v940, %v1431
        %v1433 = vpop.f32.mrf.mxu0
        %v1434 = vadd.f32 %v936, %v1433
        %v1435 = vpop.f32.mrf.mxu0
        %v1436 = vadd.f32 %v940, %v1435
        %1437 = vmatprep.mubr.bf16.mxu0 0
        %1438 = vmatmul.mubr.bf16.gmra.mxu0 %v866
        %v1439 = vpop.f32.mrf.mxu0
        %v1440 = vadd.f32 %v936, %v1439
        %v1441 = vpop.f32.mrf.mxu0
        %v1442 = vadd.f32 %v940, %v1441
        %v1443 = vpop.f32.mrf.mxu0
        %v1444 = vadd.f32 %v936, %v1443
        %v1445 = vpop.f32.mrf.mxu0
        %v1446 = vadd.f32 %v940, %v1445
        %1447 = vmatprep.mubr.bf16.mxu0 0
        %1448 = vmatmul.mubr.bf16.gmra.mxu0 %v867
        %v1449 = vpop.f32.mrf.mxu0
        %v1450 = vadd.f32 %v936, %v1449
        %v1451 = vpop.f32.mrf.mxu0
        %v1452 = vadd.f32 %v940, %v1451
        %v1453 = vpop.f32.mrf.mxu0
        %v1454 = vadd.f32 %v936, %v1453
        %v1455 = vpop.f32.mrf.mxu0
        %v1456 = vadd.f32 %v940, %v1455
        %1457 = vmatprep.mubr.bf16.mxu0 0
        %1458 = vmatmul.mubr.bf16.gmra.mxu0 %v868
        %v1459 = vpop.f32.mrf.mxu0
        %v1460 = vadd.f32 %v936, %v1459
        %v1461 = vpop.f32.mrf.mxu0
        %v1462 = vadd.f32 %v940, %v1461
        %v1463 = vpop.f32.mrf.mxu0
        %v1464 = vadd.f32 %v936, %v1463
        %v1465 = vpop.f32.mrf.mxu0
        %v1466 = vadd.f32 %v940, %v1465
        %1467 = vmatprep.mubr.bf16.mxu0 0
        %1468 = vmatmul.mubr.bf16.gmra.mxu0 %v869
        %v1469 = vpop.f32.mrf.mxu0
        %v1470 = vadd.f32 %v936, %v1469
        %v1471 = vpop.f32.mrf.mxu0
        %v1472 = vadd.f32 %v940, %v1471
        %v1473 = vpop.f32.mrf.mxu0
        %v1474 = vadd.f32 %v936, %v1473
        %v1475 = vpop.f32.mrf.mxu0
        %v1476 = vadd.f32 %v940, %v1475
        %1477 = vmatprep.mubr.bf16.mxu0 0
        %1478 = vmatmul.mubr.bf16.gmra.mxu0 %v870
        %v1479 = vpop.f32.mrf.mxu0
        %v1480 = vadd.f32 %v936, %v1479
        %v1481 = vpop.f32.mrf.mxu0
        %v1482 = vadd.f32 %v940, %v1481
        %v1483 = vpop.f32.mrf.mxu0
        %v1484 = vadd.f32 %v936, %v1483
        %v1485 = vpop.f32.mrf.mxu0
        %v1486 = vadd.f32 %v940, %v1485
        %1487 = vmatprep.mubr.bf16.mxu0 0
        %1488 = vmatmul.mubr.bf16.gmra.mxu0 %v871
        %v1489 = vpop.f32.mrf.mxu0
        %v1490 = vadd.f32 %v936, %v1489
        %v1491 = vpop.f32.mrf.mxu0
        %v1492 = vadd.f32 %v940, %v1491
        %v1493 = vpop.f32.mrf.mxu0
        %v1494 = vadd.f32 %v936, %v1493
        %v1495 = vpop.f32.mrf.mxu0
        %v1496 = vadd.f32 %v940, %v1495
        %1497 = vmatprep.mubr.bf16.mxu0 0
        %1498 = vmatmul.mubr.bf16.gmra.mxu0 %v872
        %v1499 = vpop.f32.mrf.mxu0
        %v1500 = vadd.f32 %v936, %v1499
        %v1501 = vpop.f32.mrf.mxu0
        %v1502 = vadd.f32 %v940, %v1501
        %v1503 = vpop.f32.mrf.mxu0
        %v1504 = vadd.f32 %v936, %v1503
        %v1505 = vpop.f32.mrf.mxu0
        %v1506 = vadd.f32 %v940, %v1505
        %1507 = vmatprep.mubr.bf16.mxu0 0
        %1508 = vmatmul.mubr.bf16.gmra.mxu0 %v873
        %v1509 = vpop.f32.mrf.mxu0
        %v1510 = vadd.f32 %v936, %v1509
        %v1511 = vpop.f32.mrf.mxu0
        %v1512 = vadd.f32 %v940, %v1511
        %v1513 = vpop.f32.mrf.mxu0
        %v1514 = vadd.f32 %v936, %v1513
        %v1515 = vpop.f32.mrf.mxu0
        %v1516 = vadd.f32 %v940, %v1515
        %1517 = vmatprep.mubr.bf16.mxu0 0
        %1518 = vmatmul.mubr.bf16.gmra.mxu0 %v874
        %v1519 = vpop.f32.mrf.mxu0
        %v1520 = vadd.f32 %v936, %v1519
        %v1521 = vpop.f32.mrf.mxu0
        %v1522 = vadd.f32 %v940, %v1521
        %v1523 = vpop.f32.mrf.mxu0
        %v1524 = vadd.f32 %v936, %v1523
        %v1525 = vpop.f32.mrf.mxu0
        %v1526 = vadd.f32 %v940, %v1525
        %1527 = vdwg.mxu0
        %1528 = vmatprep.subr.bf16.mxu0 0
        %1529 = vmatpush1.bf16.msra.mxu0 %v1117
        %1530 = vmatprep.subr.bf16.mxu0 0
        %1531 = vmatpush1.bf16.msra.mxu0 %v1112
        %1532 = vmatprep.subr.bf16.mxu0 0
        %1533 = vmatpush1.bf16.msra.mxu0 %v1107
        %1534 = vmatprep.subr.bf16.mxu0 0
        %1535 = vmatpush1.bf16.msra.mxu0 %v1102
        %1536 = vmatprep.subr.bf16.mxu0 0
        %1537 = vmatpush1.bf16.msra.mxu0 %v1097
        %1538 = vmatprep.subr.bf16.mxu0 0
        %1539 = vmatpush1.bf16.msra.mxu0 %v1092
        %1540 = vmatprep.subr.bf16.mxu0 0
        %1541 = vmatpush1.bf16.msra.mxu0 %v1087
        %1542 = vmatprep.subr.bf16.mxu0 0
        %1543 = vmatpush1.bf16.msra.mxu0 %v1082
        %1544 = vmatprep.subr.bf16.mxu0 0
        %1545 = vmatpush2.bf16.msra.mxu0 0
        %1546 = vmatprep.subr.bf16.mxu0 0
        %1547 = vmatpush2.bf16.msra.mxu0 0
        %1548 = vmatprep.subr.bf16.mxu0 0
        %1549 = vmatpush2.bf16.msra.mxu0 0
        %1550 = vmatprep.subr.bf16.mxu0 0
        %1551 = vmatpush2.bf16.msra.mxu0 0
        %1552 = vmatprep.subr.bf16.mxu0 0
        %1553 = vmatpush2.bf16.msra.mxu0 0
        %1554 = vmatprep.subr.bf16.mxu0 0
        %1555 = vmatpush2.bf16.msra.mxu0 0
        %1556 = vmatprep.subr.bf16.mxu0 0
        %1557 = vmatpush2.bf16.msra.mxu0 0
        %1558 = vmatprep.subr.bf16.mxu0 0
        %1559 = vmatpush2.bf16.msra.mxu0 0
        %1560 = vmatprep.mubr.bf16.mxu0 0
        %1561 = vmatmul.mubr.bf16.gmra.mxu0 %v859
        %v1562 = vpop.f32.mrf.mxu0
        %v1563 = vadd.f32 %v944, %v1562
        %v1564 = vpop.f32.mrf.mxu0
        %v1565 = vpop.f32.mrf.mxu0
        %v1566 = vadd.f32 %v944, %v1565
        %v1567 = vpop.f32.mrf.mxu0
        %1568 = vmatprep.mubr.bf16.mxu0 0
        %1569 = vmatmul.mubr.bf16.gmra.mxu0 %v860
        %v1570 = vpop.f32.mrf.mxu0
        %v1571 = vadd.f32 %v944, %v1570
        %v1572 = vpop.f32.mrf.mxu0
        %v1573 = vpop.f32.mrf.mxu0
        %v1574 = vadd.f32 %v944, %v1573
        %v1575 = vpop.f32.mrf.mxu0
        %1576 = vmatprep.mubr.bf16.mxu0 0
        %1577 = vmatmul.mubr.bf16.gmra.mxu0 %v861
        %v1578 = vpop.f32.mrf.mxu0
        %v1579 = vadd.f32 %v944, %v1578
        %v1580 = vpop.f32.mrf.mxu0
        %v1581 = vpop.f32.mrf.mxu0
        %v1582 = vadd.f32 %v944, %v1581
        %v1583 = vpop.f32.mrf.mxu0
        %1584 = vmatprep.mubr.bf16.mxu0 0
        %1585 = vmatmul.mubr.bf16.gmra.mxu0 %v862
        %v1586 = vpop.f32.mrf.mxu0
        %v1587 = vadd.f32 %v944, %v1586
        %v1588 = vpop.f32.mrf.mxu0
        %v1589 = vpop.f32.mrf.mxu0
        %v1590 = vadd.f32 %v944, %v1589
        %v1591 = vpop.f32.mrf.mxu0
        %1592 = vmatprep.mubr.bf16.mxu0 0
        %1593 = vmatmul.mubr.bf16.gmra.mxu0 %v863
        %v1594 = vpop.f32.mrf.mxu0
        %v1595 = vadd.f32 %v944, %v1594
        %v1596 = vpop.f32.mrf.mxu0
        %v1597 = vpop.f32.mrf.mxu0
        %v1598 = vadd.f32 %v944, %v1597
        %v1599 = vpop.f32.mrf.mxu0
        %1600 = vmatprep.mubr.bf16.mxu0 0
        %1601 = vmatmul.mubr.bf16.gmra.mxu0 %v864
        %v1602 = vpop.f32.mrf.mxu0
        %v1603 = vadd.f32 %v944, %v1602
        %v1604 = vpop.f32.mrf.mxu0
        %v1605 = vpop.f32.mrf.mxu0
        %v1606 = vadd.f32 %v944, %v1605
        %v1607 = vpop.f32.mrf.mxu0
        %1608 = vmatprep.mubr.bf16.mxu0 0
        %1609 = vmatmul.mubr.bf16.gmra.mxu0 %v865
        %v1610 = vpop.f32.mrf.mxu0
        %v1611 = vadd.f32 %v944, %v1610
        %v1612 = vpop.f32.mrf.mxu0
        %v1613 = vpop.f32.mrf.mxu0
        %v1614 = vadd.f32 %v944, %v1613
        %v1615 = vpop.f32.mrf.mxu0
        %1616 = vmatprep.mubr.bf16.mxu0 0
        %1617 = vmatmul.mubr.bf16.gmra.mxu0 %v866
        %v1618 = vpop.f32.mrf.mxu0
        %v1619 = vadd.f32 %v944, %v1618
        %v1620 = vpop.f32.mrf.mxu0
        %v1621 = vpop.f32.mrf.mxu0
        %v1622 = vadd.f32 %v944, %v1621
        %v1623 = vpop.f32.mrf.mxu0
        %1624 = vmatprep.mubr.bf16.mxu0 0
        %1625 = vmatmul.mubr.bf16.gmra.mxu0 %v867
        %v1626 = vpop.f32.mrf.mxu0
        %v1627 = vadd.f32 %v944, %v1626
        %v1628 = vpop.f32.mrf.mxu0
        %v1629 = vpop.f32.mrf.mxu0
        %v1630 = vadd.f32 %v944, %v1629
        %v1631 = vpop.f32.mrf.mxu0
        %1632 = vmatprep.mubr.bf16.mxu0 0
        %1633 = vmatmul.mubr.bf16.gmra.mxu0 %v868
        %v1634 = vpop.f32.mrf.mxu0
        %v1635 = vadd.f32 %v944, %v1634
        %v1636 = vpop.f32.mrf.mxu0
        %v1637 = vpop.f32.mrf.mxu0
        %v1638 = vadd.f32 %v944, %v1637
        %v1639 = vpop.f32.mrf.mxu0
        %1640 = vmatprep.mubr.bf16.mxu0 0
        %1641 = vmatmul.mubr.bf16.gmra.mxu0 %v869
        %v1642 = vpop.f32.mrf.mxu0
        %v1643 = vadd.f32 %v944, %v1642
        %v1644 = vpop.f32.mrf.mxu0
        %v1645 = vpop.f32.mrf.mxu0
        %v1646 = vadd.f32 %v944, %v1645
        %v1647 = vpop.f32.mrf.mxu0
        %1648 = vmatprep.mubr.bf16.mxu0 0
        %1649 = vmatmul.mubr.bf16.gmra.mxu0 %v870
        %v1650 = vpop.f32.mrf.mxu0
        %v1651 = vadd.f32 %v944, %v1650
        %v1652 = vpop.f32.mrf.mxu0
        %v1653 = vpop.f32.mrf.mxu0
        %v1654 = vadd.f32 %v944, %v1653
        %v1655 = vpop.f32.mrf.mxu0
        %1656 = vmatprep.mubr.bf16.mxu0 0
        %1657 = vmatmul.mubr.bf16.gmra.mxu0 %v871
        %v1658 = vpop.f32.mrf.mxu0
        %v1659 = vadd.f32 %v944, %v1658
        %v1660 = vpop.f32.mrf.mxu0
        %v1661 = vpop.f32.mrf.mxu0
        %v1662 = vadd.f32 %v944, %v1661
        %v1663 = vpop.f32.mrf.mxu0
        %1664 = vmatprep.mubr.bf16.mxu0 0
        %1665 = vmatmul.mubr.bf16.gmra.mxu0 %v872
        %v1666 = vpop.f32.mrf.mxu0
        %v1667 = vadd.f32 %v944, %v1666
        %v1668 = vpop.f32.mrf.mxu0
        %v1669 = vpop.f32.mrf.mxu0
        %v1670 = vadd.f32 %v944, %v1669
        %v1671 = vpop.f32.mrf.mxu0
        %1672 = vmatprep.mubr.bf16.mxu0 0
        %1673 = vmatmul.mubr.bf16.gmra.mxu0 %v873
        %v1674 = vpop.f32.mrf.mxu0
        %v1675 = vadd.f32 %v944, %v1674
        %v1676 = vpop.f32.mrf.mxu0
        %v1677 = vpop.f32.mrf.mxu0
        %v1678 = vadd.f32 %v944, %v1677
        %v1679 = vpop.f32.mrf.mxu0
        %1680 = vmatprep.mubr.bf16.mxu0 0
        %1681 = vmatmul.mubr.bf16.gmra.mxu0 %v874
        %v1682 = vpop.f32.mrf.mxu0
        %v1683 = vadd.f32 %v944, %v1682
        %v1684 = vpop.f32.mrf.mxu0
        %v1685 = vpop.f32.mrf.mxu0
        %v1686 = vadd.f32 %v944, %v1685
        %v1687 = vpop.f32.mrf.mxu0
        %1688 = vdwg.mxu0
        %v1689 = vmul.f32 %v1193, 0.5
        %v1690 = vmul.f32 %v1196, 0.5
        %v1691 = vmul.f32 %v1201, 0.5
        %v1692 = vmul.f32 %v1204, 0.5
        %v1693 = vmul.f32 %v1209, 0.5
        %v1694 = vmul.f32 %v1212, 0.5
        %v1695 = vmul.f32 %v1217, 0.5
        %v1696 = vmul.f32 %v1220, 0.5
        %v1697 = vmul.f32 %v1225, 0.5
        %v1698 = vmul.f32 %v1228, 0.5
        %v1699 = vmul.f32 %v1233, 0.5
        %v1700 = vmul.f32 %v1236, 0.5
        %v1701 = vmul.f32 %v1241, 0.5
        %v1702 = vmul.f32 %v1244, 0.5
        %v1703 = vmul.f32 %v1249, 0.5
        %v1704 = vmul.f32 %v1252, 0.5
        %v1705 = vtanh.pop %v1689
        %v1706 = vtanh.pop %v1690
        %v1707 = vtanh.pop %v1691
        %v1708 = vtanh.pop %v1692
        %v1709 = vtanh.pop %v1693
        %v1710 = vtanh.pop %v1694
        %v1711 = vtanh.pop %v1695
        %v1712 = vtanh.pop %v1696
        %v1713 = vtanh.pop %v1697
        %v1714 = vtanh.pop %v1698
        %v1715 = vtanh.pop %v1699
        %v1716 = vtanh.pop %v1700
        %v1717 = vtanh.pop %v1701
        %v1718 = vtanh.pop %v1702
        %v1719 = vtanh.pop %v1703
        %v1720 = vtanh.pop %v1704
        %v1721 = vmul.f32 %v1705, 0.5
        %v1722 = vmul.f32 %v1706, 0.5
        %v1723 = vmul.f32 %v1707, 0.5
        %v1724 = vmul.f32 %v1708, 0.5
        %v1725 = vmul.f32 %v1709, 0.5
        %v1726 = vmul.f32 %v1710, 0.5
        %v1727 = vmul.f32 %v1711, 0.5
        %v1728 = vmul.f32 %v1712, 0.5
        %v1729 = vmul.f32 %v1713, 0.5
        %v1730 = vmul.f32 %v1714, 0.5
        %v1731 = vmul.f32 %v1715, 0.5
        %v1732 = vmul.f32 %v1716, 0.5
        %v1733 = vmul.f32 %v1717, 0.5
        %v1734 = vmul.f32 %v1718, 0.5
        %v1735 = vmul.f32 %v1719, 0.5
        %v1736 = vmul.f32 %v1720, 0.5
        %v1737 = vadd.f32 %v1721, 0.5
        %v1738 = vadd.f32 %v1722, 0.5
        %v1739 = vadd.f32 %v1723, 0.5
        %v1740 = vadd.f32 %v1724, 0.5
        %v1741 = vadd.f32 %v1725, 0.5
        %v1742 = vadd.f32 %v1726, 0.5
        %v1743 = vadd.f32 %v1727, 0.5
        %v1744 = vadd.f32 %v1728, 0.5
        %v1745 = vadd.f32 %v1729, 0.5
        %v1746 = vadd.f32 %v1730, 0.5
        %v1747 = vadd.f32 %v1731, 0.5
        %v1748 = vadd.f32 %v1732, 0.5
        %v1749 = vadd.f32 %v1733, 0.5
        %v1750 = vadd.f32 %v1734, 0.5
        %v1751 = vadd.f32 %v1735, 0.5
        %v1752 = vadd.f32 %v1736, 0.5
        %v1753 = vtanh.pop %v1370
        %v1754 = vtanh.pop %v1374
        %v1755 = vtanh.pop %v1380
        %v1756 = vtanh.pop %v1384
        %v1757 = vtanh.pop %v1390
        %v1758 = vtanh.pop %v1394
        %v1759 = vtanh.pop %v1400
        %v1760 = vtanh.pop %v1404
        %v1761 = vtanh.pop %v1410
        %v1762 = vtanh.pop %v1414
        %v1763 = vtanh.pop %v1420
        %v1764 = vtanh.pop %v1424
        %v1765 = vtanh.pop %v1430
        %v1766 = vtanh.pop %v1434
        %v1767 = vtanh.pop %v1440
        %v1768 = vtanh.pop %v1444
        %v1769 = vmul.f32 %v1372, 0.5
        %v1770 = vmul.f32 %v1376, 0.5
        %v1771 = vmul.f32 %v1382, 0.5
        %v1772 = vmul.f32 %v1386, 0.5
        %v1773 = vmul.f32 %v1392, 0.5
        %v1774 = vmul.f32 %v1396, 0.5
        %v1775 = vmul.f32 %v1402, 0.5
        %v1776 = vmul.f32 %v1406, 0.5
        %v1777 = vmul.f32 %v1412, 0.5
        %v1778 = vmul.f32 %v1416, 0.5
        %v1779 = vmul.f32 %v1422, 0.5
        %v1780 = vmul.f32 %v1426, 0.5
        %v1781 = vmul.f32 %v1432, 0.5
        %v1782 = vmul.f32 %v1436, 0.5
        %v1783 = vmul.f32 %v1442, 0.5
        %v1784 = vmul.f32 %v1446, 0.5
        %v1785 = vtanh.pop %v1769
        %v1786 = vtanh.pop %v1770
        %v1787 = vtanh.pop %v1771
        %v1788 = vtanh.pop %v1772
        %v1789 = vtanh.pop %v1773
        %v1790 = vtanh.pop %v1774
        %v1791 = vtanh.pop %v1775
        %v1792 = vtanh.pop %v1776
        %v1793 = vtanh.pop %v1777
        %v1794 = vtanh.pop %v1778
        %v1795 = vtanh.pop %v1779
        %v1796 = vtanh.pop %v1780
        %v1797 = vtanh.pop %v1781
        %v1798 = vtanh.pop %v1782
        %v1799 = vtanh.pop %v1783
        %v1800 = vtanh.pop %v1784
        %v1801 = vmul.f32 %v1785, 0.5
        %v1802 = vmul.f32 %v1786, 0.5
        %v1803 = vmul.f32 %v1787, 0.5
        %v1804 = vmul.f32 %v1788, 0.5
        %v1805 = vmul.f32 %v1789, 0.5
        %v1806 = vmul.f32 %v1790, 0.5
        %v1807 = vmul.f32 %v1791, 0.5
        %v1808 = vmul.f32 %v1792, 0.5
        %v1809 = vmul.f32 %v1793, 0.5
        %v1810 = vmul.f32 %v1794, 0.5
        %v1811 = vmul.f32 %v1795, 0.5
        %v1812 = vmul.f32 %v1796, 0.5
        %v1813 = vmul.f32 %v1797, 0.5
        %v1814 = vmul.f32 %v1798, 0.5
        %v1815 = vmul.f32 %v1799, 0.5
        %v1816 = vmul.f32 %v1800, 0.5
        %v1817 = vadd.f32 %v1801, 0.5
        %v1818 = vadd.f32 %v1802, 0.5
        %v1819 = vadd.f32 %v1803, 0.5
        %v1820 = vadd.f32 %v1804, 0.5
        %v1821 = vadd.f32 %v1805, 0.5
        %v1822 = vadd.f32 %v1806, 0.5
        %v1823 = vadd.f32 %v1807, 0.5
        %v1824 = vadd.f32 %v1808, 0.5
        %v1825 = vadd.f32 %v1809, 0.5
        %v1826 = vadd.f32 %v1810, 0.5
        %v1827 = vadd.f32 %v1811, 0.5
        %v1828 = vadd.f32 %v1812, 0.5
        %v1829 = vadd.f32 %v1813, 0.5
        %v1830 = vadd.f32 %v1814, 0.5
        %v1831 = vadd.f32 %v1815, 0.5
        %v1832 = vadd.f32 %v1816, 0.5
        %v1833 = vmul.f32 %v1737, %v1753
        %v1834 = vmul.f32 %v1738, %v1754
        %v1835 = vmul.f32 %v1739, %v1755
        %v1836 = vmul.f32 %v1740, %v1756
        %v1837 = vmul.f32 %v1741, %v1757
        %v1838 = vmul.f32 %v1742, %v1758
        %v1839 = vmul.f32 %v1743, %v1759
        %v1840 = vmul.f32 %v1744, %v1760
        %v1841 = vmul.f32 %v1745, %v1761
        %v1842 = vmul.f32 %v1746, %v1762
        %v1843 = vmul.f32 %v1747, %v1763
        %v1844 = vmul.f32 %v1748, %v1764
        %v1845 = vmul.f32 %v1749, %v1765
        %v1846 = vmul.f32 %v1750, %v1766
        %v1847 = vmul.f32 %v1751, %v1767
        %v1848 = vmul.f32 %v1752, %v1768
        %v1849 = vtanh.pop %v1833
        %v1850 = vtanh.pop %v1834
        %v1851 = vtanh.pop %v1835
        %v1852 = vtanh.pop %v1836
        %v1853 = vtanh.pop %v1837
        %v1854 = vtanh.pop %v1838
        %v1855 = vtanh.pop %v1839
        %v1856 = vtanh.pop %v1840
        %v1857 = vtanh.pop %v1841
        %v1858 = vtanh.pop %v1842
        %v1859 = vtanh.pop %v1843
        %v1860 = vtanh.pop %v1844
        %v1861 = vtanh.pop %v1845
        %v1862 = vtanh.pop %v1846
        %v1863 = vtanh.pop %v1847
        %v1864 = vtanh.pop %v1848
        %v1865 = vmul.f32 %v1817, %v1849
        %v1866 = vmul.f32 %v1818, %v1850
        %v1867 = vmul.f32 %v1819, %v1851
        %v1868 = vmul.f32 %v1820, %v1852
        %v1869 = vmul.f32 %v1821, %v1853
        %v1870 = vmul.f32 %v1822, %v1854
        %v1871 = vmul.f32 %v1823, %v1855
        %v1872 = vmul.f32 %v1824, %v1856
        %v1873 = vmul.f32 %v1825, %v1857
        %v1874 = vmul.f32 %v1826, %v1858
        %v1875 = vmul.f32 %v1827, %v1859
        %v1876 = vmul.f32 %v1828, %v1860
        %v1877 = vmul.f32 %v1829, %v1861
        %v1878 = vmul.f32 %v1830, %v1862
        %v1879 = vmul.f32 %v1831, %v1863
        %v1880 = vmul.f32 %v1832, %v1864
        %v1881 = vpack.c.bf16 %v1866, %v1865
        %v1882 = vpack.c.bf16 %v1868, %v1867
        %v1883 = vpack.c.bf16 %v1870, %v1869
        %v1884 = vpack.c.bf16 %v1872, %v1871
        %v1885 = vpack.c.bf16 %v1874, %v1873
        %v1886 = vpack.c.bf16 %v1876, %v1875
        %v1887 = vpack.c.bf16 %v1878, %v1877
        %v1888 = vpack.c.bf16 %v1880, %v1879
        %v1889 = vld [vmem:[%s4] sm:$0xff]
        %v1890 = vld [vmem:[%s4 + $0x8] sm:$0xff]
        %v1891 = vld [vmem:[%s4 + $0x10] sm:$0xff]
        %v1892 = vld [vmem:[%s4 + $0x18] sm:$0xff]
        %v1893 = vld [vmem:[%s4 + $0x20] sm:$0xff]
        %v1894 = vld [vmem:[%s4 + $0x28] sm:$0xff]
        %v1895 = vld [vmem:[%s4 + $0x30] sm:$0xff]
        %v1896 = vld [vmem:[%s4 + $0x38] sm:$0xff]
        %v1897 = vld [vmem:[%s4 + $0x40] sm:$0xff]
        %v1898 = vld [vmem:[%s4 + $0x48] sm:$0xff]
        %v1899 = vld [vmem:[%s4 + $0x50] sm:$0xff]
        %v1900 = vld [vmem:[%s4 + $0x58] sm:$0xff]
        %v1901 = vld [vmem:[%s4 + $0x60] sm:$0xff]
        %v1902 = vld [vmem:[%s4 + $0x68] sm:$0xff]
        %v1903 = vld [vmem:[%s4 + $0x70] sm:$0xff]
        %v1904 = vld [vmem:[%s4 + $0x78] sm:$0xff]
        %v1905 = vld [vmem:[%s4 + $0x80] sm:$0xff]
        %v1906 = vld [vmem:[%s4 + $0x88] sm:$0xff]
        %v1907 = vld [vmem:[%s4 + $0x90] sm:$0xff]
        %v1908 = vld [vmem:[%s4 + $0x98] sm:$0xff]
        %v1909 = vld [vmem:[%s4 + $0xa0] sm:$0xff]
        %v1910 = vld [vmem:[%s4 + $0xa8] sm:$0xff]
        %v1911 = vld [vmem:[%s4 + $0xb0] sm:$0xff]
        %v1912 = vld [vmem:[%s4 + $0xb8] sm:$0xff]
        %v1913 = vld [vmem:[%s4 + $0xc0] sm:$0xff]
        %v1914 = vld [vmem:[%s4 + $0xc8] sm:$0xff]
        %v1915 = vld [vmem:[%s4 + $0xd0] sm:$0xff]
        %v1916 = vld [vmem:[%s4 + $0xd8] sm:$0xff]
        %v1917 = vld [vmem:[%s4 + $0xe0] sm:$0xff]
        %v1918 = vld [vmem:[%s4 + $0xe8] sm:$0xff]
        %v1919 = vld [vmem:[%s4 + $0xf0] sm:$0xff]
        %v1920 = vld [vmem:[%s4 + $0xf8] sm:$0xff]
        %v1953 = vunpack.c.l.b16 %v1889
        %v1954 = vunpack.c.h.b16 %v1889
        %v1955 = vunpack.c.l.b16 %v1890
        %v1956 = vunpack.c.h.b16 %v1890
        %v1957 = vunpack.c.l.b16 %v1891
        %v1958 = vunpack.c.h.b16 %v1891
        %v1959 = vunpack.c.l.b16 %v1892
        %v1960 = vunpack.c.h.b16 %v1892
        %v1961 = vunpack.c.l.b16 %v1893
        %v1962 = vunpack.c.h.b16 %v1893
        %v1963 = vunpack.c.l.b16 %v1894
        %v1964 = vunpack.c.h.b16 %v1894
        %v1965 = vunpack.c.l.b16 %v1895
        %v1966 = vunpack.c.h.b16 %v1895
        %v1967 = vunpack.c.l.b16 %v1896
        %v1968 = vunpack.c.h.b16 %v1896
        %v1969 = vunpack.c.l.b16 %v1897
        %v1970 = vunpack.c.h.b16 %v1897
        %v1971 = vunpack.c.l.b16 %v1898
        %v1972 = vunpack.c.h.b16 %v1898
        %v1973 = vunpack.c.l.b16 %v1899
        %v1974 = vunpack.c.h.b16 %v1899
        %v1975 = vunpack.c.l.b16 %v1900
        %v1976 = vunpack.c.h.b16 %v1900
        %v1977 = vunpack.c.l.b16 %v1901
        %v1978 = vunpack.c.h.b16 %v1901
        %v1979 = vunpack.c.l.b16 %v1902
        %v1980 = vunpack.c.h.b16 %v1902
        %v1981 = vunpack.c.l.b16 %v1903
        %v1982 = vunpack.c.h.b16 %v1903
        %v1983 = vunpack.c.l.b16 %v1904
        %v1984 = vunpack.c.h.b16 %v1904
        %v1985 = vunpack.c.l.b16 %v1905
        %v1986 = vunpack.c.h.b16 %v1905
        %v1987 = vunpack.c.l.b16 %v1906
        %v1988 = vunpack.c.h.b16 %v1906
        %v1989 = vunpack.c.l.b16 %v1907
        %v1990 = vunpack.c.h.b16 %v1907
        %v1991 = vunpack.c.l.b16 %v1908
        %v1992 = vunpack.c.h.b16 %v1908
        %v1993 = vunpack.c.l.b16 %v1909
        %v1994 = vunpack.c.h.b16 %v1909
        %v1995 = vunpack.c.l.b16 %v1910
        %v1996 = vunpack.c.h.b16 %v1910
        %v1997 = vunpack.c.l.b16 %v1911
        %v1998 = vunpack.c.h.b16 %v1911
        %v1999 = vunpack.c.l.b16 %v1912
        %v2000 = vunpack.c.h.b16 %v1912
        %v2001 = vunpack.c.l.b16 %v1913
        %v2002 = vunpack.c.h.b16 %v1913
        %v2003 = vunpack.c.l.b16 %v1914
        %v2004 = vunpack.c.h.b16 %v1914
        %v2005 = vunpack.c.l.b16 %v1915
        %v2006 = vunpack.c.h.b16 %v1915
        %v2007 = vunpack.c.l.b16 %v1916
        %v2008 = vunpack.c.h.b16 %v1916
        %v2009 = vunpack.c.l.b16 %v1917
        %v2010 = vunpack.c.h.b16 %v1917
        %v2011 = vunpack.c.l.b16 %v1918
        %v2012 = vunpack.c.h.b16 %v1918
        %v2013 = vunpack.c.l.b16 %v1919
        %v2014 = vunpack.c.h.b16 %v1919
        %v2015 = vunpack.c.l.b16 %v1920
        %v2016 = vunpack.c.h.b16 %v1920
        %v2017 = vpack.c.b16 %v1957, %v1953
        %v2018 = vpack.c.b16 %v1958, %v1954
        %v2019 = vpack.c.b16 %v1959, %v1955
        %v2020 = vpack.c.b16 %v1960, %v1956
        %v2021 = vpack.c.b16 %v1965, %v1961
        %v2022 = vpack.c.b16 %v1966, %v1962
        %v2023 = vpack.c.b16 %v1967, %v1963
        %v2024 = vpack.c.b16 %v1968, %v1964
        %v2025 = vpack.c.b16 %v1973, %v1969
        %v2026 = vpack.c.b16 %v1974, %v1970
        %v2027 = vpack.c.b16 %v1975, %v1971
        %v2028 = vpack.c.b16 %v1976, %v1972
        %v2029 = vpack.c.b16 %v1981, %v1977
        %v2030 = vpack.c.b16 %v1982, %v1978
        %v2031 = vpack.c.b16 %v1983, %v1979
        %v2032 = vpack.c.b16 %v1984, %v1980
        %v2033 = vpack.c.b16 %v1989, %v1985
        %v2034 = vpack.c.b16 %v1990, %v1986
        %v2035 = vpack.c.b16 %v1991, %v1987
        %v2036 = vpack.c.b16 %v1992, %v1988
        %v2037 = vpack.c.b16 %v1997, %v1993
        %v2038 = vpack.c.b16 %v1998, %v1994
        %v2039 = vpack.c.b16 %v1999, %v1995
        %v2040 = vpack.c.b16 %v2000, %v1996
        %v2041 = vpack.c.b16 %v2005, %v2001
        %v2042 = vpack.c.b16 %v2006, %v2002
        %v2043 = vpack.c.b16 %v2007, %v2003
        %v2044 = vpack.c.b16 %v2008, %v2004
        %v2045 = vpack.c.b16 %v2013, %v2009
        %v2046 = vpack.c.b16 %v2014, %v2010
        %v2047 = vpack.c.b16 %v2015, %v2011
        %v2048 = vpack.c.b16 %v2016, %v2012
        %2081 = vmatprep.subr.bf16.mxu0 %v2046
        %2082 = vmatpush1.bf16.msra.mxu0 %v2045
        %2083 = vmatprep.subr.bf16.mxu0 %v2042
        %2084 = vmatpush1.bf16.msra.mxu0 %v2041
        %2085 = vmatprep.subr.bf16.mxu0 %v2038
        %2086 = vmatpush1.bf16.msra.mxu0 %v2037
        %2087 = vmatprep.subr.bf16.mxu0 %v2034
        %2088 = vmatpush1.bf16.msra.mxu0 %v2033
        %2089 = vmatprep.subr.bf16.mxu0 %v2030
        %2090 = vmatpush1.bf16.msra.mxu0 %v2029
        %2091 = vmatprep.subr.bf16.mxu0 %v2026
        %2092 = vmatpush1.bf16.msra.mxu0 %v2025
        %2093 = vmatprep.subr.bf16.mxu0 %v2022
        %2094 = vmatpush1.bf16.msra.mxu0 %v2021
        %2095 = vmatprep.subr.bf16.mxu0 %v2018
        %2096 = vmatpush1.bf16.msra.mxu0 %v2017
        %2097 = vmatprep.subr.bf16.mxu0 0
        %2098 = vmatpush2.bf16.msra.mxu0 0
        %2099 = vmatprep.subr.bf16.mxu0 0
        %2100 = vmatpush2.bf16.msra.mxu0 0
        %2101 = vmatprep.subr.bf16.mxu0 0
        %2102 = vmatpush2.bf16.msra.mxu0 0
        %2103 = vmatprep.subr.bf16.mxu0 0
        %2104 = vmatpush2.bf16.msra.mxu0 0
        %2105 = vmatprep.subr.bf16.mxu0 0
        %2106 = vmatpush2.bf16.msra.mxu0 0
        %2107 = vmatprep.subr.bf16.mxu0 0
        %2108 = vmatpush2.bf16.msra.mxu0 0
        %2109 = vmatprep.subr.bf16.mxu0 0
        %2110 = vmatpush2.bf16.msra.mxu0 0
        %2111 = vmatprep.subr.bf16.mxu0 0
        %2112 = vmatpush2.bf16.msra.mxu0 0
        %2113 = vmatprep.mubr.bf16.mxu0 0
        %2114 = vmatmul.mubr.bf16.gmra.mxu0 %v1881
        %v2115 = vpop.f32.mrf.mxu0
        %v2116 = vadd.f32 0.0, %v2115
        %v2117 = vpop.f32.mrf.mxu0
        %v2118 = vadd.f32 0.0, %v2117
        %v2119 = vpop.f32.mrf.mxu0
        %v2120 = vadd.f32 0.0, %v2119
        %v2121 = vpop.f32.mrf.mxu0
        %v2122 = vadd.f32 0.0, %v2121
        %2123 = vmatprep.mubr.bf16.mxu0 0
        %2124 = vmatmul.mubr.bf16.gmra.mxu0 %v1882
        %v2125 = vpop.f32.mrf.mxu0
        %v2126 = vadd.f32 0.0, %v2125
        %v2127 = vpop.f32.mrf.mxu0
        %v2128 = vadd.f32 0.0, %v2127
        %v2129 = vpop.f32.mrf.mxu0
        %v2130 = vadd.f32 0.0, %v2129
        %v2131 = vpop.f32.mrf.mxu0
        %v2132 = vadd.f32 0.0, %v2131
        %2133 = vmatprep.mubr.bf16.mxu0 0
        %2134 = vmatmul.mubr.bf16.gmra.mxu0 %v1883
        %v2135 = vpop.f32.mrf.mxu0
        %v2136 = vadd.f32 0.0, %v2135
        %v2137 = vpop.f32.mrf.mxu0
        %v2138 = vadd.f32 0.0, %v2137
        %v2139 = vpop.f32.mrf.mxu0
        %v2140 = vadd.f32 0.0, %v2139
        %v2141 = vpop.f32.mrf.mxu0
        %v2142 = vadd.f32 0.0, %v2141
        %2143 = vmatprep.mubr.bf16.mxu0 0
        %2144 = vmatmul.mubr.bf16.gmra.mxu0 %v1884
        %v2145 = vpop.f32.mrf.mxu0
        %v2146 = vadd.f32 0.0, %v2145
        %v2147 = vpop.f32.mrf.mxu0
        %v2148 = vadd.f32 0.0, %v2147
        %v2149 = vpop.f32.mrf.mxu0
        %v2150 = vadd.f32 0.0, %v2149
        %v2151 = vpop.f32.mrf.mxu0
        %v2152 = vadd.f32 0.0, %v2151
        %2153 = vmatprep.mubr.bf16.mxu0 0
        %2154 = vmatmul.mubr.bf16.gmra.mxu0 %v1885
        %v2155 = vpop.f32.mrf.mxu0
        %v2156 = vadd.f32 0.0, %v2155
        %v2157 = vpop.f32.mrf.mxu0
        %v2158 = vadd.f32 0.0, %v2157
        %v2159 = vpop.f32.mrf.mxu0
        %v2160 = vadd.f32 0.0, %v2159
        %v2161 = vpop.f32.mrf.mxu0
        %v2162 = vadd.f32 0.0, %v2161
        %2163 = vmatprep.mubr.bf16.mxu0 0
        %2164 = vmatmul.mubr.bf16.gmra.mxu0 %v1886
        %v2165 = vpop.f32.mrf.mxu0
        %v2166 = vadd.f32 0.0, %v2165
        %v2167 = vpop.f32.mrf.mxu0
        %v2168 = vadd.f32 0.0, %v2167
        %v2169 = vpop.f32.mrf.mxu0
        %v2170 = vadd.f32 0.0, %v2169
        %v2171 = vpop.f32.mrf.mxu0
        %v2172 = vadd.f32 0.0, %v2171
        %2173 = vmatprep.mubr.bf16.mxu0 0
        %2174 = vmatmul.mubr.bf16.gmra.mxu0 %v1887
        %v2175 = vpop.f32.mrf.mxu0
        %v2176 = vadd.f32 0.0, %v2175
        %v2177 = vpop.f32.mrf.mxu0
        %v2178 = vadd.f32 0.0, %v2177
        %v2179 = vpop.f32.mrf.mxu0
        %v2180 = vadd.f32 0.0, %v2179
        %v2181 = vpop.f32.mrf.mxu0
        %v2182 = vadd.f32 0.0, %v2181
        %2183 = vmatprep.mubr.bf16.mxu0 0
        %2184 = vmatmul.mubr.bf16.gmra.mxu0 %v1888
        %v2185 = vpop.f32.mrf.mxu0
        %v2186 = vadd.f32 0.0, %v2185
        %v2187 = vpop.f32.mrf.mxu0
        %v2188 = vadd.f32 0.0, %v2187
        %v2189 = vpop.f32.mrf.mxu0
        %v2190 = vadd.f32 0.0, %v2189
        %v2191 = vpop.f32.mrf.mxu0
        %v2192 = vadd.f32 0.0, %v2191
        %2193 = vdwg.mxu0
        %2194 = vmatprep.subr.bf16.mxu0 %v2048
        %2195 = vmatpush1.bf16.msra.mxu0 %v2047
        %2196 = vmatprep.subr.bf16.mxu0 %v2044
        %2197 = vmatpush1.bf16.msra.mxu0 %v2043
        %2198 = vmatprep.subr.bf16.mxu0 %v2040
        %2199 = vmatpush1.bf16.msra.mxu0 %v2039
        %2200 = vmatprep.subr.bf16.mxu0 %v2036
        %2201 = vmatpush1.bf16.msra.mxu0 %v2035
        %2202 = vmatprep.subr.bf16.mxu0 %v2032
        %2203 = vmatpush1.bf16.msra.mxu0 %v2031
        %2204 = vmatprep.subr.bf16.mxu0 %v2028
        %2205 = vmatpush1.bf16.msra.mxu0 %v2027
        %2206 = vmatprep.subr.bf16.mxu0 %v2024
        %2207 = vmatpush1.bf16.msra.mxu0 %v2023
        %2208 = vmatprep.subr.bf16.mxu0 %v2020
        %2209 = vmatpush1.bf16.msra.mxu0 %v2019
        %2210 = vmatprep.subr.bf16.mxu0 0
        %2211 = vmatpush2.bf16.msra.mxu0 0
        %2212 = vmatprep.subr.bf16.mxu0 0
        %2213 = vmatpush2.bf16.msra.mxu0 0
        %2214 = vmatprep.subr.bf16.mxu0 0
        %2215 = vmatpush2.bf16.msra.mxu0 0
        %2216 = vmatprep.subr.bf16.mxu0 0
        %2217 = vmatpush2.bf16.msra.mxu0 0
        %2218 = vmatprep.subr.bf16.mxu0 0
        %2219 = vmatpush2.bf16.msra.mxu0 0
        %2220 = vmatprep.subr.bf16.mxu0 0
        %2221 = vmatpush2.bf16.msra.mxu0 0
        %2222 = vmatprep.subr.bf16.mxu0 0
        %2223 = vmatpush2.bf16.msra.mxu0 0
        %2224 = vmatprep.subr.bf16.mxu0 0
        %2225 = vmatpush2.bf16.msra.mxu0 0
        %2226 = vmatprep.mubr.bf16.mxu0 0
        %2227 = vmatmul.mubr.bf16.gmra.mxu0 %v1881
        %v2228 = vpop.f32.mrf.mxu0
        %v2229 = vadd.f32 0.0, %v2228
        %v2230 = vpop.f32.mrf.mxu0
        %v2231 = vadd.f32 0.0, %v2230
        %v2232 = vpop.f32.mrf.mxu0
        %v2233 = vadd.f32 0.0, %v2232
        %v2234 = vpop.f32.mrf.mxu0
        %v2235 = vadd.f32 0.0, %v2234
        %2236 = vmatprep.mubr.bf16.mxu0 0
        %2237 = vmatmul.mubr.bf16.gmra.mxu0 %v1882
        %v2238 = vpop.f32.mrf.mxu0
        %v2239 = vadd.f32 0.0, %v2238
        %v2240 = vpop.f32.mrf.mxu0
        %v2241 = vadd.f32 0.0, %v2240
        %v2242 = vpop.f32.mrf.mxu0
        %v2243 = vadd.f32 0.0, %v2242
        %v2244 = vpop.f32.mrf.mxu0
        %v2245 = vadd.f32 0.0, %v2244
        %2246 = vmatprep.mubr.bf16.mxu0 0
        %2247 = vmatmul.mubr.bf16.gmra.mxu0 %v1883
        %v2248 = vpop.f32.mrf.mxu0
        %v2249 = vadd.f32 0.0, %v2248
        %v2250 = vpop.f32.mrf.mxu0
        %v2251 = vadd.f32 0.0, %v2250
        %v2252 = vpop.f32.mrf.mxu0
        %v2253 = vadd.f32 0.0, %v2252
        %v2254 = vpop.f32.mrf.mxu0
        %v2255 = vadd.f32 0.0, %v2254
        %2256 = vmatprep.mubr.bf16.mxu0 0
        %2257 = vmatmul.mubr.bf16.gmra.mxu0 %v1884
        %v2258 = vpop.f32.mrf.mxu0
        %v2259 = vadd.f32 0.0, %v2258
        %v2260 = vpop.f32.mrf.mxu0
        %v2261 = vadd.f32 0.0, %v2260
        %v2262 = vpop.f32.mrf.mxu0
        %v2263 = vadd.f32 0.0, %v2262
        %v2264 = vpop.f32.mrf.mxu0
        %v2265 = vadd.f32 0.0, %v2264
        %2266 = vmatprep.mubr.bf16.mxu0 0
        %2267 = vmatmul.mubr.bf16.gmra.mxu0 %v1885
        %v2268 = vpop.f32.mrf.mxu0
        %v2269 = vadd.f32 0.0, %v2268
        %v2270 = vpop.f32.mrf.mxu0
        %v2271 = vadd.f32 0.0, %v2270
        %v2272 = vpop.f32.mrf.mxu0
        %v2273 = vadd.f32 0.0, %v2272
        %v2274 = vpop.f32.mrf.mxu0
        %v2275 = vadd.f32 0.0, %v2274
        %2276 = vmatprep.mubr.bf16.mxu0 0
        %2277 = vmatmul.mubr.bf16.gmra.mxu0 %v1886
        %v2278 = vpop.f32.mrf.mxu0
        %v2279 = vadd.f32 0.0, %v2278
        %v2280 = vpop.f32.mrf.mxu0
        %v2281 = vadd.f32 0.0, %v2280
        %v2282 = vpop.f32.mrf.mxu0
        %v2283 = vadd.f32 0.0, %v2282
        %v2284 = vpop.f32.mrf.mxu0
        %v2285 = vadd.f32 0.0, %v2284
        %2286 = vmatprep.mubr.bf16.mxu0 0
        %2287 = vmatmul.mubr.bf16.gmra.mxu0 %v1887
        %v2288 = vpop.f32.mrf.mxu0
        %v2289 = vadd.f32 0.0, %v2288
        %v2290 = vpop.f32.mrf.mxu0
        %v2291 = vadd.f32 0.0, %v2290
        %v2292 = vpop.f32.mrf.mxu0
        %v2293 = vadd.f32 0.0, %v2292
        %v2294 = vpop.f32.mrf.mxu0
        %v2295 = vadd.f32 0.0, %v2294
        %2296 = vmatprep.mubr.bf16.mxu0 0
        %2297 = vmatmul.mubr.bf16.gmra.mxu0 %v1888
        %v2298 = vpop.f32.mrf.mxu0
        %v2299 = vadd.f32 0.0, %v2298
        %v2300 = vpop.f32.mrf.mxu0
        %v2301 = vadd.f32 0.0, %v2300
        %v2302 = vpop.f32.mrf.mxu0
        %v2303 = vadd.f32 0.0, %v2302
        %v2304 = vpop.f32.mrf.mxu0
        %v2305 = vadd.f32 0.0, %v2304
        %2306 = vdwg.mxu0
        %v2307 = vadd.f32 %v1257, %v2116
        %v2308 = vadd.f32 %v1259, %v2118
        %v2309 = vadd.f32 %v1450, %v2229
        %v2310 = vadd.f32 %v1452, %v2231
        %v2311 = vadd.f32 %v1261, %v2120
        %v2312 = vadd.f32 %v1263, %v2122
        %v2313 = vadd.f32 %v1454, %v2233
        %v2314 = vadd.f32 %v1456, %v2235
        %v2315 = vadd.f32 %v1267, %v2126
        %v2316 = vadd.f32 %v1269, %v2128
        %v2317 = vadd.f32 %v1460, %v2239
        %v2318 = vadd.f32 %v1462, %v2241
        %v2319 = vadd.f32 %v1271, %v2130
        %v2320 = vadd.f32 %v1273, %v2132
        %v2321 = vadd.f32 %v1464, %v2243
        %v2322 = vadd.f32 %v1466, %v2245
        %v2323 = vadd.f32 %v1277, %v2136
        %v2324 = vadd.f32 %v1279, %v2138
        %v2325 = vadd.f32 %v1470, %v2249
        %v2326 = vadd.f32 %v1472, %v2251
        %v2327 = vadd.f32 %v1281, %v2140
        %v2328 = vadd.f32 %v1283, %v2142
        %v2329 = vadd.f32 %v1474, %v2253
        %v2330 = vadd.f32 %v1476, %v2255
        %v2331 = vadd.f32 %v1287, %v2146
        %v2332 = vadd.f32 %v1289, %v2148
        %v2333 = vadd.f32 %v1480, %v2259
        %v2334 = vadd.f32 %v1482, %v2261
        %v2335 = vadd.f32 %v1291, %v2150
        %v2336 = vadd.f32 %v1293, %v2152
        %v2337 = vadd.f32 %v1484, %v2263
        %v2338 = vadd.f32 %v1486, %v2265
        %v2339 = vadd.f32 %v1297, %v2156
        %v2340 = vadd.f32 %v1299, %v2158
        %v2341 = vadd.f32 %v1490, %v2269
        %v2342 = vadd.f32 %v1492, %v2271
        %v2343 = vadd.f32 %v1301, %v2160
        %v2344 = vadd.f32 %v1303, %v2162
        %v2345 = vadd.f32 %v1494, %v2273
        %v2346 = vadd.f32 %v1496, %v2275
        %v2347 = vadd.f32 %v1307, %v2166
        %v2348 = vadd.f32 %v1309, %v2168
        %v2349 = vadd.f32 %v1500, %v2279
        %v2350 = vadd.f32 %v1502, %v2281
        %v2351 = vadd.f32 %v1311, %v2170
        %v2352 = vadd.f32 %v1313, %v2172
        %v2353 = vadd.f32 %v1504, %v2283
        %v2354 = vadd.f32 %v1506, %v2285
        %v2355 = vadd.f32 %v1317, %v2176
        %v2356 = vadd.f32 %v1319, %v2178
        %v2357 = vadd.f32 %v1510, %v2289
        %v2358 = vadd.f32 %v1512, %v2291
        %v2359 = vadd.f32 %v1321, %v2180
        %v2360 = vadd.f32 %v1323, %v2182
        %v2361 = vadd.f32 %v1514, %v2293
        %v2362 = vadd.f32 %v1516, %v2295
        %v2363 = vadd.f32 %v1327, %v2186
        %v2364 = vadd.f32 %v1329, %v2188
        %v2365 = vadd.f32 %v1520, %v2299
        %v2366 = vadd.f32 %v1522, %v2301
        %v2367 = vadd.f32 %v1331, %v2190
        %v2368 = vadd.f32 %v1333, %v2192
        %v2369 = vadd.f32 %v1524, %v2303
        %v2370 = vadd.f32 %v1526, %v2305
        %v2371 = vmul.f32 %v2307, 0.5
        %v2372 = vmul.f32 %v2311, 0.5
        %v2373 = vmul.f32 %v2315, 0.5
        %v2374 = vmul.f32 %v2319, 0.5
        %v2375 = vmul.f32 %v2323, 0.5
        %v2376 = vmul.f32 %v2327, 0.5
        %v2377 = vmul.f32 %v2331, 0.5
        %v2378 = vmul.f32 %v2335, 0.5
        %v2379 = vmul.f32 %v2339, 0.5
        %v2380 = vmul.f32 %v2343, 0.5
        %v2381 = vmul.f32 %v2347, 0.5
        %v2382 = vmul.f32 %v2351, 0.5
        %v2383 = vmul.f32 %v2355, 0.5
        %v2384 = vmul.f32 %v2359, 0.5
        %v2385 = vmul.f32 %v2363, 0.5
        %v2386 = vmul.f32 %v2367, 0.5
        %v2387 = vtanh.pop %v2371
        %v2388 = vtanh.pop %v2372
        %v2389 = vtanh.pop %v2373
        %v2390 = vtanh.pop %v2374
        %v2391 = vtanh.pop %v2375
        %v2392 = vtanh.pop %v2376
        %v2393 = vtanh.pop %v2377
        %v2394 = vtanh.pop %v2378
        %v2395 = vtanh.pop %v2379
        %v2396 = vtanh.pop %v2380
        %v2397 = vtanh.pop %v2381
        %v2398 = vtanh.pop %v2382
        %v2399 = vtanh.pop %v2383
        %v2400 = vtanh.pop %v2384
        %v2401 = vtanh.pop %v2385
        %v2402 = vtanh.pop %v2386
        %v2403 = vmul.f32 %v2387, 0.5
        %v2404 = vmul.f32 %v2388, 0.5
        %v2405 = vmul.f32 %v2389, 0.5
        %v2406 = vmul.f32 %v2390, 0.5
        %v2407 = vmul.f32 %v2391, 0.5
        %v2408 = vmul.f32 %v2392, 0.5
        %v2409 = vmul.f32 %v2393, 0.5
        %v2410 = vmul.f32 %v2394, 0.5
        %v2411 = vmul.f32 %v2395, 0.5
        %v2412 = vmul.f32 %v2396, 0.5
        %v2413 = vmul.f32 %v2397, 0.5
        %v2414 = vmul.f32 %v2398, 0.5
        %v2415 = vmul.f32 %v2399, 0.5
        %v2416 = vmul.f32 %v2400, 0.5
        %v2417 = vmul.f32 %v2401, 0.5
        %v2418 = vmul.f32 %v2402, 0.5
        %v2419 = vadd.f32 %v2403, 0.5
        %v2420 = vadd.f32 %v2404, 0.5
        %v2421 = vadd.f32 %v2405, 0.5
        %v2422 = vadd.f32 %v2406, 0.5
        %v2423 = vadd.f32 %v2407, 0.5
        %v2424 = vadd.f32 %v2408, 0.5
        %v2425 = vadd.f32 %v2409, 0.5
        %v2426 = vadd.f32 %v2410, 0.5
        %v2427 = vadd.f32 %v2411, 0.5
        %v2428 = vadd.f32 %v2412, 0.5
        %v2429 = vadd.f32 %v2413, 0.5
        %v2430 = vadd.f32 %v2414, 0.5
        %v2431 = vadd.f32 %v2415, 0.5
        %v2432 = vadd.f32 %v2416, 0.5
        %v2433 = vadd.f32 %v2417, 0.5
        %v2434 = vadd.f32 %v2418, 0.5
        %v2435 = vmul.f32 %v2308, 0.5
        %v2436 = vmul.f32 %v2312, 0.5
        %v2437 = vmul.f32 %v2316, 0.5
        %v2438 = vmul.f32 %v2320, 0.5
        %v2439 = vmul.f32 %v2324, 0.5
        %v2440 = vmul.f32 %v2328, 0.5
        %v2441 = vmul.f32 %v2332, 0.5
        %v2442 = vmul.f32 %v2336, 0.5
        %v2443 = vmul.f32 %v2340, 0.5
        %v2444 = vmul.f32 %v2344, 0.5
        %v2445 = vmul.f32 %v2348, 0.5
        %v2446 = vmul.f32 %v2352, 0.5
        %v2447 = vmul.f32 %v2356, 0.5
        %v2448 = vmul.f32 %v2360, 0.5
        %v2449 = vmul.f32 %v2364, 0.5
        %v2450 = vmul.f32 %v2368, 0.5
        %v2451 = vtanh.pop %v2435
        %v2452 = vtanh.pop %v2436
        %v2453 = vtanh.pop %v2437
        %v2454 = vtanh.pop %v2438
        %v2455 = vtanh.pop %v2439
        %v2456 = vtanh.pop %v2440
        %v2457 = vtanh.pop %v2441
        %v2458 = vtanh.pop %v2442
        %v2459 = vtanh.pop %v2443
        %v2460 = vtanh.pop %v2444
        %v2461 = vtanh.pop %v2445
        %v2462 = vtanh.pop %v2446
        %v2463 = vtanh.pop %v2447
        %v2464 = vtanh.pop %v2448
        %v2465 = vtanh.pop %v2449
        %v2466 = vtanh.pop %v2450
        %v2467 = vmul.f32 %v2451, 0.5
        %v2468 = vmul.f32 %v2452, 0.5
        %v2469 = vmul.f32 %v2453, 0.5
        %v2470 = vmul.f32 %v2454, 0.5
        %v2471 = vmul.f32 %v2455, 0.5
        %v2472 = vmul.f32 %v2456, 0.5
        %v2473 = vmul.f32 %v2457, 0.5
        %v2474 = vmul.f32 %v2458, 0.5
        %v2475 = vmul.f32 %v2459, 0.5
        %v2476 = vmul.f32 %v2460, 0.5
        %v2477 = vmul.f32 %v2461, 0.5
        %v2478 = vmul.f32 %v2462, 0.5
        %v2479 = vmul.f32 %v2463, 0.5
        %v2480 = vmul.f32 %v2464, 0.5
        %v2481 = vmul.f32 %v2465, 0.5
        %v2482 = vmul.f32 %v2466, 0.5
        %v2483 = vadd.f32 %v2467, 0.5
        %v2484 = vadd.f32 %v2468, 0.5
        %v2485 = vadd.f32 %v2469, 0.5
        %v2486 = vadd.f32 %v2470, 0.5
        %v2487 = vadd.f32 %v2471, 0.5
        %v2488 = vadd.f32 %v2472, 0.5
        %v2489 = vadd.f32 %v2473, 0.5
        %v2490 = vadd.f32 %v2474, 0.5
        %v2491 = vadd.f32 %v2475, 0.5
        %v2492 = vadd.f32 %v2476, 0.5
        %v2493 = vadd.f32 %v2477, 0.5
        %v2494 = vadd.f32 %v2478, 0.5
        %v2495 = vadd.f32 %v2479, 0.5
        %v2496 = vadd.f32 %v2480, 0.5
        %v2497 = vadd.f32 %v2481, 0.5
        %v2498 = vadd.f32 %v2482, 0.5
        %v2499 = vtanh.pop %v2309
        %v2500 = vtanh.pop %v2313
        %v2501 = vtanh.pop %v2317
        %v2502 = vtanh.pop %v2321
        %v2503 = vtanh.pop %v2325
        %v2504 = vtanh.pop %v2329
        %v2505 = vtanh.pop %v2333
        %v2506 = vtanh.pop %v2337
        %v2507 = vtanh.pop %v2341
        %v2508 = vtanh.pop %v2345
        %v2509 = vtanh.pop %v2349
        %v2510 = vtanh.pop %v2353
        %v2511 = vtanh.pop %v2357
        %v2512 = vtanh.pop %v2361
        %v2513 = vtanh.pop %v2365
        %v2514 = vtanh.pop %v2369
        %v2515 = vmul.f32 %v2310, 0.5
        %v2516 = vmul.f32 %v2314, 0.5
        %v2517 = vmul.f32 %v2318, 0.5
        %v2518 = vmul.f32 %v2322, 0.5
        %v2519 = vmul.f32 %v2326, 0.5
        %v2520 = vmul.f32 %v2330, 0.5
        %v2521 = vmul.f32 %v2334, 0.5
        %v2522 = vmul.f32 %v2338, 0.5
        %v2523 = vmul.f32 %v2342, 0.5
        %v2524 = vmul.f32 %v2346, 0.5
        %v2525 = vmul.f32 %v2350, 0.5
        %v2526 = vmul.f32 %v2354, 0.5
        %v2527 = vmul.f32 %v2358, 0.5
        %v2528 = vmul.f32 %v2362, 0.5
        %v2529 = vmul.f32 %v2366, 0.5
        %v2530 = vmul.f32 %v2370, 0.5
        %v2531 = vtanh.pop %v2515
        %v2532 = vtanh.pop %v2516
        %v2533 = vtanh.pop %v2517
        %v2534 = vtanh.pop %v2518
        %v2535 = vtanh.pop %v2519
        %v2536 = vtanh.pop %v2520
        %v2537 = vtanh.pop %v2521
        %v2538 = vtanh.pop %v2522
        %v2539 = vtanh.pop %v2523
        %v2540 = vtanh.pop %v2524
        %v2541 = vtanh.pop %v2525
        %v2542 = vtanh.pop %v2526
        %v2543 = vtanh.pop %v2527
        %v2544 = vtanh.pop %v2528
        %v2545 = vtanh.pop %v2529
        %v2546 = vtanh.pop %v2530
        %v2547 = vmul.f32 %v2531, 0.5
        %v2548 = vmul.f32 %v2532, 0.5
        %v2549 = vmul.f32 %v2533, 0.5
        %v2550 = vmul.f32 %v2534, 0.5
        %v2551 = vmul.f32 %v2535, 0.5
        %v2552 = vmul.f32 %v2536, 0.5
        %v2553 = vmul.f32 %v2537, 0.5
        %v2554 = vmul.f32 %v2538, 0.5
        %v2555 = vmul.f32 %v2539, 0.5
        %v2556 = vmul.f32 %v2540, 0.5
        %v2557 = vmul.f32 %v2541, 0.5
        %v2558 = vmul.f32 %v2542, 0.5
        %v2559 = vmul.f32 %v2543, 0.5
        %v2560 = vmul.f32 %v2544, 0.5
        %v2561 = vmul.f32 %v2545, 0.5
        %v2562 = vmul.f32 %v2546, 0.5
        %v2563 = vadd.f32 %v2547, 0.5
        %v2564 = vadd.f32 %v2548, 0.5
        %v2565 = vadd.f32 %v2549, 0.5
        %v2566 = vadd.f32 %v2550, 0.5
        %v2567 = vadd.f32 %v2551, 0.5
        %v2568 = vadd.f32 %v2552, 0.5
        %v2569 = vadd.f32 %v2553, 0.5
        %v2570 = vadd.f32 %v2554, 0.5
        %v2571 = vadd.f32 %v2555, 0.5
        %v2572 = vadd.f32 %v2556, 0.5
        %v2573 = vadd.f32 %v2557, 0.5
        %v2574 = vadd.f32 %v2558, 0.5
        %v2575 = vadd.f32 %v2559, 0.5
        %v2576 = vadd.f32 %v2560, 0.5
        %v2577 = vadd.f32 %v2561, 0.5
        %v2578 = vadd.f32 %v2562, 0.5
        %v2579 = vmul.f32 %v2483, %v1833
        %v2580 = vmul.f32 %v2484, %v1834
        %v2581 = vmul.f32 %v2485, %v1835
        %v2582 = vmul.f32 %v2486, %v1836
        %v2583 = vmul.f32 %v2487, %v1837
        %v2584 = vmul.f32 %v2488, %v1838
        %v2585 = vmul.f32 %v2489, %v1839
        %v2586 = vmul.f32 %v2490, %v1840
        %v2587 = vmul.f32 %v2491, %v1841
        %v2588 = vmul.f32 %v2492, %v1842
        %v2589 = vmul.f32 %v2493, %v1843
        %v2590 = vmul.f32 %v2494, %v1844
        %v2591 = vmul.f32 %v2495, %v1845
        %v2592 = vmul.f32 %v2496, %v1846
        %v2593 = vmul.f32 %v2497, %v1847
        %v2594 = vmul.f32 %v2498, %v1848
        %v2595 = vmul.f32 %v2419, %v2499
        %v2596 = vmul.f32 %v2420, %v2500
        %v2597 = vmul.f32 %v2421, %v2501
        %v2598 = vmul.f32 %v2422, %v2502
        %v2599 = vmul.f32 %v2423, %v2503
        %v2600 = vmul.f32 %v2424, %v2504
        %v2601 = vmul.f32 %v2425, %v2505
        %v2602 = vmul.f32 %v2426, %v2506
        %v2603 = vmul.f32 %v2427, %v2507
        %v2604 = vmul.f32 %v2428, %v2508
        %v2605 = vmul.f32 %v2429, %v2509
        %v2606 = vmul.f32 %v2430, %v2510
        %v2607 = vmul.f32 %v2431, %v2511
        %v2608 = vmul.f32 %v2432, %v2512
        %v2609 = vmul.f32 %v2433, %v2513
        %v2610 = vmul.f32 %v2434, %v2514
        %v2611 = vadd.f32 %v2579, %v2595
        %v2612 = vadd.f32 %v2580, %v2596
        %v2613 = vadd.f32 %v2581, %v2597
        %v2614 = vadd.f32 %v2582, %v2598
        %v2615 = vadd.f32 %v2583, %v2599
        %v2616 = vadd.f32 %v2584, %v2600
        %v2617 = vadd.f32 %v2585, %v2601
        %v2618 = vadd.f32 %v2586, %v2602
        %v2619 = vadd.f32 %v2587, %v2603
        %v2620 = vadd.f32 %v2588, %v2604
        %v2621 = vadd.f32 %v2589, %v2605
        %v2622 = vadd.f32 %v2590, %v2606
        %v2623 = vadd.f32 %v2591, %v2607
        %v2624 = vadd.f32 %v2592, %v2608
        %v2625 = vadd.f32 %v2593, %v2609
        %v2626 = vadd.f32 %v2594, %v2610
        %v2627 = vtanh.pop %v2611
        %v2628 = vtanh.pop %v2612
        %v2629 = vtanh.pop %v2613
        %v2630 = vtanh.pop %v2614
        %v2631 = vtanh.pop %v2615
        %v2632 = vtanh.pop %v2616
        %v2633 = vtanh.pop %v2617
        %v2634 = vtanh.pop %v2618
        %v2635 = vtanh.pop %v2619
        %v2636 = vtanh.pop %v2620
        %v2637 = vtanh.pop %v2621
        %v2638 = vtanh.pop %v2622
        %v2639 = vtanh.pop %v2623
        %v2640 = vtanh.pop %v2624
        %v2641 = vtanh.pop %v2625
        %v2642 = vtanh.pop %v2626
        %v2643 = vmul.f32 %v2563, %v2627
        %v2644 = vmul.f32 %v2564, %v2628
        %v2645 = vmul.f32 %v2565, %v2629
        %v2646 = vmul.f32 %v2566, %v2630
        %v2647 = vmul.f32 %v2567, %v2631
        %v2648 = vmul.f32 %v2568, %v2632
        %v2649 = vmul.f32 %v2569, %v2633
        %v2650 = vmul.f32 %v2570, %v2634
        %v2651 = vmul.f32 %v2571, %v2635
        %v2652 = vmul.f32 %v2572, %v2636
        %v2653 = vmul.f32 %v2573, %v2637
        %v2654 = vmul.f32 %v2574, %v2638
        %v2655 = vmul.f32 %v2575, %v2639
        %v2656 = vmul.f32 %v2576, %v2640
        %v2657 = vmul.f32 %v2577, %v2641
        %v2658 = vmul.f32 %v2578, %v2642
        %v2659 = vpack.c.bf16 %v2644, %v2643
        %v2660 = vpack.c.bf16 %v2646, %v2645
        %v2661 = vpack.c.bf16 %v2648, %v2647
        %v2662 = vpack.c.bf16 %v2650, %v2649
        %v2663 = vpack.c.bf16 %v2652, %v2651
        %v2664 = vpack.c.bf16 %v2654, %v2653
        %v2665 = vpack.c.bf16 %v2656, %v2655
        %v2666 = vpack.c.bf16 %v2658, %v2657
        %v2667 = vld [vmem:[%s5] sm:$0xf]
        %v2668 = vld [vmem:[%s5 + $0x4] sm:$0xf]
        %v2669 = vld [vmem:[%s5 + $0x8] sm:$0xf]
        %v2670 = vld [vmem:[%s5 + $0xc] sm:$0xf]
        %v2671 = vld [vmem:[%s5 + $0x10] sm:$0xf]
        %v2672 = vld [vmem:[%s5 + $0x14] sm:$0xf]
        %v2673 = vld [vmem:[%s5 + $0x18] sm:$0xf]
        %v2674 = vld [vmem:[%s5 + $0x1c] sm:$0xf]
        %v2675 = vld [vmem:[%s5 + $0x20] sm:$0xf]
        %v2676 = vld [vmem:[%s5 + $0x24] sm:$0xf]
        %v2677 = vld [vmem:[%s5 + $0x28] sm:$0xf]
        %v2678 = vld [vmem:[%s5 + $0x2c] sm:$0xf]
        %v2679 = vld [vmem:[%s5 + $0x30] sm:$0xf]
        %v2680 = vld [vmem:[%s5 + $0x34] sm:$0xf]
        %v2681 = vld [vmem:[%s5 + $0x38] sm:$0xf]
        %v2682 = vld [vmem:[%s5 + $0x3c] sm:$0xf]
        %v2683 = vld [vmem:[%s6] sm:$0x1]
        %v2685 = vlaneseq
        %v2686 = vshrl.u32 %v2685, 7
        %v2687 = vsub.s32 0, %v2686
        %v2688 = vrot.slane %v2683, %v2687
        %v2706 = vunpack.c.l.b16 %v2667
        %v2707 = vunpack.c.l.b16 %v2668
        %v2708 = vunpack.c.l.b16 %v2669
        %v2709 = vunpack.c.l.b16 %v2670
        %v2710 = vunpack.c.l.b16 %v2671
        %v2711 = vunpack.c.l.b16 %v2672
        %v2712 = vunpack.c.l.b16 %v2673
        %v2713 = vunpack.c.l.b16 %v2674
        %v2714 = vunpack.c.l.b16 %v2675
        %v2715 = vunpack.c.l.b16 %v2676
        %v2716 = vunpack.c.l.b16 %v2677
        %v2717 = vunpack.c.l.b16 %v2678
        %v2718 = vunpack.c.l.b16 %v2679
        %v2719 = vunpack.c.l.b16 %v2680
        %v2720 = vunpack.c.l.b16 %v2681
        %v2721 = vunpack.c.l.b16 %v2682
        %v2722 = vpack.c.b16 %v2707, %v2706
        %v2723 = vpack.c.b16 %v2709, %v2708
        %v2724 = vpack.c.b16 %v2711, %v2710
        %v2725 = vpack.c.b16 %v2713, %v2712
        %v2726 = vpack.c.b16 %v2715, %v2714
        %v2727 = vpack.c.b16 %v2717, %v2716
        %v2728 = vpack.c.b16 %v2719, %v2718
        %v2729 = vpack.c.b16 %v2721, %v2720
        %2738 = vmatprep.subr.bf16.mxu0 0
        %2739 = vmatpush1.bf16.msra.mxu0 %v2729
        %2740 = vmatprep.subr.bf16.mxu0 0
        %2741 = vmatpush1.bf16.msra.mxu0 %v2728
        %2742 = vmatprep.subr.bf16.mxu0 0
        %2743 = vmatpush1.bf16.msra.mxu0 %v2727
        %2744 = vmatprep.subr.bf16.mxu0 0
        %2745 = vmatpush1.bf16.msra.mxu0 %v2726
        %2746 = vmatprep.subr.bf16.mxu0 0
        %2747 = vmatpush1.bf16.msra.mxu0 %v2725
        %2748 = vmatprep.subr.bf16.mxu0 0
        %2749 = vmatpush1.bf16.msra.mxu0 %v2724
        %2750 = vmatprep.subr.bf16.mxu0 0
        %2751 = vmatpush1.bf16.msra.mxu0 %v2723
        %2752 = vmatprep.subr.bf16.mxu0 0
        %2753 = vmatpush1.bf16.msra.mxu0 %v2722
        %2754 = vmatprep.subr.bf16.mxu0 0
        %2755 = vmatpush2.bf16.msra.mxu0 0
        %2756 = vmatprep.subr.bf16.mxu0 0
        %2757 = vmatpush2.bf16.msra.mxu0 0
        %2758 = vmatprep.subr.bf16.mxu0 0
        %2759 = vmatpush2.bf16.msra.mxu0 0
        %2760 = vmatprep.subr.bf16.mxu0 0
        %2761 = vmatpush2.bf16.msra.mxu0 0
        %2762 = vmatprep.subr.bf16.mxu0 0
        %2763 = vmatpush2.bf16.msra.mxu0 0
        %2764 = vmatprep.subr.bf16.mxu0 0
        %2765 = vmatpush2.bf16.msra.mxu0 0
        %2766 = vmatprep.subr.bf16.mxu0 0
        %2767 = vmatpush2.bf16.msra.mxu0 0
        %2768 = vmatprep.subr.bf16.mxu0 0
        %2769 = vmatpush2.bf16.msra.mxu0 0
        %2770 = vmatprep.mubr.bf16.mxu0 0
        %2771 = vmatmul.mubr.bf16.gmra.mxu0 %v2659
        %v2772 = vpop.f32.mrf.mxu0
        %v2773 = vadd.f32 %v2688, %v2772
        %v2774 = vpop.f32.mrf.mxu0
        %v2775 = vpop.f32.mrf.mxu0
        %v2776 = vadd.f32 %v2688, %v2775
        %v2777 = vpop.f32.mrf.mxu0
        %2778 = vmatprep.mubr.bf16.mxu0 0
        %2779 = vmatmul.mubr.bf16.gmra.mxu0 %v2660
        %v2780 = vpop.f32.mrf.mxu0
        %v2781 = vadd.f32 %v2688, %v2780
        %v2782 = vpop.f32.mrf.mxu0
        %v2783 = vpop.f32.mrf.mxu0
        %v2784 = vadd.f32 %v2688, %v2783
        %v2785 = vpop.f32.mrf.mxu0
        %2786 = vmatprep.mubr.bf16.mxu0 0
        %2787 = vmatmul.mubr.bf16.gmra.mxu0 %v2661
        %v2788 = vpop.f32.mrf.mxu0
        %v2789 = vadd.f32 %v2688, %v2788
        %v2790 = vpop.f32.mrf.mxu0
        %v2791 = vpop.f32.mrf.mxu0
        %v2792 = vadd.f32 %v2688, %v2791
        %v2793 = vpop.f32.mrf.mxu0
        %2794 = vmatprep.mubr.bf16.mxu0 0
        %2795 = vmatmul.mubr.bf16.gmra.mxu0 %v2662
        %v2796 = vpop.f32.mrf.mxu0
        %v2797 = vadd.f32 %v2688, %v2796
        %v2798 = vpop.f32.mrf.mxu0
        %v2799 = vpop.f32.mrf.mxu0
        %v2800 = vadd.f32 %v2688, %v2799
        %v2801 = vpop.f32.mrf.mxu0
        %2802 = vmatprep.mubr.bf16.mxu0 0
        %2803 = vmatmul.mubr.bf16.gmra.mxu0 %v2663
        %v2804 = vpop.f32.mrf.mxu0
        %v2805 = vadd.f32 %v2688, %v2804
        %v2806 = vpop.f32.mrf.mxu0
        %v2807 = vpop.f32.mrf.mxu0
        %v2808 = vadd.f32 %v2688, %v2807
        %v2809 = vpop.f32.mrf.mxu0
        %2810 = vmatprep.mubr.bf16.mxu0 0
        %2811 = vmatmul.mubr.bf16.gmra.mxu0 %v2664
        %v2812 = vpop.f32.mrf.mxu0
        %v2813 = vadd.f32 %v2688, %v2812
        %v2814 = vpop.f32.mrf.mxu0
        %v2815 = vpop.f32.mrf.mxu0
        %v2816 = vadd.f32 %v2688, %v2815
        %v2817 = vpop.f32.mrf.mxu0
        %2818 = vmatprep.mubr.bf16.mxu0 0
        %2819 = vmatmul.mubr.bf16.gmra.mxu0 %v2665
        %v2820 = vpop.f32.mrf.mxu0
        %v2821 = vadd.f32 %v2688, %v2820
        %v2822 = vpop.f32.mrf.mxu0
        %v2823 = vpop.f32.mrf.mxu0
        %v2824 = vadd.f32 %v2688, %v2823
        %v2825 = vpop.f32.mrf.mxu0
        %2826 = vmatprep.mubr.bf16.mxu0 0
        %2827 = vmatmul.mubr.bf16.gmra.mxu0 %v2666
        %v2828 = vpop.f32.mrf.mxu0
        %v2829 = vadd.f32 %v2688, %v2828
        %v2830 = vpop.f32.mrf.mxu0
        %v2831 = vpop.f32.mrf.mxu0
        %v2832 = vadd.f32 %v2688, %v2831
        %v2833 = vpop.f32.mrf.mxu0
        %2834 = vdwg.mxu0
        %v2835 = vadd.f32 %v1563, %v2773
        %v2836 = vadd.f32 %v1566, %v2776
        %v2837 = vadd.f32 %v1571, %v2781
        %v2838 = vadd.f32 %v1574, %v2784
        %v2839 = vadd.f32 %v1579, %v2789
        %v2840 = vadd.f32 %v1582, %v2792
        %v2841 = vadd.f32 %v1587, %v2797
        %v2842 = vadd.f32 %v1590, %v2800
        %v2843 = vadd.f32 %v1595, %v2805
        %v2844 = vadd.f32 %v1598, %v2808
        %v2845 = vadd.f32 %v1603, %v2813
        %v2846 = vadd.f32 %v1606, %v2816
        %v2847 = vadd.f32 %v1611, %v2821
        %v2848 = vadd.f32 %v1614, %v2824
        %v2849 = vadd.f32 %v1619, %v2829
        %v2850 = vadd.f32 %v1622, %v2832
        %v2851 = vtanh.pop %v2835
        %v2852 = vtanh.pop %v2836
        %v2853 = vtanh.pop %v2837
        %v2854 = vtanh.pop %v2838
        %v2855 = vtanh.pop %v2839
        %v2856 = vtanh.pop %v2840
        %v2857 = vtanh.pop %v2841
        %v2858 = vtanh.pop %v2842
        %v2859 = vtanh.pop %v2843
        %v2860 = vtanh.pop %v2844
        %v2861 = vtanh.pop %v2845
        %v2862 = vtanh.pop %v2846
        %v2863 = vtanh.pop %v2847
        %v2864 = vtanh.pop %v2848
        %v2865 = vtanh.pop %v2849
        %v2866 = vtanh.pop %v2850
        %v2867 = vadd.f32 %v1627, %v2773
        %v2868 = vadd.f32 %v1630, %v2776
        %v2869 = vadd.f32 %v1635, %v2781
        %v2870 = vadd.f32 %v1638, %v2784
        %v2871 = vadd.f32 %v1643, %v2789
        %v2872 = vadd.f32 %v1646, %v2792
        %v2873 = vadd.f32 %v1651, %v2797
        %v2874 = vadd.f32 %v1654, %v2800
        %v2875 = vadd.f32 %v1659, %v2805
        %v2876 = vadd.f32 %v1662, %v2808
        %v2877 = vadd.f32 %v1667, %v2813
        %v2878 = vadd.f32 %v1670, %v2816
        %v2879 = vadd.f32 %v1675, %v2821
        %v2880 = vadd.f32 %v1678, %v2824
        %v2881 = vadd.f32 %v1683, %v2829
        %v2882 = vadd.f32 %v1686, %v2832
        %v2883 = vtanh.pop %v2867
        %v2884 = vtanh.pop %v2868
        %v2885 = vtanh.pop %v2869
        %v2886 = vtanh.pop %v2870
        %v2887 = vtanh.pop %v2871
        %v2888 = vtanh.pop %v2872
        %v2889 = vtanh.pop %v2873
        %v2890 = vtanh.pop %v2874
        %v2891 = vtanh.pop %v2875
        %v2892 = vtanh.pop %v2876
        %v2893 = vtanh.pop %v2877
        %v2894 = vtanh.pop %v2878
        %v2895 = vtanh.pop %v2879
        %v2896 = vtanh.pop %v2880
        %v2897 = vtanh.pop %v2881
        %v2898 = vtanh.pop %v2882
        %v2899 = vld [vmem:[%s7] sm:$0x1]
        %v2901 = vlaneseq
        %v2902 = vshrl.u32 %v2901, 7
        %v2903 = vsub.s32 0, %v2902
        %v2904 = vrot.slane %v2899, %v2903
        %v2906 = vmul.f32 %v2851, %v2904
        %v2907 = vmul.f32 %v2852, %v2904
        %v2908 = vmul.f32 %v2853, %v2904
        %v2909 = vmul.f32 %v2854, %v2904
        %v2910 = vmul.f32 %v2855, %v2904
        %v2911 = vmul.f32 %v2856, %v2904
        %v2912 = vmul.f32 %v2857, %v2904
        %v2913 = vmul.f32 %v2858, %v2904
        %v2914 = vmul.f32 %v2859, %v2904
        %v2915 = vmul.f32 %v2860, %v2904
        %v2916 = vmul.f32 %v2861, %v2904
        %v2917 = vmul.f32 %v2862, %v2904
        %v2918 = vmul.f32 %v2863, %v2904
        %v2919 = vmul.f32 %v2864, %v2904
        %v2920 = vmul.f32 %v2865, %v2904
        %v2921 = vmul.f32 %v2866, %v2904
        %2922 = vadd.xlane.f32.xlu0 %v2906
        %v2923 = vpop.xlane.xlu0 %2922
        %2924 = vadd.xlane.f32.xlu0 %v2907
        %v2925 = vpop.xlane.xlu0 %2924
        %2926 = vadd.xlane.f32.xlu0 %v2908
        %v2927 = vpop.xlane.xlu0 %2926
        %2928 = vadd.xlane.f32.xlu0 %v2909
        %v2929 = vpop.xlane.xlu0 %2928
        %2930 = vadd.xlane.f32.xlu0 %v2910
        %v2931 = vpop.xlane.xlu0 %2930
        %2932 = vadd.xlane.f32.xlu0 %v2911
        %v2933 = vpop.xlane.xlu0 %2932
        %2934 = vadd.xlane.f32.xlu0 %v2912
        %v2935 = vpop.xlane.xlu0 %2934
        %2936 = vadd.xlane.f32.xlu0 %v2913
        %v2937 = vpop.xlane.xlu0 %2936
        %2938 = vadd.xlane.f32.xlu0 %v2914
        %v2939 = vpop.xlane.xlu0 %2938
        %2940 = vadd.xlane.f32.xlu0 %v2915
        %v2941 = vpop.xlane.xlu0 %2940
        %2942 = vadd.xlane.f32.xlu0 %v2916
        %v2943 = vpop.xlane.xlu0 %2942
        %2944 = vadd.xlane.f32.xlu0 %v2917
        %v2945 = vpop.xlane.xlu0 %2944
        %2946 = vadd.xlane.f32.xlu0 %v2918
        %v2947 = vpop.xlane.xlu0 %2946
        %2948 = vadd.xlane.f32.xlu0 %v2919
        %v2949 = vpop.xlane.xlu0 %2948
        %2950 = vadd.xlane.f32.xlu0 %v2920
        %v2951 = vpop.xlane.xlu0 %2950
        %2952 = vadd.xlane.f32.xlu0 %v2921
        %v2953 = vpop.xlane.xlu0 %2952
        %v2954 = vmul.f32 %v2883, %v2904
        %v2955 = vmul.f32 %v2884, %v2904
        %v2956 = vmul.f32 %v2885, %v2904
        %v2957 = vmul.f32 %v2886, %v2904
        %v2958 = vmul.f32 %v2887, %v2904
        %v2959 = vmul.f32 %v2888, %v2904
        %v2960 = vmul.f32 %v2889, %v2904
        %v2961 = vmul.f32 %v2890, %v2904
        %v2962 = vmul.f32 %v2891, %v2904
        %v2963 = vmul.f32 %v2892, %v2904
        %v2964 = vmul.f32 %v2893, %v2904
        %v2965 = vmul.f32 %v2894, %v2904
        %v2966 = vmul.f32 %v2895, %v2904
        %v2967 = vmul.f32 %v2896, %v2904
        %v2968 = vmul.f32 %v2897, %v2904
        %v2969 = vmul.f32 %v2898, %v2904
        %2970 = vadd.xlane.f32.xlu0 %v2954
        %v2971 = vpop.xlane.xlu0 %2970
        %2972 = vadd.xlane.f32.xlu0 %v2955
        %v2973 = vpop.xlane.xlu0 %2972
        %2974 = vadd.xlane.f32.xlu0 %v2956
        %v2975 = vpop.xlane.xlu0 %2974
        %2976 = vadd.xlane.f32.xlu0 %v2957
        %v2977 = vpop.xlane.xlu0 %2976
        %2978 = vadd.xlane.f32.xlu0 %v2958
        %v2979 = vpop.xlane.xlu0 %2978
        %2980 = vadd.xlane.f32.xlu0 %v2959
        %v2981 = vpop.xlane.xlu0 %2980
        %2982 = vadd.xlane.f32.xlu0 %v2960
        %v2983 = vpop.xlane.xlu0 %2982
        %2984 = vadd.xlane.f32.xlu0 %v2961
        %v2985 = vpop.xlane.xlu0 %2984
        %2986 = vadd.xlane.f32.xlu0 %v2962
        %v2987 = vpop.xlane.xlu0 %2986
        %2988 = vadd.xlane.f32.xlu0 %v2963
        %v2989 = vpop.xlane.xlu0 %2988
        %2990 = vadd.xlane.f32.xlu0 %v2964
        %v2991 = vpop.xlane.xlu0 %2990
        %2992 = vadd.xlane.f32.xlu0 %v2965
        %v2993 = vpop.xlane.xlu0 %2992
        %2994 = vadd.xlane.f32.xlu0 %v2966
        %v2995 = vpop.xlane.xlu0 %2994
        %2996 = vadd.xlane.f32.xlu0 %v2967
        %v2997 = vpop.xlane.xlu0 %2996
        %2998 = vadd.xlane.f32.xlu0 %v2968
        %v2999 = vpop.xlane.xlu0 %2998
        %3000 = vadd.xlane.f32.xlu0 %v2969
        %v3001 = vpop.xlane.xlu0 %3000
        %v3002 = vadd.f32 %v2923, %v2971
        %v3003 = vadd.f32 %v2925, %v2973
        %v3004 = vadd.f32 %v2927, %v2975
        %v3005 = vadd.f32 %v2929, %v2977
        %v3006 = vadd.f32 %v2931, %v2979
        %v3007 = vadd.f32 %v2933, %v2981
        %v3008 = vadd.f32 %v2935, %v2983
        %v3009 = vadd.f32 %v2937, %v2985
        %v3010 = vadd.f32 %v2939, %v2987
        %v3011 = vadd.f32 %v2941, %v2989
        %v3012 = vadd.f32 %v2943, %v2991
        %v3013 = vadd.f32 %v2945, %v2993
        %v3014 = vadd.f32 %v2947, %v2995
        %v3015 = vadd.f32 %v2949, %v2997
        %v3016 = vadd.f32 %v2951, %v2999
        %v3017 = vadd.f32 %v2953, %v3001
        %v3018 = vrcp.pop %v3002
        %v3019 = vrcp.pop %v3003
        %v3020 = vrcp.pop %v3004
        %v3021 = vrcp.pop %v3005
        %v3022 = vrcp.pop %v3006
        %v3023 = vrcp.pop %v3007
        %v3024 = vrcp.pop %v3008
        %v3025 = vrcp.pop %v3009
        %v3026 = vrcp.pop %v3010
        %v3027 = vrcp.pop %v3011
        %v3028 = vrcp.pop %v3012
        %v3029 = vrcp.pop %v3013
        %v3030 = vrcp.pop %v3014
        %v3031 = vrcp.pop %v3015
        %v3032 = vrcp.pop %v3016
        %v3033 = vrcp.pop %v3017
        %v3034 = vmul.f32 %v2923, %v3018
        %v3035 = vmul.f32 %v2925, %v3019
        %v3036 = vmul.f32 %v2927, %v3020
        %v3037 = vmul.f32 %v2929, %v3021
        %v3038 = vmul.f32 %v2931, %v3022
        %v3039 = vmul.f32 %v2933, %v3023
        %v3040 = vmul.f32 %v2935, %v3024
        %v3041 = vmul.f32 %v2937, %v3025
        %v3042 = vmul.f32 %v2939, %v3026
        %v3043 = vmul.f32 %v2941, %v3027
        %v3044 = vmul.f32 %v2943, %v3028
        %v3045 = vmul.f32 %v2945, %v3029
        %v3046 = vmul.f32 %v2947, %v3030
        %v3047 = vmul.f32 %v2949, %v3031
        %v3048 = vmul.f32 %v2951, %v3032
        %v3049 = vmul.f32 %v2953, %v3033
        %v3050 = vmul.f32 %v2971, %v3018
        %v3051 = vmul.f32 %v2973, %v3019
        %v3052 = vmul.f32 %v2975, %v3020
        %v3053 = vmul.f32 %v2977, %v3021
        %v3054 = vmul.f32 %v2979, %v3022
        %v3055 = vmul.f32 %v2981, %v3023
        %v3056 = vmul.f32 %v2983, %v3024
        %v3057 = vmul.f32 %v2985, %v3025
        %v3058 = vmul.f32 %v2987, %v3026
        %v3059 = vmul.f32 %v2989, %v3027
        %v3060 = vmul.f32 %v2991, %v3028
        %v3061 = vmul.f32 %v2993, %v3029
        %v3062 = vmul.f32 %v2995, %v3030
        %v3063 = vmul.f32 %v2997, %v3031
        %v3064 = vmul.f32 %v2999, %v3032
        %v3065 = vmul.f32 %v3001, %v3033
        %v3066 = vmul.f32 %v3034, %v827
        %v3067 = vmul.f32 %v3035, %v828
        %v3068 = vmul.f32 %v3036, %v829
        %v3069 = vmul.f32 %v3037, %v830
        %v3070 = vmul.f32 %v3038, %v831
        %v3071 = vmul.f32 %v3039, %v832
        %v3072 = vmul.f32 %v3040, %v833
        %v3073 = vmul.f32 %v3041, %v834
        %v3074 = vmul.f32 %v3042, %v835
        %v3075 = vmul.f32 %v3043, %v836
        %v3076 = vmul.f32 %v3044, %v837
        %v3077 = vmul.f32 %v3045, %v838
        %v3078 = vmul.f32 %v3046, %v839
        %v3079 = vmul.f32 %v3047, %v840
        %v3080 = vmul.f32 %v3048, %v841
        %v3081 = vmul.f32 %v3049, %v842
        %v3082 = vmul.f32 %v3050, %v843
        %v3083 = vmul.f32 %v3051, %v844
        %v3084 = vmul.f32 %v3052, %v845
        %v3085 = vmul.f32 %v3053, %v846
        %v3086 = vmul.f32 %v3054, %v847
        %v3087 = vmul.f32 %v3055, %v848
        %v3088 = vmul.f32 %v3056, %v849
        %v3089 = vmul.f32 %v3057, %v850
        %v3090 = vmul.f32 %v3058, %v851
        %v3091 = vmul.f32 %v3059, %v852
        %v3092 = vmul.f32 %v3060, %v853
        %v3093 = vmul.f32 %v3061, %v854
        %v3094 = vmul.f32 %v3062, %v855
        %v3095 = vmul.f32 %v3063, %v856
        %v3096 = vmul.f32 %v3064, %v857
        %v3097 = vmul.f32 %v3065, %v858
        %v3098 = vpack.c.bf16 %v3067, %v3066
        %v3099 = vpack.c.bf16 %v3069, %v3068
        %v3100 = vpack.c.bf16 %v3071, %v3070
        %v3101 = vpack.c.bf16 %v3073, %v3072
        %v3102 = vpack.c.bf16 %v3075, %v3074
        %v3103 = vpack.c.bf16 %v3077, %v3076
        %v3104 = vpack.c.bf16 %v3079, %v3078
        %v3105 = vpack.c.bf16 %v3081, %v3080
        %v3106 = vpack.c.bf16 %v3083, %v3082
        %v3107 = vpack.c.bf16 %v3085, %v3084
        %v3108 = vpack.c.bf16 %v3087, %v3086
        %v3109 = vpack.c.bf16 %v3089, %v3088
        %v3110 = vpack.c.bf16 %v3091, %v3090
        %v3111 = vpack.c.bf16 %v3093, %v3092
        %v3112 = vpack.c.bf16 %v3095, %v3094
        %v3113 = vpack.c.bf16 %v3097, %v3096
        %v3114 = vld [vmem:[%s8] sm:$0xf]
        %v3115 = vld [vmem:[%s8 + $0x4] sm:$0xf]
        %v3116 = vld [vmem:[%s8 + $0x8] sm:$0xf]
        %v3117 = vld [vmem:[%s8 + $0xc] sm:$0xf]
        %v3118 = vld [vmem:[%s8 + $0x10] sm:$0xf]
        %v3119 = vld [vmem:[%s8 + $0x14] sm:$0xf]
        %v3120 = vld [vmem:[%s8 + $0x18] sm:$0xf]
        %v3121 = vld [vmem:[%s8 + $0x1c] sm:$0xf]
        %v3122 = vld [vmem:[%s8 + $0x20] sm:$0xf]
        %v3123 = vld [vmem:[%s8 + $0x24] sm:$0xf]
        %v3124 = vld [vmem:[%s8 + $0x28] sm:$0xf]
        %v3125 = vld [vmem:[%s8 + $0x2c] sm:$0xf]
        %v3126 = vld [vmem:[%s8 + $0x30] sm:$0xf]
        %v3127 = vld [vmem:[%s8 + $0x34] sm:$0xf]
        %v3128 = vld [vmem:[%s8 + $0x38] sm:$0xf]
        %v3129 = vld [vmem:[%s8 + $0x3c] sm:$0xf]
        %v3130 = vld [vmem:[%s9] sm:$0x1]
        %v3132 = vlaneseq
        %v3133 = vshrl.u32 %v3132, 7
        %v3134 = vsub.s32 0, %v3133
        %v3135 = vrot.slane %v3130, %v3134
        %v3153 = vunpack.c.l.b16 %v3114
        %v3154 = vunpack.c.l.b16 %v3115
        %v3155 = vunpack.c.l.b16 %v3116
        %v3156 = vunpack.c.l.b16 %v3117
        %v3157 = vunpack.c.l.b16 %v3118
        %v3158 = vunpack.c.l.b16 %v3119
        %v3159 = vunpack.c.l.b16 %v3120
        %v3160 = vunpack.c.l.b16 %v3121
        %v3161 = vunpack.c.l.b16 %v3122
        %v3162 = vunpack.c.l.b16 %v3123
        %v3163 = vunpack.c.l.b16 %v3124
        %v3164 = vunpack.c.l.b16 %v3125
        %v3165 = vunpack.c.l.b16 %v3126
        %v3166 = vunpack.c.l.b16 %v3127
        %v3167 = vunpack.c.l.b16 %v3128
        %v3168 = vunpack.c.l.b16 %v3129
        %v3169 = vpack.c.b16 %v3154, %v3153
        %v3170 = vpack.c.b16 %v3156, %v3155
        %v3171 = vpack.c.b16 %v3158, %v3157
        %v3172 = vpack.c.b16 %v3160, %v3159
        %v3173 = vpack.c.b16 %v3162, %v3161
        %v3174 = vpack.c.b16 %v3164, %v3163
        %v3175 = vpack.c.b16 %v3166, %v3165
        %v3176 = vpack.c.b16 %v3168, %v3167
        %3185 = vmatprep.subr.bf16.mxu0 0
        %3186 = vmatpush1.bf16.msra.mxu0 %v3176
        %3187 = vmatprep.subr.bf16.mxu0 0
        %3188 = vmatpush1.bf16.msra.mxu0 %v3175
        %3189 = vmatprep.subr.bf16.mxu0 0
        %3190 = vmatpush1.bf16.msra.mxu0 %v3174
        %3191 = vmatprep.subr.bf16.mxu0 0
        %3192 = vmatpush1.bf16.msra.mxu0 %v3173
        %3193 = vmatprep.subr.bf16.mxu0 0
        %3194 = vmatpush1.bf16.msra.mxu0 %v3172
        %3195 = vmatprep.subr.bf16.mxu0 0
        %3196 = vmatpush1.bf16.msra.mxu0 %v3171
        %3197 = vmatprep.subr.bf16.mxu0 0
        %3198 = vmatpush1.bf16.msra.mxu0 %v3170
        %3199 = vmatprep.subr.bf16.mxu0 0
        %3200 = vmatpush1.bf16.msra.mxu0 %v3169
        %3201 = vmatprep.subr.bf16.mxu0 0
        %3202 = vmatpush2.bf16.msra.mxu0 0
        %3203 = vmatprep.subr.bf16.mxu0 0
        %3204 = vmatpush2.bf16.msra.mxu0 0
        %3205 = vmatprep.subr.bf16.mxu0 0
        %3206 = vmatpush2.bf16.msra.mxu0 0
        %3207 = vmatprep.subr.bf16.mxu0 0
        %3208 = vmatpush2.bf16.msra.mxu0 0
        %3209 = vmatprep.subr.bf16.mxu0 0
        %3210 = vmatpush2.bf16.msra.mxu0 0
        %3211 = vmatprep.subr.bf16.mxu0 0
        %3212 = vmatpush2.bf16.msra.mxu0 0
        %3213 = vmatprep.subr.bf16.mxu0 0
        %3214 = vmatpush2.bf16.msra.mxu0 0
        %3215 = vmatprep.subr.bf16.mxu0 0
        %3216 = vmatpush2.bf16.msra.mxu0 0
        %3217 = vmatprep.mubr.bf16.mxu0 0
        %3218 = vmatmul.mubr.bf16.gmra.mxu0 %v3098
        %v3219 = vpop.f32.mrf.mxu0
        %v3220 = vadd.f32 %v3135, %v3219
        %v3221 = vpop.f32.mrf.mxu0
        %v3222 = vpop.f32.mrf.mxu0
        %v3223 = vadd.f32 %v3135, %v3222
        %v3224 = vpop.f32.mrf.mxu0
        %3225 = vmatprep.mubr.bf16.mxu0 0
        %3226 = vmatmul.mubr.bf16.gmra.mxu0 %v3099
        %v3227 = vpop.f32.mrf.mxu0
        %v3228 = vadd.f32 %v3135, %v3227
        %v3229 = vpop.f32.mrf.mxu0
        %v3230 = vpop.f32.mrf.mxu0
        %v3231 = vadd.f32 %v3135, %v3230
        %v3232 = vpop.f32.mrf.mxu0
        %3233 = vmatprep.mubr.bf16.mxu0 0
        %3234 = vmatmul.mubr.bf16.gmra.mxu0 %v3100
        %v3235 = vpop.f32.mrf.mxu0
        %v3236 = vadd.f32 %v3135, %v3235
        %v3237 = vpop.f32.mrf.mxu0
        %v3238 = vpop.f32.mrf.mxu0
        %v3239 = vadd.f32 %v3135, %v3238
        %v3240 = vpop.f32.mrf.mxu0
        %3241 = vmatprep.mubr.bf16.mxu0 0
        %3242 = vmatmul.mubr.bf16.gmra.mxu0 %v3101
        %v3243 = vpop.f32.mrf.mxu0
        %v3244 = vadd.f32 %v3135, %v3243
        %v3245 = vpop.f32.mrf.mxu0
        %v3246 = vpop.f32.mrf.mxu0
        %v3247 = vadd.f32 %v3135, %v3246
        %v3248 = vpop.f32.mrf.mxu0
        %3249 = vmatprep.mubr.bf16.mxu0 0
        %3250 = vmatmul.mubr.bf16.gmra.mxu0 %v3102
        %v3251 = vpop.f32.mrf.mxu0
        %v3252 = vadd.f32 %v3135, %v3251
        %v3253 = vpop.f32.mrf.mxu0
        %v3254 = vpop.f32.mrf.mxu0
        %v3255 = vadd.f32 %v3135, %v3254
        %v3256 = vpop.f32.mrf.mxu0
        %3257 = vmatprep.mubr.bf16.mxu0 0
        %3258 = vmatmul.mubr.bf16.gmra.mxu0 %v3103
        %v3259 = vpop.f32.mrf.mxu0
        %v3260 = vadd.f32 %v3135, %v3259
        %v3261 = vpop.f32.mrf.mxu0
        %v3262 = vpop.f32.mrf.mxu0
        %v3263 = vadd.f32 %v3135, %v3262
        %v3264 = vpop.f32.mrf.mxu0
        %3265 = vmatprep.mubr.bf16.mxu0 0
        %3266 = vmatmul.mubr.bf16.gmra.mxu0 %v3104
        %v3267 = vpop.f32.mrf.mxu0
        %v3268 = vadd.f32 %v3135, %v3267
        %v3269 = vpop.f32.mrf.mxu0
        %v3270 = vpop.f32.mrf.mxu0
        %v3271 = vadd.f32 %v3135, %v3270
        %v3272 = vpop.f32.mrf.mxu0
        %3273 = vmatprep.mubr.bf16.mxu0 0
        %3274 = vmatmul.mubr.bf16.gmra.mxu0 %v3105
        %v3275 = vpop.f32.mrf.mxu0
        %v3276 = vadd.f32 %v3135, %v3275
        %v3277 = vpop.f32.mrf.mxu0
        %v3278 = vpop.f32.mrf.mxu0
        %v3279 = vadd.f32 %v3135, %v3278
        %v3280 = vpop.f32.mrf.mxu0
        %3281 = vmatprep.mubr.bf16.mxu0 0
        %3282 = vmatmul.mubr.bf16.gmra.mxu0 %v3106
        %v3283 = vpop.f32.mrf.mxu0
        %v3284 = vadd.f32 %v3135, %v3283
        %v3285 = vpop.f32.mrf.mxu0
        %v3286 = vpop.f32.mrf.mxu0
        %v3287 = vadd.f32 %v3135, %v3286
        %v3288 = vpop.f32.mrf.mxu0
        %3289 = vmatprep.mubr.bf16.mxu0 0
        %3290 = vmatmul.mubr.bf16.gmra.mxu0 %v3107
        %v3291 = vpop.f32.mrf.mxu0
        %v3292 = vadd.f32 %v3135, %v3291
        %v3293 = vpop.f32.mrf.mxu0
        %v3294 = vpop.f32.mrf.mxu0
        %v3295 = vadd.f32 %v3135, %v3294
        %v3296 = vpop.f32.mrf.mxu0
        %3297 = vmatprep.mubr.bf16.mxu0 0
        %3298 = vmatmul.mubr.bf16.gmra.mxu0 %v3108
        %v3299 = vpop.f32.mrf.mxu0
        %v3300 = vadd.f32 %v3135, %v3299
        %v3301 = vpop.f32.mrf.mxu0
        %v3302 = vpop.f32.mrf.mxu0
        %v3303 = vadd.f32 %v3135, %v3302
        %v3304 = vpop.f32.mrf.mxu0
        %3305 = vmatprep.mubr.bf16.mxu0 0
        %3306 = vmatmul.mubr.bf16.gmra.mxu0 %v3109
        %v3307 = vpop.f32.mrf.mxu0
        %v3308 = vadd.f32 %v3135, %v3307
        %v3309 = vpop.f32.mrf.mxu0
        %v3310 = vpop.f32.mrf.mxu0
        %v3311 = vadd.f32 %v3135, %v3310
        %v3312 = vpop.f32.mrf.mxu0
        %3313 = vmatprep.mubr.bf16.mxu0 0
        %3314 = vmatmul.mubr.bf16.gmra.mxu0 %v3110
        %v3315 = vpop.f32.mrf.mxu0
        %v3316 = vadd.f32 %v3135, %v3315
        %v3317 = vpop.f32.mrf.mxu0
        %v3318 = vpop.f32.mrf.mxu0
        %v3319 = vadd.f32 %v3135, %v3318
        %v3320 = vpop.f32.mrf.mxu0
        %3321 = vmatprep.mubr.bf16.mxu0 0
        %3322 = vmatmul.mubr.bf16.gmra.mxu0 %v3111
        %v3323 = vpop.f32.mrf.mxu0
        %v3324 = vadd.f32 %v3135, %v3323
        %v3325 = vpop.f32.mrf.mxu0
        %v3326 = vpop.f32.mrf.mxu0
        %v3327 = vadd.f32 %v3135, %v3326
        %v3328 = vpop.f32.mrf.mxu0
        %3329 = vmatprep.mubr.bf16.mxu0 0
        %3330 = vmatmul.mubr.bf16.gmra.mxu0 %v3112
        %v3331 = vpop.f32.mrf.mxu0
        %v3332 = vadd.f32 %v3135, %v3331
        %v3333 = vpop.f32.mrf.mxu0
        %v3334 = vpop.f32.mrf.mxu0
        %v3335 = vadd.f32 %v3135, %v3334
        %v3336 = vpop.f32.mrf.mxu0
        %3337 = vmatprep.mubr.bf16.mxu0 0
        %3338 = vmatmul.mubr.bf16.gmra.mxu0 %v3113
        %v3339 = vpop.f32.mrf.mxu0
        %v3340 = vadd.f32 %v3135, %v3339
        %v3341 = vpop.f32.mrf.mxu0
        %v3342 = vpop.f32.mrf.mxu0
        %v3343 = vadd.f32 %v3135, %v3342
        %v3344 = vpop.f32.mrf.mxu0
        %3345 = vdwg.mxu0
        %v3346 = vtanh.pop %v3220
        %v3347 = vtanh.pop %v3223
        %v3348 = vtanh.pop %v3228
        %v3349 = vtanh.pop %v3231
        %v3350 = vtanh.pop %v3236
        %v3351 = vtanh.pop %v3239
        %v3352 = vtanh.pop %v3244
        %v3353 = vtanh.pop %v3247
        %v3354 = vtanh.pop %v3252
        %v3355 = vtanh.pop %v3255
        %v3356 = vtanh.pop %v3260
        %v3357 = vtanh.pop %v3263
        %v3358 = vtanh.pop %v3268
        %v3359 = vtanh.pop %v3271
        %v3360 = vtanh.pop %v3276
        %v3361 = vtanh.pop %v3279
        %v3362 = vtanh.pop %v3284
        %v3363 = vtanh.pop %v3287
        %v3364 = vtanh.pop %v3292
        %v3365 = vtanh.pop %v3295
        %v3366 = vtanh.pop %v3300
        %v3367 = vtanh.pop %v3303
        %v3368 = vtanh.pop %v3308
        %v3369 = vtanh.pop %v3311
        %v3370 = vtanh.pop %v3316
        %v3371 = vtanh.pop %v3319
        %v3372 = vtanh.pop %v3324
        %v3373 = vtanh.pop %v3327
        %v3374 = vtanh.pop %v3332
        %v3375 = vtanh.pop %v3335
        %v3376 = vtanh.pop %v3340
        %v3377 = vtanh.pop %v3343
        %v3378 = vpack.c.bf16 %v3347, %v3346
        %v3379 = vpack.c.bf16 %v3363, %v3362
        %v3380 = vpack.c.bf16 %v3349, %v3348
        %v3381 = vpack.c.bf16 %v3365, %v3364
        %v3382 = vpack.c.bf16 %v3351, %v3350
        %v3383 = vpack.c.bf16 %v3367, %v3366
        %v3384 = vpack.c.bf16 %v3353, %v3352
        %v3385 = vpack.c.bf16 %v3369, %v3368
        %v3386 = vpack.c.bf16 %v3355, %v3354
        %v3387 = vpack.c.bf16 %v3371, %v3370
        %v3388 = vpack.c.bf16 %v3357, %v3356
        %v3389 = vpack.c.bf16 %v3373, %v3372
        %v3390 = vpack.c.bf16 %v3359, %v3358
        %v3391 = vpack.c.bf16 %v3375, %v3374
        %v3392 = vpack.c.bf16 %v3361, %v3360
        %v3393 = vpack.c.bf16 %v3377, %v3376
        %v3394 = vld [vmem:[%s10] sm:$0xff]
        %v3395 = vld [vmem:[%s10 + $0x8] sm:$0xff]
        %v3396 = vld [vmem:[%s10 + $0x10] sm:$0xff]
        %v3397 = vld [vmem:[%s10 + $0x18] sm:$0xff]
        %v3398 = vld [vmem:[%s10 + $0x20] sm:$0xff]
        %v3399 = vld [vmem:[%s10 + $0x28] sm:$0xff]
        %v3400 = vld [vmem:[%s10 + $0x30] sm:$0xff]
        %v3401 = vld [vmem:[%s10 + $0x38] sm:$0xff]
        %v3402 = vld [vmem:[%s10 + $0x40] sm:$0xff]
        %v3403 = vld [vmem:[%s10 + $0x48] sm:$0xff]
        %v3404 = vld [vmem:[%s10 + $0x50] sm:$0xff]
        %v3405 = vld [vmem:[%s10 + $0x58] sm:$0xff]
        %v3406 = vld [vmem:[%s10 + $0x60] sm:$0xff]
        %v3407 = vld [vmem:[%s10 + $0x68] sm:$0xff]
        %v3408 = vld [vmem:[%s10 + $0x70] sm:$0xff]
        %v3409 = vld [vmem:[%s10 + $0x78] sm:$0xff]
        %v3410 = vld [vmem:[%s10 + $0x80] sm:$0xff]
        %v3411 = vld [vmem:[%s10 + $0x88] sm:$0xff]
        %v3412 = vld [vmem:[%s10 + $0x90] sm:$0xff]
        %v3413 = vld [vmem:[%s10 + $0x98] sm:$0xff]
        %v3414 = vld [vmem:[%s10 + $0xa0] sm:$0xff]
        %v3415 = vld [vmem:[%s10 + $0xa8] sm:$0xff]
        %v3416 = vld [vmem:[%s10 + $0xb0] sm:$0xff]
        %v3417 = vld [vmem:[%s10 + $0xb8] sm:$0xff]
        %v3418 = vld [vmem:[%s10 + $0xc0] sm:$0xff]
        %v3419 = vld [vmem:[%s10 + $0xc8] sm:$0xff]
        %v3420 = vld [vmem:[%s10 + $0xd0] sm:$0xff]
        %v3421 = vld [vmem:[%s10 + $0xd8] sm:$0xff]
        %v3422 = vld [vmem:[%s10 + $0xe0] sm:$0xff]
        %v3423 = vld [vmem:[%s10 + $0xe8] sm:$0xff]
        %v3424 = vld [vmem:[%s10 + $0xf0] sm:$0xff]
        %v3425 = vld [vmem:[%s10 + $0xf8] sm:$0xff]
        %v3426 = vld [vmem:[%s10 + $0x100] sm:$0xff]
        %v3427 = vld [vmem:[%s10 + $0x108] sm:$0xff]
        %v3428 = vld [vmem:[%s10 + $0x110] sm:$0xff]
        %v3429 = vld [vmem:[%s10 + $0x118] sm:$0xff]
        %v3430 = vld [vmem:[%s10 + $0x120] sm:$0xff]
        %v3431 = vld [vmem:[%s10 + $0x128] sm:$0xff]
        %v3432 = vld [vmem:[%s10 + $0x130] sm:$0xff]
        %v3433 = vld [vmem:[%s10 + $0x138] sm:$0xff]
        %v3434 = vld [vmem:[%s10 + $0x140] sm:$0xff]
        %v3435 = vld [vmem:[%s10 + $0x148] sm:$0xff]
        %v3436 = vld [vmem:[%s10 + $0x150] sm:$0xff]
        %v3437 = vld [vmem:[%s10 + $0x158] sm:$0xff]
        %v3438 = vld [vmem:[%s10 + $0x160] sm:$0xff]
        %v3439 = vld [vmem:[%s10 + $0x168] sm:$0xff]
        %v3440 = vld [vmem:[%s10 + $0x170] sm:$0xff]
        %v3441 = vld [vmem:[%s10 + $0x178] sm:$0xff]
        %v3442 = vld [vmem:[%s10 + $0x180] sm:$0xff]
        %v3443 = vld [vmem:[%s10 + $0x188] sm:$0xff]
        %v3444 = vld [vmem:[%s10 + $0x190] sm:$0xff]
        %v3445 = vld [vmem:[%s10 + $0x198] sm:$0xff]
        %v3446 = vld [vmem:[%s10 + $0x1a0] sm:$0xff]
        %v3447 = vld [vmem:[%s10 + $0x1a8] sm:$0xff]
        %v3448 = vld [vmem:[%s10 + $0x1b0] sm:$0xff]
        %v3449 = vld [vmem:[%s10 + $0x1b8] sm:$0xff]
        %v3450 = vld [vmem:[%s10 + $0x1c0] sm:$0xff]
        %v3451 = vld [vmem:[%s10 + $0x1c8] sm:$0xff]
        %v3452 = vld [vmem:[%s10 + $0x1d0] sm:$0xff]
        %v3453 = vld [vmem:[%s10 + $0x1d8] sm:$0xff]
        %v3454 = vld [vmem:[%s10 + $0x1e0] sm:$0xff]
        %v3455 = vld [vmem:[%s10 + $0x1e8] sm:$0xff]
        %v3456 = vld [vmem:[%s10 + $0x1f0] sm:$0xff]
        %v3457 = vld [vmem:[%s10 + $0x1f8] sm:$0xff]
        %v3458 = vld [vmem:[%s11] sm:$0xf]
        %v3460 = vlaneseq
        %v3461 = vshrl.u32 %v3460, 7
        %v3462 = vsub.s32 0, %v3461
        %v3463 = vrot.slane %v3458, %v3462
        %v3464 = vlaneseq
        %v3465 = vshrl.u32 %v3464, 7
        %v3466 = vsub.s32 1, %v3465
        %v3467 = vrot.slane %v3458, %v3466
        %v3468 = vlaneseq
        %v3469 = vshrl.u32 %v3468, 7
        %v3470 = vsub.s32 2, %v3469
        %v3471 = vrot.slane %v3458, %v3470
        %v3472 = vlaneseq
        %v3473 = vshrl.u32 %v3472, 7
        %v3474 = vsub.s32 3, %v3473
        %v3475 = vrot.slane %v3458, %v3474
        %v3544 = vunpack.c.l.b16 %v3394
        %v3545 = vunpack.c.h.b16 %v3394
        %v3546 = vunpack.c.l.b16 %v3395
        %v3547 = vunpack.c.h.b16 %v3395
        %v3548 = vunpack.c.l.b16 %v3396
        %v3549 = vunpack.c.h.b16 %v3396
        %v3550 = vunpack.c.l.b16 %v3397
        %v3551 = vunpack.c.h.b16 %v3397
        %v3552 = vunpack.c.l.b16 %v3398
        %v3553 = vunpack.c.h.b16 %v3398
        %v3554 = vunpack.c.l.b16 %v3399
        %v3555 = vunpack.c.h.b16 %v3399
        %v3556 = vunpack.c.l.b16 %v3400
        %v3557 = vunpack.c.h.b16 %v3400
        %v3558 = vunpack.c.l.b16 %v3401
        %v3559 = vunpack.c.h.b16 %v3401
        %v3560 = vunpack.c.l.b16 %v3402
        %v3561 = vunpack.c.h.b16 %v3402
        %v3562 = vunpack.c.l.b16 %v3403
        %v3563 = vunpack.c.h.b16 %v3403
        %v3564 = vunpack.c.l.b16 %v3404
        %v3565 = vunpack.c.h.b16 %v3404
        %v3566 = vunpack.c.l.b16 %v3405
        %v3567 = vunpack.c.h.b16 %v3405
        %v3568 = vunpack.c.l.b16 %v3406
        %v3569 = vunpack.c.h.b16 %v3406
        %v3570 = vunpack.c.l.b16 %v3407
        %v3571 = vunpack.c.h.b16 %v3407
        %v3572 = vunpack.c.l.b16 %v3408
        %v3573 = vunpack.c.h.b16 %v3408
        %v3574 = vunpack.c.l.b16 %v3409
        %v3575 = vunpack.c.h.b16 %v3409
        %v3576 = vunpack.c.l.b16 %v3410
        %v3577 = vunpack.c.h.b16 %v3410
        %v3578 = vunpack.c.l.b16 %v3411
        %v3579 = vunpack.c.h.b16 %v3411
        %v3580 = vunpack.c.l.b16 %v3412
        %v3581 = vunpack.c.h.b16 %v3412
        %v3582 = vunpack.c.l.b16 %v3413
        %v3583 = vunpack.c.h.b16 %v3413
        %v3584 = vunpack.c.l.b16 %v3414
        %v3585 = vunpack.c.h.b16 %v3414
        %v3586 = vunpack.c.l.b16 %v3415
        %v3587 = vunpack.c.h.b16 %v3415
        %v3588 = vunpack.c.l.b16 %v3416
        %v3589 = vunpack.c.h.b16 %v3416
        %v3590 = vunpack.c.l.b16 %v3417
        %v3591 = vunpack.c.h.b16 %v3417
        %v3592 = vunpack.c.l.b16 %v3418
        %v3593 = vunpack.c.h.b16 %v3418
        %v3594 = vunpack.c.l.b16 %v3419
        %v3595 = vunpack.c.h.b16 %v3419
        %v3596 = vunpack.c.l.b16 %v3420
        %v3597 = vunpack.c.h.b16 %v3420
        %v3598 = vunpack.c.l.b16 %v3421
        %v3599 = vunpack.c.h.b16 %v3421
        %v3600 = vunpack.c.l.b16 %v3422
        %v3601 = vunpack.c.h.b16 %v3422
        %v3602 = vunpack.c.l.b16 %v3423
        %v3603 = vunpack.c.h.b16 %v3423
        %v3604 = vunpack.c.l.b16 %v3424
        %v3605 = vunpack.c.h.b16 %v3424
        %v3606 = vunpack.c.l.b16 %v3425
        %v3607 = vunpack.c.h.b16 %v3425
        %v3608 = vunpack.c.l.b16 %v3426
        %v3609 = vunpack.c.h.b16 %v3426
        %v3610 = vunpack.c.l.b16 %v3427
        %v3611 = vunpack.c.h.b16 %v3427
        %v3612 = vunpack.c.l.b16 %v3428
        %v3613 = vunpack.c.h.b16 %v3428
        %v3614 = vunpack.c.l.b16 %v3429
        %v3615 = vunpack.c.h.b16 %v3429
        %v3616 = vunpack.c.l.b16 %v3430
        %v3617 = vunpack.c.h.b16 %v3430
        %v3618 = vunpack.c.l.b16 %v3431
        %v3619 = vunpack.c.h.b16 %v3431
        %v3620 = vunpack.c.l.b16 %v3432
        %v3621 = vunpack.c.h.b16 %v3432
        %v3622 = vunpack.c.l.b16 %v3433
        %v3623 = vunpack.c.h.b16 %v3433
        %v3624 = vunpack.c.l.b16 %v3434
        %v3625 = vunpack.c.h.b16 %v3434
        %v3626 = vunpack.c.l.b16 %v3435
        %v3627 = vunpack.c.h.b16 %v3435
        %v3628 = vunpack.c.l.b16 %v3436
        %v3629 = vunpack.c.h.b16 %v3436
        %v3630 = vunpack.c.l.b16 %v3437
        %v3631 = vunpack.c.h.b16 %v3437
        %v3632 = vunpack.c.l.b16 %v3438
        %v3633 = vunpack.c.h.b16 %v3438
        %v3634 = vunpack.c.l.b16 %v3439
        %v3635 = vunpack.c.h.b16 %v3439
        %v3636 = vunpack.c.l.b16 %v3440
        %v3637 = vunpack.c.h.b16 %v3440
        %v3638 = vunpack.c.l.b16 %v3441
        %v3639 = vunpack.c.h.b16 %v3441
        %v3640 = vunpack.c.l.b16 %v3442
        %v3641 = vunpack.c.h.b16 %v3442
        %v3642 = vunpack.c.l.b16 %v3443
        %v3643 = vunpack.c.h.b16 %v3443
        %v3644 = vunpack.c.l.b16 %v3444
        %v3645 = vunpack.c.h.b16 %v3444
        %v3646 = vunpack.c.l.b16 %v3445
        %v3647 = vunpack.c.h.b16 %v3445
        %v3648 = vunpack.c.l.b16 %v3446
        %v3649 = vunpack.c.h.b16 %v3446
        %v3650 = vunpack.c.l.b16 %v3447
        %v3651 = vunpack.c.h.b16 %v3447
        %v3652 = vunpack.c.l.b16 %v3448
        %v3653 = vunpack.c.h.b16 %v3448
        %v3654 = vunpack.c.l.b16 %v3449
        %v3655 = vunpack.c.h.b16 %v3449
        %v3656 = vunpack.c.l.b16 %v3450
        %v3657 = vunpack.c.h.b16 %v3450
        %v3658 = vunpack.c.l.b16 %v3451
        %v3659 = vunpack.c.h.b16 %v3451
        %v3660 = vunpack.c.l.b16 %v3452
        %v3661 = vunpack.c.h.b16 %v3452
        %v3662 = vunpack.c.l.b16 %v3453
        %v3663 = vunpack.c.h.b16 %v3453
        %v3664 = vunpack.c.l.b16 %v3454
        %v3665 = vunpack.c.h.b16 %v3454
        %v3666 = vunpack.c.l.b16 %v3455
        %v3667 = vunpack.c.h.b16 %v3455
        %v3668 = vunpack.c.l.b16 %v3456
        %v3669 = vunpack.c.h.b16 %v3456
        %v3670 = vunpack.c.l.b16 %v3457
        %v3671 = vunpack.c.h.b16 %v3457
        %v3672 = vpack.c.b16 %v3548, %v3544
        %v3673 = vpack.c.b16 %v3549, %v3545
        %v3674 = vpack.c.b16 %v3550, %v3546
        %v3675 = vpack.c.b16 %v3551, %v3547
        %v3676 = vpack.c.b16 %v3556, %v3552
        %v3677 = vpack.c.b16 %v3557, %v3553
        %v3678 = vpack.c.b16 %v3558, %v3554
        %v3679 = vpack.c.b16 %v3559, %v3555
        %v3680 = vpack.c.b16 %v3564, %v3560
        %v3681 = vpack.c.b16 %v3565, %v3561
        %v3682 = vpack.c.b16 %v3566, %v3562
        %v3683 = vpack.c.b16 %v3567, %v3563
        %v3684 = vpack.c.b16 %v3572, %v3568
        %v3685 = vpack.c.b16 %v3573, %v3569
        %v3686 = vpack.c.b16 %v3574, %v3570
        %v3687 = vpack.c.b16 %v3575, %v3571
        %v3688 = vpack.c.b16 %v3580, %v3576
        %v3689 = vpack.c.b16 %v3581, %v3577
        %v3690 = vpack.c.b16 %v3582, %v3578
        %v3691 = vpack.c.b16 %v3583, %v3579
        %v3692 = vpack.c.b16 %v3588, %v3584
        %v3693 = vpack.c.b16 %v3589, %v3585
        %v3694 = vpack.c.b16 %v3590, %v3586
        %v3695 = vpack.c.b16 %v3591, %v3587
        %v3696 = vpack.c.b16 %v3596, %v3592
        %v3697 = vpack.c.b16 %v3597, %v3593
        %v3698 = vpack.c.b16 %v3598, %v3594
        %v3699 = vpack.c.b16 %v3599, %v3595
        %v3700 = vpack.c.b16 %v3604, %v3600
        %v3701 = vpack.c.b16 %v3605, %v3601
        %v3702 = vpack.c.b16 %v3606, %v3602
        %v3703 = vpack.c.b16 %v3607, %v3603
        %v3704 = vpack.c.b16 %v3612, %v3608
        %v3705 = vpack.c.b16 %v3613, %v3609
        %v3706 = vpack.c.b16 %v3614, %v3610
        %v3707 = vpack.c.b16 %v3615, %v3611
        %v3708 = vpack.c.b16 %v3620, %v3616
        %v3709 = vpack.c.b16 %v3621, %v3617
        %v3710 = vpack.c.b16 %v3622, %v3618
        %v3711 = vpack.c.b16 %v3623, %v3619
        %v3712 = vpack.c.b16 %v3628, %v3624
        %v3713 = vpack.c.b16 %v3629, %v3625
        %v3714 = vpack.c.b16 %v3630, %v3626
        %v3715 = vpack.c.b16 %v3631, %v3627
        %v3716 = vpack.c.b16 %v3636, %v3632
        %v3717 = vpack.c.b16 %v3637, %v3633
        %v3718 = vpack.c.b16 %v3638, %v3634
        %v3719 = vpack.c.b16 %v3639, %v3635
        %v3720 = vpack.c.b16 %v3644, %v3640
        %v3721 = vpack.c.b16 %v3645, %v3641
        %v3722 = vpack.c.b16 %v3646, %v3642
        %v3723 = vpack.c.b16 %v3647, %v3643
        %v3724 = vpack.c.b16 %v3652, %v3648
        %v3725 = vpack.c.b16 %v3653, %v3649
        %v3726 = vpack.c.b16 %v3654, %v3650
        %v3727 = vpack.c.b16 %v3655, %v3651
        %v3728 = vpack.c.b16 %v3660, %v3656
        %v3729 = vpack.c.b16 %v3661, %v3657
        %v3730 = vpack.c.b16 %v3662, %v3658
        %v3731 = vpack.c.b16 %v3663, %v3659
        %v3732 = vpack.c.b16 %v3668, %v3664
        %v3733 = vpack.c.b16 %v3669, %v3665
        %v3734 = vpack.c.b16 %v3670, %v3666
        %v3735 = vpack.c.b16 %v3671, %v3667
        %3800 = vmatprep.subr.bf16.mxu0 %v3701
        %3801 = vmatpush1.bf16.msra.mxu0 %v3700
        %3802 = vmatprep.subr.bf16.mxu0 %v3697
        %3803 = vmatpush1.bf16.msra.mxu0 %v3696
        %3804 = vmatprep.subr.bf16.mxu0 %v3693
        %3805 = vmatpush1.bf16.msra.mxu0 %v3692
        %3806 = vmatprep.subr.bf16.mxu0 %v3689
        %3807 = vmatpush1.bf16.msra.mxu0 %v3688
        %3808 = vmatprep.subr.bf16.mxu0 %v3685
        %3809 = vmatpush1.bf16.msra.mxu0 %v3684
        %3810 = vmatprep.subr.bf16.mxu0 %v3681
        %3811 = vmatpush1.bf16.msra.mxu0 %v3680
        %3812 = vmatprep.subr.bf16.mxu0 %v3677
        %3813 = vmatpush1.bf16.msra.mxu0 %v3676
        %3814 = vmatprep.subr.bf16.mxu0 %v3673
        %3815 = vmatpush1.bf16.msra.mxu0 %v3672
        %3816 = vmatprep.subr.bf16.mxu0 %v3733
        %3817 = vmatpush2.bf16.msra.mxu0 %v3732
        %3818 = vmatprep.subr.bf16.mxu0 %v3729
        %3819 = vmatpush2.bf16.msra.mxu0 %v3728
        %3820 = vmatprep.subr.bf16.mxu0 %v3725
        %3821 = vmatpush2.bf16.msra.mxu0 %v3724
        %3822 = vmatprep.subr.bf16.mxu0 %v3721
        %3823 = vmatpush2.bf16.msra.mxu0 %v3720
        %3824 = vmatprep.subr.bf16.mxu0 %v3717
        %3825 = vmatpush2.bf16.msra.mxu0 %v3716
        %3826 = vmatprep.subr.bf16.mxu0 %v3713
        %3827 = vmatpush2.bf16.msra.mxu0 %v3712
        %3828 = vmatprep.subr.bf16.mxu0 %v3709
        %3829 = vmatpush2.bf16.msra.mxu0 %v3708
        %3830 = vmatprep.subr.bf16.mxu0 %v3705
        %3831 = vmatpush2.bf16.msra.mxu0 %v3704
        %3832 = vmatprep.mubr.bf16.mxu0 %v3379
        %3833 = vmatmul.mubr.bf16.gmra.mxu0 %v3378
        %v3834 = vpop.f32.mrf.mxu0
        %v3835 = vadd.f32 %v3463, %v3834
        %v3836 = vpop.f32.mrf.mxu0
        %v3837 = vadd.f32 %v3467, %v3836
        %v3838 = vpop.f32.mrf.mxu0
        %v3839 = vadd.f32 %v3463, %v3838
        %v3840 = vpop.f32.mrf.mxu0
        %v3841 = vadd.f32 %v3467, %v3840
        %3842 = vmatprep.mubr.bf16.mxu0 %v3381
        %3843 = vmatmul.mubr.bf16.gmra.mxu0 %v3380
        %v3844 = vpop.f32.mrf.mxu0
        %v3845 = vadd.f32 %v3463, %v3844
        %v3846 = vpop.f32.mrf.mxu0
        %v3847 = vadd.f32 %v3467, %v3846
        %v3848 = vpop.f32.mrf.mxu0
        %v3849 = vadd.f32 %v3463, %v3848
        %v3850 = vpop.f32.mrf.mxu0
        %v3851 = vadd.f32 %v3467, %v3850
        %3852 = vmatprep.mubr.bf16.mxu0 %v3383
        %3853 = vmatmul.mubr.bf16.gmra.mxu0 %v3382
        %v3854 = vpop.f32.mrf.mxu0
        %v3855 = vadd.f32 %v3463, %v3854
        %v3856 = vpop.f32.mrf.mxu0
        %v3857 = vadd.f32 %v3467, %v3856
        %v3858 = vpop.f32.mrf.mxu0
        %v3859 = vadd.f32 %v3463, %v3858
        %v3860 = vpop.f32.mrf.mxu0
        %v3861 = vadd.f32 %v3467, %v3860
        %3862 = vmatprep.mubr.bf16.mxu0 %v3385
        %3863 = vmatmul.mubr.bf16.gmra.mxu0 %v3384
        %v3864 = vpop.f32.mrf.mxu0
        %v3865 = vadd.f32 %v3463, %v3864
        %v3866 = vpop.f32.mrf.mxu0
        %v3867 = vadd.f32 %v3467, %v3866
        %v3868 = vpop.f32.mrf.mxu0
        %v3869 = vadd.f32 %v3463, %v3868
        %v3870 = vpop.f32.mrf.mxu0
        %v3871 = vadd.f32 %v3467, %v3870
        %3872 = vmatprep.mubr.bf16.mxu0 %v3387
        %3873 = vmatmul.mubr.bf16.gmra.mxu0 %v3386
        %v3874 = vpop.f32.mrf.mxu0
        %v3875 = vadd.f32 %v3463, %v3874
        %v3876 = vpop.f32.mrf.mxu0
        %v3877 = vadd.f32 %v3467, %v3876
        %v3878 = vpop.f32.mrf.mxu0
        %v3879 = vadd.f32 %v3463, %v3878
        %v3880 = vpop.f32.mrf.mxu0
        %v3881 = vadd.f32 %v3467, %v3880
        %3882 = vmatprep.mubr.bf16.mxu0 %v3389
        %3883 = vmatmul.mubr.bf16.gmra.mxu0 %v3388
        %v3884 = vpop.f32.mrf.mxu0
        %v3885 = vadd.f32 %v3463, %v3884
        %v3886 = vpop.f32.mrf.mxu0
        %v3887 = vadd.f32 %v3467, %v3886
        %v3888 = vpop.f32.mrf.mxu0
        %v3889 = vadd.f32 %v3463, %v3888
        %v3890 = vpop.f32.mrf.mxu0
        %v3891 = vadd.f32 %v3467, %v3890
        %3892 = vmatprep.mubr.bf16.mxu0 %v3391
        %3893 = vmatmul.mubr.bf16.gmra.mxu0 %v3390
        %v3894 = vpop.f32.mrf.mxu0
        %v3895 = vadd.f32 %v3463, %v3894
        %v3896 = vpop.f32.mrf.mxu0
        %v3897 = vadd.f32 %v3467, %v3896
        %v3898 = vpop.f32.mrf.mxu0
        %v3899 = vadd.f32 %v3463, %v3898
        %v3900 = vpop.f32.mrf.mxu0
        %v3901 = vadd.f32 %v3467, %v3900
        %3902 = vmatprep.mubr.bf16.mxu0 %v3393
        %3903 = vmatmul.mubr.bf16.gmra.mxu0 %v3392
        %v3904 = vpop.f32.mrf.mxu0
        %v3905 = vadd.f32 %v3463, %v3904
        %v3906 = vpop.f32.mrf.mxu0
        %v3907 = vadd.f32 %v3467, %v3906
        %v3908 = vpop.f32.mrf.mxu0
        %v3909 = vadd.f32 %v3463, %v3908
        %v3910 = vpop.f32.mrf.mxu0
        %v3911 = vadd.f32 %v3467, %v3910
        %3912 = vdwg.mxu0
        %3913 = vmatprep.subr.bf16.mxu0 %v3703
        %3914 = vmatpush1.bf16.msra.mxu0 %v3702
        %3915 = vmatprep.subr.bf16.mxu0 %v3699
        %3916 = vmatpush1.bf16.msra.mxu0 %v3698
        %3917 = vmatprep.subr.bf16.mxu0 %v3695
        %3918 = vmatpush1.bf16.msra.mxu0 %v3694
        %3919 = vmatprep.subr.bf16.mxu0 %v3691
        %3920 = vmatpush1.bf16.msra.mxu0 %v3690
        %3921 = vmatprep.subr.bf16.mxu0 %v3687
        %3922 = vmatpush1.bf16.msra.mxu0 %v3686
        %3923 = vmatprep.subr.bf16.mxu0 %v3683
        %3924 = vmatpush1.bf16.msra.mxu0 %v3682
        %3925 = vmatprep.subr.bf16.mxu0 %v3679
        %3926 = vmatpush1.bf16.msra.mxu0 %v3678
        %3927 = vmatprep.subr.bf16.mxu0 %v3675
        %3928 = vmatpush1.bf16.msra.mxu0 %v3674
        %3929 = vmatprep.subr.bf16.mxu0 %v3735
        %3930 = vmatpush2.bf16.msra.mxu0 %v3734
        %3931 = vmatprep.subr.bf16.mxu0 %v3731
        %3932 = vmatpush2.bf16.msra.mxu0 %v3730
        %3933 = vmatprep.subr.bf16.mxu0 %v3727
        %3934 = vmatpush2.bf16.msra.mxu0 %v3726
        %3935 = vmatprep.subr.bf16.mxu0 %v3723
        %3936 = vmatpush2.bf16.msra.mxu0 %v3722
        %3937 = vmatprep.subr.bf16.mxu0 %v3719
        %3938 = vmatpush2.bf16.msra.mxu0 %v3718
        %3939 = vmatprep.subr.bf16.mxu0 %v3715
        %3940 = vmatpush2.bf16.msra.mxu0 %v3714
        %3941 = vmatprep.subr.bf16.mxu0 %v3711
        %3942 = vmatpush2.bf16.msra.mxu0 %v3710
        %3943 = vmatprep.subr.bf16.mxu0 %v3707
        %3944 = vmatpush2.bf16.msra.mxu0 %v3706
        %3945 = vmatprep.mubr.bf16.mxu0 %v3379
        %3946 = vmatmul.mubr.bf16.gmra.mxu0 %v3378
        %v3947 = vpop.f32.mrf.mxu0
        %v3948 = vadd.f32 %v3471, %v3947
        %v3949 = vpop.f32.mrf.mxu0
        %v3950 = vadd.f32 %v3475, %v3949
        %v3951 = vpop.f32.mrf.mxu0
        %v3952 = vadd.f32 %v3471, %v3951
        %v3953 = vpop.f32.mrf.mxu0
        %v3954 = vadd.f32 %v3475, %v3953
        %3955 = vmatprep.mubr.bf16.mxu0 %v3381
        %3956 = vmatmul.mubr.bf16.gmra.mxu0 %v3380
        %v3957 = vpop.f32.mrf.mxu0
        %v3958 = vadd.f32 %v3471, %v3957
        %v3959 = vpop.f32.mrf.mxu0
        %v3960 = vadd.f32 %v3475, %v3959
        %v3961 = vpop.f32.mrf.mxu0
        %v3962 = vadd.f32 %v3471, %v3961
        %v3963 = vpop.f32.mrf.mxu0
        %v3964 = vadd.f32 %v3475, %v3963
        %3965 = vmatprep.mubr.bf16.mxu0 %v3383
        %3966 = vmatmul.mubr.bf16.gmra.mxu0 %v3382
        %v3967 = vpop.f32.mrf.mxu0
        %v3968 = vadd.f32 %v3471, %v3967
        %v3969 = vpop.f32.mrf.mxu0
        %v3970 = vadd.f32 %v3475, %v3969
        %v3971 = vpop.f32.mrf.mxu0
        %v3972 = vadd.f32 %v3471, %v3971
        %v3973 = vpop.f32.mrf.mxu0
        %v3974 = vadd.f32 %v3475, %v3973
        %3975 = vmatprep.mubr.bf16.mxu0 %v3385
        %3976 = vmatmul.mubr.bf16.gmra.mxu0 %v3384
        %v3977 = vpop.f32.mrf.mxu0
        %v3978 = vadd.f32 %v3471, %v3977
        %v3979 = vpop.f32.mrf.mxu0
        %v3980 = vadd.f32 %v3475, %v3979
        %v3981 = vpop.f32.mrf.mxu0
        %v3982 = vadd.f32 %v3471, %v3981
        %v3983 = vpop.f32.mrf.mxu0
        %v3984 = vadd.f32 %v3475, %v3983
        %3985 = vmatprep.mubr.bf16.mxu0 %v3387
        %3986 = vmatmul.mubr.bf16.gmra.mxu0 %v3386
        %v3987 = vpop.f32.mrf.mxu0
        %v3988 = vadd.f32 %v3471, %v3987
        %v3989 = vpop.f32.mrf.mxu0
        %v3990 = vadd.f32 %v3475, %v3989
        %v3991 = vpop.f32.mrf.mxu0
        %v3992 = vadd.f32 %v3471, %v3991
        %v3993 = vpop.f32.mrf.mxu0
        %v3994 = vadd.f32 %v3475, %v3993
        %3995 = vmatprep.mubr.bf16.mxu0 %v3389
        %3996 = vmatmul.mubr.bf16.gmra.mxu0 %v3388
        %v3997 = vpop.f32.mrf.mxu0
        %v3998 = vadd.f32 %v3471, %v3997
        %v3999 = vpop.f32.mrf.mxu0
        %v4000 = vadd.f32 %v3475, %v3999
        %v4001 = vpop.f32.mrf.mxu0
        %v4002 = vadd.f32 %v3471, %v4001
        %v4003 = vpop.f32.mrf.mxu0
        %v4004 = vadd.f32 %v3475, %v4003
        %4005 = vmatprep.mubr.bf16.mxu0 %v3391
        %4006 = vmatmul.mubr.bf16.gmra.mxu0 %v3390
        %v4007 = vpop.f32.mrf.mxu0
        %v4008 = vadd.f32 %v3471, %v4007
        %v4009 = vpop.f32.mrf.mxu0
        %v4010 = vadd.f32 %v3475, %v4009
        %v4011 = vpop.f32.mrf.mxu0
        %v4012 = vadd.f32 %v3471, %v4011
        %v4013 = vpop.f32.mrf.mxu0
        %v4014 = vadd.f32 %v3475, %v4013
        %4015 = vmatprep.mubr.bf16.mxu0 %v3393
        %4016 = vmatmul.mubr.bf16.gmra.mxu0 %v3392
        %v4017 = vpop.f32.mrf.mxu0
        %v4018 = vadd.f32 %v3471, %v4017
        %v4019 = vpop.f32.mrf.mxu0
        %v4020 = vadd.f32 %v3475, %v4019
        %v4021 = vpop.f32.mrf.mxu0
        %v4022 = vadd.f32 %v3471, %v4021
        %v4023 = vpop.f32.mrf.mxu0
        %v4024 = vadd.f32 %v3475, %v4023
        %4025 = vdwg.mxu0
        %v4026 = vmul.f32 %v3835, 0.5
        %v4027 = vmul.f32 %v3839, 0.5
        %v4028 = vmul.f32 %v3845, 0.5
        %v4029 = vmul.f32 %v3849, 0.5
        %v4030 = vmul.f32 %v3855, 0.5
        %v4031 = vmul.f32 %v3859, 0.5
        %v4032 = vmul.f32 %v3865, 0.5
        %v4033 = vmul.f32 %v3869, 0.5
        %v4034 = vmul.f32 %v3875, 0.5
        %v4035 = vmul.f32 %v3879, 0.5
        %v4036 = vmul.f32 %v3885, 0.5
        %v4037 = vmul.f32 %v3889, 0.5
        %v4038 = vmul.f32 %v3895, 0.5
        %v4039 = vmul.f32 %v3899, 0.5
        %v4040 = vmul.f32 %v3905, 0.5
        %v4041 = vmul.f32 %v3909, 0.5
        %v4042 = vtanh.pop %v4026
        %v4043 = vtanh.pop %v4027
        %v4044 = vtanh.pop %v4028
        %v4045 = vtanh.pop %v4029
        %v4046 = vtanh.pop %v4030
        %v4047 = vtanh.pop %v4031
        %v4048 = vtanh.pop %v4032
        %v4049 = vtanh.pop %v4033
        %v4050 = vtanh.pop %v4034
        %v4051 = vtanh.pop %v4035
        %v4052 = vtanh.pop %v4036
        %v4053 = vtanh.pop %v4037
        %v4054 = vtanh.pop %v4038
        %v4055 = vtanh.pop %v4039
        %v4056 = vtanh.pop %v4040
        %v4057 = vtanh.pop %v4041
        %v4058 = vmul.f32 %v4042, 0.5
        %v4059 = vmul.f32 %v4043, 0.5
        %v4060 = vmul.f32 %v4044, 0.5
        %v4061 = vmul.f32 %v4045, 0.5
        %v4062 = vmul.f32 %v4046, 0.5
        %v4063 = vmul.f32 %v4047, 0.5
        %v4064 = vmul.f32 %v4048, 0.5
        %v4065 = vmul.f32 %v4049, 0.5
        %v4066 = vmul.f32 %v4050, 0.5
        %v4067 = vmul.f32 %v4051, 0.5
        %v4068 = vmul.f32 %v4052, 0.5
        %v4069 = vmul.f32 %v4053, 0.5
        %v4070 = vmul.f32 %v4054, 0.5
        %v4071 = vmul.f32 %v4055, 0.5
        %v4072 = vmul.f32 %v4056, 0.5
        %v4073 = vmul.f32 %v4057, 0.5
        %v4074 = vadd.f32 %v4058, 0.5
        %v4075 = vadd.f32 %v4059, 0.5
        %v4076 = vadd.f32 %v4060, 0.5
        %v4077 = vadd.f32 %v4061, 0.5
        %v4078 = vadd.f32 %v4062, 0.5
        %v4079 = vadd.f32 %v4063, 0.5
        %v4080 = vadd.f32 %v4064, 0.5
        %v4081 = vadd.f32 %v4065, 0.5
        %v4082 = vadd.f32 %v4066, 0.5
        %v4083 = vadd.f32 %v4067, 0.5
        %v4084 = vadd.f32 %v4068, 0.5
        %v4085 = vadd.f32 %v4069, 0.5
        %v4086 = vadd.f32 %v4070, 0.5
        %v4087 = vadd.f32 %v4071, 0.5
        %v4088 = vadd.f32 %v4072, 0.5
        %v4089 = vadd.f32 %v4073, 0.5
        %v4090 = vmul.f32 %v3837, 0.5
        %v4091 = vmul.f32 %v3841, 0.5
        %v4092 = vmul.f32 %v3847, 0.5
        %v4093 = vmul.f32 %v3851, 0.5
        %v4094 = vmul.f32 %v3857, 0.5
        %v4095 = vmul.f32 %v3861, 0.5
        %v4096 = vmul.f32 %v3867, 0.5
        %v4097 = vmul.f32 %v3871, 0.5
        %v4098 = vmul.f32 %v3877, 0.5
        %v4099 = vmul.f32 %v3881, 0.5
        %v4100 = vmul.f32 %v3887, 0.5
        %v4101 = vmul.f32 %v3891, 0.5
        %v4102 = vmul.f32 %v3897, 0.5
        %v4103 = vmul.f32 %v3901, 0.5
        %v4104 = vmul.f32 %v3907, 0.5
        %v4105 = vmul.f32 %v3911, 0.5
        %v4106 = vtanh.pop %v4090
        %v4107 = vtanh.pop %v4091
        %v4108 = vtanh.pop %v4092
        %v4109 = vtanh.pop %v4093
        %v4110 = vtanh.pop %v4094
        %v4111 = vtanh.pop %v4095
        %v4112 = vtanh.pop %v4096
        %v4113 = vtanh.pop %v4097
        %v4114 = vtanh.pop %v4098
        %v4115 = vtanh.pop %v4099
        %v4116 = vtanh.pop %v4100
        %v4117 = vtanh.pop %v4101
        %v4118 = vtanh.pop %v4102
        %v4119 = vtanh.pop %v4103
        %v4120 = vtanh.pop %v4104
        %v4121 = vtanh.pop %v4105
        %v4122 = vmul.f32 %v4106, 0.5
        %v4123 = vmul.f32 %v4107, 0.5
        %v4124 = vmul.f32 %v4108, 0.5
        %v4125 = vmul.f32 %v4109, 0.5
        %v4126 = vmul.f32 %v4110, 0.5
        %v4127 = vmul.f32 %v4111, 0.5
        %v4128 = vmul.f32 %v4112, 0.5
        %v4129 = vmul.f32 %v4113, 0.5
        %v4130 = vmul.f32 %v4114, 0.5
        %v4131 = vmul.f32 %v4115, 0.5
        %v4132 = vmul.f32 %v4116, 0.5
        %v4133 = vmul.f32 %v4117, 0.5
        %v4134 = vmul.f32 %v4118, 0.5
        %v4135 = vmul.f32 %v4119, 0.5
        %v4136 = vmul.f32 %v4120, 0.5
        %v4137 = vmul.f32 %v4121, 0.5
        %v4138 = vadd.f32 %v4122, 0.5
        %v4139 = vadd.f32 %v4123, 0.5
        %v4140 = vadd.f32 %v4124, 0.5
        %v4141 = vadd.f32 %v4125, 0.5
        %v4142 = vadd.f32 %v4126, 0.5
        %v4143 = vadd.f32 %v4127, 0.5
        %v4144 = vadd.f32 %v4128, 0.5
        %v4145 = vadd.f32 %v4129, 0.5
        %v4146 = vadd.f32 %v4130, 0.5
        %v4147 = vadd.f32 %v4131, 0.5
        %v4148 = vadd.f32 %v4132, 0.5
        %v4149 = vadd.f32 %v4133, 0.5
        %v4150 = vadd.f32 %v4134, 0.5
        %v4151 = vadd.f32 %v4135, 0.5
        %v4152 = vadd.f32 %v4136, 0.5
        %v4153 = vadd.f32 %v4137, 0.5
        %v4154 = vmul.f32 %v3948, 0.5
        %v4155 = vmul.f32 %v3952, 0.5
        %v4156 = vmul.f32 %v3958, 0.5
        %v4157 = vmul.f32 %v3962, 0.5
        %v4158 = vmul.f32 %v3968, 0.5
        %v4159 = vmul.f32 %v3972, 0.5
        %v4160 = vmul.f32 %v3978, 0.5
        %v4161 = vmul.f32 %v3982, 0.5
        %v4162 = vmul.f32 %v3988, 0.5
        %v4163 = vmul.f32 %v3992, 0.5
        %v4164 = vmul.f32 %v3998, 0.5
        %v4165 = vmul.f32 %v4002, 0.5
        %v4166 = vmul.f32 %v4008, 0.5
        %v4167 = vmul.f32 %v4012, 0.5
        %v4168 = vmul.f32 %v4018, 0.5
        %v4169 = vmul.f32 %v4022, 0.5
        %v4170 = vtanh.pop %v4154
        %v4171 = vtanh.pop %v4155
        %v4172 = vtanh.pop %v4156
        %v4173 = vtanh.pop %v4157
        %v4174 = vtanh.pop %v4158
        %v4175 = vtanh.pop %v4159
        %v4176 = vtanh.pop %v4160
        %v4177 = vtanh.pop %v4161
        %v4178 = vtanh.pop %v4162
        %v4179 = vtanh.pop %v4163
        %v4180 = vtanh.pop %v4164
        %v4181 = vtanh.pop %v4165
        %v4182 = vtanh.pop %v4166
        %v4183 = vtanh.pop %v4167
        %v4184 = vtanh.pop %v4168
        %v4185 = vtanh.pop %v4169
        %v4186 = vmul.f32 %v4170, 0.5
        %v4187 = vmul.f32 %v4171, 0.5
        %v4188 = vmul.f32 %v4172, 0.5
        %v4189 = vmul.f32 %v4173, 0.5
        %v4190 = vmul.f32 %v4174, 0.5
        %v4191 = vmul.f32 %v4175, 0.5
        %v4192 = vmul.f32 %v4176, 0.5
        %v4193 = vmul.f32 %v4177, 0.5
        %v4194 = vmul.f32 %v4178, 0.5
        %v4195 = vmul.f32 %v4179, 0.5
        %v4196 = vmul.f32 %v4180, 0.5
        %v4197 = vmul.f32 %v4181, 0.5
        %v4198 = vmul.f32 %v4182, 0.5
        %v4199 = vmul.f32 %v4183, 0.5
        %v4200 = vmul.f32 %v4184, 0.5
        %v4201 = vmul.f32 %v4185, 0.5
        %v4202 = vadd.f32 %v4186, 0.5
        %v4203 = vadd.f32 %v4187, 0.5
        %v4204 = vadd.f32 %v4188, 0.5
        %v4205 = vadd.f32 %v4189, 0.5
        %v4206 = vadd.f32 %v4190, 0.5
        %v4207 = vadd.f32 %v4191, 0.5
        %v4208 = vadd.f32 %v4192, 0.5
        %v4209 = vadd.f32 %v4193, 0.5
        %v4210 = vadd.f32 %v4194, 0.5
        %v4211 = vadd.f32 %v4195, 0.5
        %v4212 = vadd.f32 %v4196, 0.5
        %v4213 = vadd.f32 %v4197, 0.5
        %v4214 = vadd.f32 %v4198, 0.5
        %v4215 = vadd.f32 %v4199, 0.5
        %v4216 = vadd.f32 %v4200, 0.5
        %v4217 = vadd.f32 %v4201, 0.5
        %v4218 = vtanh.pop %v3950
        %v4219 = vtanh.pop %v3954
        %v4220 = vtanh.pop %v3960
        %v4221 = vtanh.pop %v3964
        %v4222 = vtanh.pop %v3970
        %v4223 = vtanh.pop %v3974
        %v4224 = vtanh.pop %v3980
        %v4225 = vtanh.pop %v3984
        %v4226 = vtanh.pop %v3990
        %v4227 = vtanh.pop %v3994
        %v4228 = vtanh.pop %v4000
        %v4229 = vtanh.pop %v4004
        %v4230 = vtanh.pop %v4010
        %v4231 = vtanh.pop %v4014
        %v4232 = vtanh.pop %v4020
        %v4233 = vtanh.pop %v4024
        %v4234 = vmul.f32 %v4074, %v4218
        %v4235 = vmul.f32 %v4075, %v4219
        %v4236 = vmul.f32 %v4076, %v4220
        %v4237 = vmul.f32 %v4077, %v4221
        %v4238 = vmul.f32 %v4078, %v4222
        %v4239 = vmul.f32 %v4079, %v4223
        %v4240 = vmul.f32 %v4080, %v4224
        %v4241 = vmul.f32 %v4081, %v4225
        %v4242 = vmul.f32 %v4082, %v4226
        %v4243 = vmul.f32 %v4083, %v4227
        %v4244 = vmul.f32 %v4084, %v4228
        %v4245 = vmul.f32 %v4085, %v4229
        %v4246 = vmul.f32 %v4086, %v4230
        %v4247 = vmul.f32 %v4087, %v4231
        %v4248 = vmul.f32 %v4088, %v4232
        %v4249 = vmul.f32 %v4089, %v4233
        %v4250 = vmul.f32 %v4138, %v795
        %v4251 = vmul.f32 %v4139, %v796
        %v4252 = vmul.f32 %v4140, %v797
        %v4253 = vmul.f32 %v4141, %v798
        %v4254 = vmul.f32 %v4142, %v799
        %v4255 = vmul.f32 %v4143, %v800
        %v4256 = vmul.f32 %v4144, %v801
        %v4257 = vmul.f32 %v4145, %v802
        %v4258 = vmul.f32 %v4146, %v803
        %v4259 = vmul.f32 %v4147, %v804
        %v4260 = vmul.f32 %v4148, %v805
        %v4261 = vmul.f32 %v4149, %v806
        %v4262 = vmul.f32 %v4150, %v807
        %v4263 = vmul.f32 %v4151, %v808
        %v4264 = vmul.f32 %v4152, %v809
        %v4265 = vmul.f32 %v4153, %v810
        %v4266 = vadd.f32 %v4234, %v4250
        %v4267 = vadd.f32 %v4235, %v4251
        %v4268 = vadd.f32 %v4236, %v4252
        %v4269 = vadd.f32 %v4237, %v4253
        %v4270 = vadd.f32 %v4238, %v4254
        %v4271 = vadd.f32 %v4239, %v4255
        %v4272 = vadd.f32 %v4240, %v4256
        %v4273 = vadd.f32 %v4241, %v4257
        %v4274 = vadd.f32 %v4242, %v4258
        %v4275 = vadd.f32 %v4243, %v4259
        %v4276 = vadd.f32 %v4244, %v4260
        %v4277 = vadd.f32 %v4245, %v4261
        %v4278 = vadd.f32 %v4246, %v4262
        %v4279 = vadd.f32 %v4247, %v4263
        %v4280 = vadd.f32 %v4248, %v4264
        %v4281 = vadd.f32 %v4249, %v4265
        %v4282 = vmul.f32 %v4202, %v811
        %v4283 = vmul.f32 %v4203, %v812
        %v4284 = vmul.f32 %v4204, %v813
        %v4285 = vmul.f32 %v4205, %v814
        %v4286 = vmul.f32 %v4206, %v815
        %v4287 = vmul.f32 %v4207, %v816
        %v4288 = vmul.f32 %v4208, %v817
        %v4289 = vmul.f32 %v4209, %v818
        %v4290 = vmul.f32 %v4210, %v819
        %v4291 = vmul.f32 %v4211, %v820
        %v4292 = vmul.f32 %v4212, %v821
        %v4293 = vmul.f32 %v4213, %v822
        %v4294 = vmul.f32 %v4214, %v823
        %v4295 = vmul.f32 %v4215, %v824
        %v4296 = vmul.f32 %v4216, %v825
        %v4297 = vmul.f32 %v4217, %v826
        %v4298 = vadd.f32 %v4266, %v4282
        %v4299 = vadd.f32 %v4267, %v4283
        %v4300 = vadd.f32 %v4268, %v4284
        %v4301 = vadd.f32 %v4269, %v4285
        %v4302 = vadd.f32 %v4270, %v4286
        %v4303 = vadd.f32 %v4271, %v4287
        %v4304 = vadd.f32 %v4272, %v4288
        %v4305 = vadd.f32 %v4273, %v4289
        %v4306 = vadd.f32 %v4274, %v4290
        %v4307 = vadd.f32 %v4275, %v4291
        %v4308 = vadd.f32 %v4276, %v4292
        %v4309 = vadd.f32 %v4277, %v4293
        %v4310 = vadd.f32 %v4278, %v4294
        %v4311 = vadd.f32 %v4279, %v4295
        %v4312 = vadd.f32 %v4280, %v4296
        %v4313 = vadd.f32 %v4281, %v4297
        %v4314 = vtanh.pop %v4298
        %v4315 = vtanh.pop %v4299
        %v4316 = vtanh.pop %v4300
        %v4317 = vtanh.pop %v4301
        %v4318 = vtanh.pop %v4302
        %v4319 = vtanh.pop %v4303
        %v4320 = vtanh.pop %v4304
        %v4321 = vtanh.pop %v4305
        %v4322 = vtanh.pop %v4306
        %v4323 = vtanh.pop %v4307
        %v4324 = vtanh.pop %v4308
        %v4325 = vtanh.pop %v4309
        %v4326 = vtanh.pop %v4310
        %v4327 = vtanh.pop %v4311
        %v4328 = vtanh.pop %v4312
        %v4329 = vtanh.pop %v4313
        %4330 = vst [vmem:[%s782] sm:$0xff] %v4298
        %4331 = vst [vmem:[%s782 + $0x8] sm:$0xff] %v4299
        %4332 = vst [vmem:[%s782 + $0x10] sm:$0xff] %v4300
        %4333 = vst [vmem:[%s782 + $0x18] sm:$0xff] %v4301
        %4334 = vst [vmem:[%s782 + $0x20] sm:$0xff] %v4302
        %4335 = vst [vmem:[%s782 + $0x28] sm:$0xff] %v4303
        %4336 = vst [vmem:[%s782 + $0x30] sm:$0xff] %v4304
        %4337 = vst [vmem:[%s782 + $0x38] sm:$0xff] %v4305
        %4338 = vst [vmem:[%s782 + $0x40] sm:$0xff] %v4306
        %4339 = vst [vmem:[%s782 + $0x48] sm:$0xff] %v4307
        %4340 = vst [vmem:[%s782 + $0x50] sm:$0xff] %v4308
        %4341 = vst [vmem:[%s782 + $0x58] sm:$0xff] %v4309
        %4342 = vst [vmem:[%s782 + $0x60] sm:$0xff] %v4310
        %4343 = vst [vmem:[%s782 + $0x68] sm:$0xff] %v4311
        %4344 = vst [vmem:[%s782 + $0x70] sm:$0xff] %v4312
        %4345 = vst [vmem:[%s782 + $0x78] sm:$0xff] %v4313
        %4346 = vst [vmem:[%s789] sm:$0xff] %v4314
        %4347 = vst [vmem:[%s789 + $0x8] sm:$0xff] %v4315
        %4348 = vst [vmem:[%s789 + $0x10] sm:$0xff] %v4316
        %4349 = vst [vmem:[%s789 + $0x18] sm:$0xff] %v4317
        %4350 = vst [vmem:[%s789 + $0x20] sm:$0xff] %v4318
        %4351 = vst [vmem:[%s789 + $0x28] sm:$0xff] %v4319
        %4352 = vst [vmem:[%s789 + $0x30] sm:$0xff] %v4320
        %4353 = vst [vmem:[%s789 + $0x38] sm:$0xff] %v4321
        %4354 = vst [vmem:[%s789 + $0x40] sm:$0xff] %v4322
        %4355 = vst [vmem:[%s789 + $0x48] sm:$0xff] %v4323
        %4356 = vst [vmem:[%s789 + $0x50] sm:$0xff] %v4324
        %4357 = vst [vmem:[%s789 + $0x58] sm:$0xff] %v4325
        %4358 = vst [vmem:[%s789 + $0x60] sm:$0xff] %v4326
        %4359 = vst [vmem:[%s789 + $0x68] sm:$0xff] %v4327
        %4360 = vst [vmem:[%s789 + $0x70] sm:$0xff] %v4328
        %4361 = vst [vmem:[%s789 + $0x78] sm:$0xff] %v4329
        %s4362 = sand.u32 %s301, 1
        %s4363 = scalar_lea.sflag [#allocation5], %s4362
        %s4364 = sand.u32 %s301, 1
        %s4365 = smul.addr %s4364, 128
        %s4366 = scalar_lea.vmem [#allocation4], %s4365
        %s4367 = sand.u32 %s327, 1
        %s4368 = scalar_lea.sflag [#allocation7], %s4367
        %s4369 = sand.u32 %s327, 1
        %s4370 = smul.addr %s4369, 128
        %s4371 = scalar_lea.vmem [#allocation6], %s4370
        // Predicated region
        $region145: #{_compose_level.1} parent=135 // pred_check
          %p4372 = pneg %p311
        $region146: #{_compose_level.1} parent=135 // pred_check_branch
          %4374 = sbr.rel (%p4372) target = $region148
        $region147: #{_compose_level.1} parent=135 // pred_region
          %s4375 = smul.u32 16, %s31
          %s4377 = ssub.s32 2048, 2048
          %4378 = vsyncadd %s4363, %s4377
          %s4379 = smul.addr %s4375, 128
          %s4380 = scalar_lea.hbm %s12, %s4379
          %s4381 = sshll.u32 %s4366, 4
          %s4382 = int_to_ptr.vmem [resolvable:$true] %s4381
          %4387 = dma.vmem_to_hbm [thread:$0]  %s4382, 2048, %s4380, %s4363, 128, 128, 8
        $region148: #{_compose_level.1} parent=135 // pred_fallthru
          _
        // Predicated region
        $region149: #{_compose_level.1} parent=135 // pred_check
          %p4388 = pneg %p337
        $region150: #{_compose_level.1} parent=135 // pred_check_branch
          %4390 = sbr.rel (%p4388) target = $region152
        $region151: #{_compose_level.1} parent=135 // pred_region
          %s4391 = smul.u32 16, %s31
          %s4393 = ssub.s32 2048, 2048
          %4394 = vsyncadd %s4368, %s4393
          %s4395 = smul.addr %s4391, 128
          %s4396 = scalar_lea.hbm %s13, %s4395
          %s4397 = sshll.u32 %s4371, 4
          %s4398 = int_to_ptr.vmem [resolvable:$true] %s4397
          %4403 = dma.vmem_to_hbm [thread:$0]  %s4398, 2048, %s4396, %s4368, 128, 128, 8
        $region152: #{_compose_level.1} parent=135 // pred_fallthru
          _
      $region136: #{_compose_level.1} parent=5 // pred_fallthru
        _
      %p4404 = scmp.le.s32.totalorder 2, %s26
      // Predicated region
      $region153: #{_compose_level.1} parent=5 // pred_check
        %p4405 = pneg %p4404
      $region154: #{_compose_level.1} parent=5 // pred_check_branch
        %4407 = sbr.rel (%p4405) target = $region156
      $region155: #{_compose_level.1} parent=5 // pred_region
        %s4408 = ssub.s32 %s26, 2
        // Predicated region
        $region157: #{_compose_level.1} parent=155 // pred_check
          %p4409 = pneg %p317
        $region158: #{_compose_level.1} parent=155 // pred_check_branch
          %4411 = sbr.rel (%p4409) target = $region160
        $region159: #{_compose_level.1} parent=155 // pred_region
          %s4412 = sand.u32 %s302, 1
          %s4413 = scalar_lea.sflag [#allocation5], %s4412
          %s4414 = sand.u32 %s302, 1
          %s4415 = smul.addr %s4414, 128
          %s4416 = scalar_lea.vmem [#allocation4], %s4415
          %4417 = dma.done %s4413, 2048
        $region160: #{_compose_level.1} parent=155 // pred_fallthru
          _
        // Predicated region
        $region161: #{_compose_level.1} parent=155 // pred_check
          %p4418 = pneg %p343
        $region162: #{_compose_level.1} parent=155 // pred_check_branch
          %4420 = sbr.rel (%p4418) target = $region164
        $region163: #{_compose_level.1} parent=155 // pred_region
          %s4421 = sand.u32 %s328, 1
          %s4422 = scalar_lea.sflag [#allocation7], %s4421
          %s4423 = sand.u32 %s328, 1
          %s4424 = smul.addr %s4423, 128
          %s4425 = scalar_lea.vmem [#allocation6], %s4424
          %4426 = dma.done %s4422, 2048
        $region164: #{_compose_level.1} parent=155 // pred_fallthru
          _
      $region156: #{_compose_level.1} parent=5 // pred_fallthru
        _
    $region6: #{_compose_level.1} parent=1 // loop_footer
      %s30 = sadd.s32 1, %s26
    $region7: #{_compose_level.1} parent=1 // loop_footer_branch
      %25 = sbr.rel target = $region3
    $region8: #{_compose_level.1} parent=1 // loop_exit
      _
    %4427 = vsyncpa [#allocation5], 1
    %s4428 = scalar_lea.sflag [#allocation5], 1
    %4429 = vsyncpa %s4428, 1
    %4430 = vsyncpa [#allocation7], 1
    %s4431 = scalar_lea.sflag [#allocation7], 1
    %4432 = vsyncpa %s4431, 1

</llo_original>
